<compile_context>
chip_gen: v6e
topology: v6e:2x2x1
jax: 0.10.0
libtpu: 0.0.40
codegen_flags: <defaults>
</compile_context>

<pallas_src>
import math

import jax
import jax.numpy as jnp
from jax import lax
from jax.experimental import pallas as pl
from jax.experimental.pallas import tpu as pltpu

# --------------------------- small ViT configuration ------------------------
CHANNELS = 3
IMG = 16
PATCH = 8
NUM_PATCHES = (IMG // PATCH) ** 2            # 4
SEQ = NUM_PATCHES + 1                        # 5 tokens: CLS + patches
PATCH_DIM = CHANNELS * PATCH * PATCH         # 192

HIDDEN = 32
NUM_HEADS = 4
HEAD_DIM = HIDDEN // NUM_HEADS               # 8
INTERMEDIATE = 64
NUM_LAYERS = 2
LN_EPS = 1e-12
DROPOUT_P = 0.2                              # module default mode='fine_tune' -> train()
ATTN_SCALE = 1.0 / math.sqrt(HEAD_DIM)

BATCH = 2


# ------------------------------ in-kernel math -------------------------------
def _erf(x):
    # Abramowitz & Stegun 7.1.26 (|err| <= 1.5e-7): exact-GELU semantics to f32
    # precision using only VPU/EUP ops (abs, select, exp).
    a1, a2, a3, a4, a5 = 0.254829592, -0.284496736, 1.421413741, -1.453152027, 1.061405429
    p = 0.3275911
    sgn = jnp.where(x >= 0.0, 1.0, -1.0)
    ax = jnp.abs(x)
    t = 1.0 / (1.0 + p * ax)
    poly = ((((a5 * t + a4) * t + a3) * t + a2) * t + a1) * t
    return sgn * (1.0 - poly * jnp.exp(-ax * ax))


def _gelu(x):
    return 0.5 * x * (1.0 + _erf(x * (1.0 / math.sqrt(2.0))))


def _layernorm(h, g, b):
    mu = jnp.mean(h, axis=-1, keepdims=True)
    var = jnp.mean(jnp.square(h - mu), axis=-1, keepdims=True)
    return (h - mu) * lax.rsqrt(var + LN_EPS) * g + b


# ------------------------------ fused ViT kernel -----------------------------
def _vit_kernel(px_ref, pw_ref, tokb_ref,
                ln1g_ref, ln1b_ref, wqkv_ref, bqkv_ref, wo_ref, bo_ref,
                ln2g_ref, ln2b_ref, w1_ref, b1_ref, w2_ref, b2_ref,
                flng_ref, flnb_ref, poolw_ref, poolb_ref, u_ref,
                out_ref):
    f32 = jnp.float32

    # Patch embedding (conv-as-matmul).  Row 0 of px is zeros (CLS slot);
    # tok_bias already carries cls_token / conv bias + position embeddings.
    patches = px_ref[0]                                                   # (SEQ, PATCH_DIM)
    x = jnp.dot(patches, pw_ref[...], preferred_element_type=f32) + tokb_ref[...]   # (SEQ, H)

    for l in range(NUM_LAYERS):
        # ---------- multi-head self-attention (pre-LayerNorm) ----------
        hn = _layernorm(x, ln1g_ref[l], ln1b_ref[l])
        qkv = jnp.dot(hn, wqkv_ref[l], preferred_element_type=f32) + bqkv_ref[l]     # (SEQ, 3H)
        wo_l = wo_ref[l]                                                  # (H, H)
        attn = jnp.zeros((SEQ, HIDDEN), f32)
        for h in range(NUM_HEADS):
            lo, hi = h * HEAD_DIM, (h + 1) * HEAD_DIM
            q = qkv[:, lo:hi]                                             # (SEQ, dh)
            k = qkv[:, HIDDEN + lo:HIDDEN + hi]
            v = qkv[:, 2 * HIDDEN + lo:2 * HIDDEN + hi]
            s = lax.dot_general(q, k, (((1,), (1,)), ((), ())),
                                preferred_element_type=f32) * ATTN_SCALE  # (SEQ, SEQ)
            s = s - jnp.max(s, axis=-1, keepdims=True)
            p = jnp.exp(s)
            p = p / jnp.sum(p, axis=-1, keepdims=True)
            ctx = jnp.dot(p, v, preferred_element_type=f32)               # (SEQ, dh)
            # output projection accumulated per head block of wo
            attn = attn + jnp.dot(ctx, wo_l[lo:hi, :], preferred_element_type=f32)
        x = x + attn + bo_ref[l]                                          # residual

        # ---------- MLP (pre-LayerNorm) ----------
        hn2 = _layernorm(x, ln2g_ref[l], ln2b_ref[l])
        ff = _gelu(jnp.dot(hn2, w1_ref[l], preferred_element_type=f32) + b1_ref[l])
        ff = jnp.dot(ff, w2_ref[l], preferred_element_type=f32) + b2_ref[l]
        x = x + ff                                                        # residual

    # final LayerNorm + pooler (dense + tanh on CLS token)
    x = _layernorm(x, flng_ref[...], flnb_ref[...])
    cls = x[0:1, :]                                                       # (1, H)
    pooled = jnp.tanh(jnp.dot(cls, poolw_ref[...], preferred_element_type=f32)
                      + poolb_ref[...])                                   # (1, H)

    # inverted dropout (train mode); uniforms precomputed host-side.
    keep = u_ref[0] >= DROPOUT_P
    out_ref[0] = jnp.where(keep, pooled * (1.0 / (1.0 - DROPOUT_P)), 0.0)


# --------------------------------- parameters --------------------------------
def init_params(key):
    # TODO(synk): ViTModel.from_pretrained() weights cannot be loaded here;
    # the same architecture is instantiated with random (0.02 * N(0,1)) weights.
    keys = iter(jax.random.split(key, 64))

    def nrm(shape):
        return 0.02 * jax.random.normal(next(keys), shape, jnp.float32)

    ones_h = jnp.ones((HIDDEN,), jnp.float32)
    zeros_h = jnp.zeros((HIDDEN,), jnp.float32)

    params = {
        "patch_w": nrm((PATCH_DIM, HIDDEN)),      # Conv2d(k=stride=PATCH) as matmul
        "patch_b": zeros_h,
        "cls_token": nrm((HIDDEN,)),
        "pos_emb": nrm((SEQ, HIDDEN)),
        "final_ln_g": ones_h, "final_ln_b": zeros_h,
        "pool_w": nrm((HIDDEN, HIDDEN)), "pool_b": zeros_h,
        "layers": [],
    }
    for _ in range(NUM_LAYERS):
        params["layers"].append({
            "ln1_g": ones_h, "ln1_b": zeros_h,
            "wqkv": nrm((HIDDEN, 3 * HIDDEN)),    # fused q|k|v projection
            "bqkv": jnp.zeros((3 * HIDDEN,), jnp.float32),
            "wo": nrm((HIDDEN, HIDDEN)), "bo": zeros_h,
            "ln2_g": ones_h, "ln2_b": zeros_h,
            "w1": nrm((HIDDEN, INTERMEDIATE)), "b1": jnp.zeros((INTERMEDIATE,), jnp.float32),
            "w2": nrm((INTERMEDIATE, HIDDEN)), "b2": zeros_h,
        })
    return params


# --------------------------------- forward -----------------------------------
def _full_spec(arr):
    n = arr.ndim
    return pl.BlockSpec(arr.shape, lambda b, _n=n: (0,) * _n)


def vision_model_forward(params, images, dropout_key):
    B = images.shape[0]

    # XLA glue: patch extraction (flatten order (c, i, j) matches conv weight layout)
    ph = IMG // PATCH
    patches = images.reshape(B, CHANNELS, ph, PATCH, ph, PATCH)
    patches = patches.transpose(0, 2, 4, 1, 3, 5).reshape(B, NUM_PATCHES, PATCH_DIM)
    px = jnp.pad(patches, ((0, 0), (1, 0), (0, 0)))            # zero row 0 = CLS slot

    # token bias rows: CLS row gets cls_token + pos[0]; patch rows get conv bias + pos[i]
    cls_row = (params["cls_token"] + params["pos_emb"][0])[None, :]
    patch_rows = params["pos_emb"][1:] + params["patch_b"][None, :]
    tok_bias = jnp.concatenate([cls_row, patch_rows], axis=0)  # (SEQ, H)

    layers = params["layers"]
    stack = lambda name: jnp.stack([lp[name] for lp in layers])
    ln1g, ln1b = stack("ln1_g")[:, None, :], stack("ln1_b")[:, None, :]
    wqkv, bqkv = stack("wqkv"), stack("bqkv")[:, None, :]
    wo, bo = stack("wo"), stack("bo")[:, None, :]
    ln2g, ln2b = stack("ln2_g")[:, None, :], stack("ln2_b")[:, None, :]
    w1, b1 = stack("w1"), stack("b1")[:, None, :]
    w2, b2 = stack("w2"), stack("b2")[:, None, :]

    flng = params["final_ln_g"][None, :]
    flnb = params["final_ln_b"][None, :]
    poolw = params["pool_w"]
    poolb = params["pool_b"][None, :]

    # TODO(synk): dropout randomness is drawn host-side (jax.random) because the
    # in-kernel pltpu.prng_* primitives have no CPU/interpret lowering; the
    # keep/scale logic itself runs inside the fused kernel.
    u = jax.random.uniform(dropout_key, (B, 1, HIDDEN), jnp.float32)

    out = pl.pallas_call(
        _vit_kernel,
        out_shape=jax.ShapeDtypeStruct((B, 1, HIDDEN), jnp.float32),
        grid=(B,),
        in_specs=[
            pl.BlockSpec((1, SEQ, PATCH_DIM), lambda b: (b, 0, 0)),   # per-image patches
            _full_spec(params["patch_w"]),
            _full_spec(tok_bias),
            _full_spec(ln1g), _full_spec(ln1b),
            _full_spec(wqkv), _full_spec(bqkv),
            _full_spec(wo), _full_spec(bo),
            _full_spec(ln2g), _full_spec(ln2b),
            _full_spec(w1), _full_spec(b1),
            _full_spec(w2), _full_spec(b2),
            _full_spec(flng), _full_spec(flnb),
            _full_spec(poolw), _full_spec(poolb),
            pl.BlockSpec((1, 1, HIDDEN), lambda b: (b, 0, 0)),        # dropout uniforms
        ],
        out_specs=pl.BlockSpec((1, 1, HIDDEN), lambda b: (b, 0, 0)),
        compiler_params=pltpu.CompilerParams(dimension_semantics=("parallel",)),
    )(px, params["patch_w"], tok_bias,
      ln1g, ln1b, wqkv, bqkv, wo, bo, ln2g, ln2b, w1, b1, w2, b2,
      flng, flnb, poolw, poolb, u)

    return out.reshape(B, HIDDEN)


# ----------------------------------- main -------------------------------------
if __name__ == "__main__":
    key = jax.random.PRNGKey(0)
    k_img, k_params, k_drop = jax.random.split(key, 3)

    x = jax.random.normal(k_img, (BATCH, CHANNELS, IMG, IMG), jnp.float32)
    params = init_params(k_params)

    feats = vision_model_forward(params, x, dropout_key=k_drop)
    feats = jax.block_until_ready(feats)

    assert feats.shape == (BATCH, HIDDEN)
    assert jnp.all(jnp.isfinite(feats))
    print("KERNEL_OK")
</pallas_src>

<mosaic_0001>
module attributes {stable_mosaic.version = 11 : i64} {
  func.func @_vit_kernel(%arg0: i32, %arg1: memref<1x5x192xf32, #tpu.memory_space<vmem>>, %arg2: memref<192x32xf32, #tpu.memory_space<vmem>>, %arg3: memref<5x32xf32, #tpu.memory_space<vmem>>, %arg4: memref<2x1x32xf32, #tpu.memory_space<vmem>>, %arg5: memref<2x1x32xf32, #tpu.memory_space<vmem>>, %arg6: memref<2x32x96xf32, #tpu.memory_space<vmem>>, %arg7: memref<2x1x96xf32, #tpu.memory_space<vmem>>, %arg8: memref<2x32x32xf32, #tpu.memory_space<vmem>>, %arg9: memref<2x1x32xf32, #tpu.memory_space<vmem>>, %arg10: memref<2x1x32xf32, #tpu.memory_space<vmem>>, %arg11: memref<2x1x32xf32, #tpu.memory_space<vmem>>, %arg12: memref<2x32x64xf32, #tpu.memory_space<vmem>>, %arg13: memref<2x1x64xf32, #tpu.memory_space<vmem>>, %arg14: memref<2x64x32xf32, #tpu.memory_space<vmem>>, %arg15: memref<2x1x32xf32, #tpu.memory_space<vmem>>, %arg16: memref<1x32xf32, #tpu.memory_space<vmem>>, %arg17: memref<1x32xf32, #tpu.memory_space<vmem>>, %arg18: memref<32x32xf32, #tpu.memory_space<vmem>>, %arg19: memref<1x32xf32, #tpu.memory_space<vmem>>, %arg20: memref<1x1x32xf32, #tpu.memory_space<vmem>>, %arg21: memref<1x1x32xf32, #tpu.memory_space<vmem>>) attributes {dimension_semantics = [#tpu.dimension_semantics<parallel>], iteration_bounds = array<i64: 2>, scalar_prefetch = 0 : i64, scratch_operands = 0 : i64, tpu.core_type = #tpu.core_type<tc>, window_params = [{transform_indices = @transform_0, window_bounds = array<i64: 1, 5, 192>}, {pipeline_mode = #tpu.pipeline_mode<synchronous>, transform_indices = @transform_1, window_bounds = array<i64: 192, 32>}, {pipeline_mode = #tpu.pipeline_mode<synchronous>, transform_indices = @transform_2, window_bounds = array<i64: 5, 32>}, {pipeline_mode = #tpu.pipeline_mode<synchronous>, transform_indices = @transform_3, window_bounds = array<i64: 2, 1, 32>}, {pipeline_mode = #tpu.pipeline_mode<synchronous>, transform_indices = @transform_4, window_bounds = array<i64: 2, 1, 32>}, {pipeline_mode = #tpu.pipeline_mode<synchronous>, transform_indices = @transform_5, window_bounds = array<i64: 2, 32, 96>}, {pipeline_mode = #tpu.pipeline_mode<synchronous>, transform_indices = @transform_6, window_bounds = array<i64: 2, 1, 96>}, {pipeline_mode = #tpu.pipeline_mode<synchronous>, transform_indices = @transform_7, window_bounds = array<i64: 2, 32, 32>}, {pipeline_mode = #tpu.pipeline_mode<synchronous>, transform_indices = @transform_8, window_bounds = array<i64: 2, 1, 32>}, {pipeline_mode = #tpu.pipeline_mode<synchronous>, transform_indices = @transform_9, window_bounds = array<i64: 2, 1, 32>}, {pipeline_mode = #tpu.pipeline_mode<synchronous>, transform_indices = @transform_10, window_bounds = array<i64: 2, 1, 32>}, {pipeline_mode = #tpu.pipeline_mode<synchronous>, transform_indices = @transform_11, window_bounds = array<i64: 2, 32, 64>}, {pipeline_mode = #tpu.pipeline_mode<synchronous>, transform_indices = @transform_12, window_bounds = array<i64: 2, 1, 64>}, {pipeline_mode = #tpu.pipeline_mode<synchronous>, transform_indices = @transform_13, window_bounds = array<i64: 2, 64, 32>}, {pipeline_mode = #tpu.pipeline_mode<synchronous>, transform_indices = @transform_14, window_bounds = array<i64: 2, 1, 32>}, {pipeline_mode = #tpu.pipeline_mode<synchronous>, transform_indices = @transform_15, window_bounds = array<i64: 1, 32>}, {pipeline_mode = #tpu.pipeline_mode<synchronous>, transform_indices = @transform_16, window_bounds = array<i64: 1, 32>}, {pipeline_mode = #tpu.pipeline_mode<synchronous>, transform_indices = @transform_17, window_bounds = array<i64: 32, 32>}, {pipeline_mode = #tpu.pipeline_mode<synchronous>, transform_indices = @transform_18, window_bounds = array<i64: 1, 32>}, {transform_indices = @transform_19, window_bounds = array<i64: 1, 1, 32>}, {transform_indices = @transform_20, window_bounds = array<i64: 1, 1, 32>}]} {
    %c0 = arith.constant 0 : index
    %c0_0 = arith.constant 0 : index
    %c0_1 = arith.constant 0 : index
    %0 = vector.load %arg1[%c0, %c0_0, %c0_1] : memref<1x5x192xf32, #tpu.memory_space<vmem>>, vector<1x5x192xf32>
    %1 = vector.shape_cast %0 : vector<1x5x192xf32> to vector<5x192xf32>
    %c0_2 = arith.constant 0 : index
    %c0_3 = arith.constant 0 : index
    %2 = vector.load %arg2[%c0_2, %c0_3] : memref<192x32xf32, #tpu.memory_space<vmem>>, vector<192x32xf32>
    %cst = arith.constant dense<0.000000e+00> : vector<5x32xf32>
    %3 = tpu.matmul %1, %2, %cst {dimension_numbers = #tpu.dot_dimension_numbers<[1], [0], [0], [1], [0, 0, 1, 1], [], []>} : vector<5x192xf32>, vector<192x32xf32>, vector<5x32xf32> -> vector<5x32xf32>
    %c0_4 = arith.constant 0 : index
    %c0_5 = arith.constant 0 : index
    %4 = vector.load %arg3[%c0_4, %c0_5] : memref<5x32xf32, #tpu.memory_space<vmem>>, vector<5x32xf32>
    %5 = arith.addf %3, %4 : vector<5x32xf32>
    %c0_6 = arith.constant 0 : index
    %c0_7 = arith.constant 0 : index
    %c0_8 = arith.constant 0 : index
    %6 = vector.load %arg4[%c0_6, %c0_7, %c0_8] : memref<2x1x32xf32, #tpu.memory_space<vmem>>, vector<1x1x32xf32>
    %7 = vector.shape_cast %6 : vector<1x1x32xf32> to vector<1x32xf32>
    %c0_9 = arith.constant 0 : index
    %c0_10 = arith.constant 0 : index
    %c0_11 = arith.constant 0 : index
    %8 = vector.load %arg5[%c0_9, %c0_10, %c0_11] : memref<2x1x32xf32, #tpu.memory_space<vmem>>, vector<1x1x32xf32>
    %9 = vector.shape_cast %8 : vector<1x1x32xf32> to vector<1x32xf32>
    %cst_12 = arith.constant dense<0.000000e+00> : vector<5xf32>
    %10 = vector.multi_reduction <add>, %5, %cst_12 [1] : vector<5x32xf32> to vector<5xf32>
    %11 = vector.shape_cast %10 : vector<5xf32> to vector<5x1xf32>
    %cst_13 = arith.constant 3.200000e+01 : f32
    %12 = vector.broadcast %cst_13 : f32 to vector<5x1xf32>
    %13 = arith.divf %11, %12 : vector<5x1xf32>
    %14 = vector.broadcast %13 : vector<5x1xf32> to vector<5x32xf32>
    %15 = arith.subf %5, %14 : vector<5x32xf32>
    %16 = arith.mulf %15, %15 : vector<5x32xf32>
    %cst_14 = arith.constant dense<0.000000e+00> : vector<5xf32>
    %17 = vector.multi_reduction <add>, %16, %cst_14 [1] : vector<5x32xf32> to vector<5xf32>
    %18 = vector.shape_cast %17 : vector<5xf32> to vector<5x1xf32>
    %cst_15 = arith.constant 3.200000e+01 : f32
    %19 = vector.broadcast %cst_15 : f32 to vector<5x1xf32>
    %20 = arith.divf %18, %19 : vector<5x1xf32>
    %21 = vector.broadcast %13 : vector<5x1xf32> to vector<5x32xf32>
    %22 = arith.subf %5, %21 : vector<5x32xf32>
    %cst_16 = arith.constant 9.99999996E-13 : f32
    %23 = vector.broadcast %cst_16 : f32 to vector<5x1xf32>
    %24 = arith.addf %20, %23 : vector<5x1xf32>
    %25 = math.rsqrt %24 : vector<5x1xf32>
    %26 = vector.broadcast %25 : vector<5x1xf32> to vector<5x32xf32>
    %27 = arith.mulf %22, %26 : vector<5x32xf32>
    %28 = vector.broadcast %7 : vector<1x32xf32> to vector<5x32xf32>
    %29 = arith.mulf %27, %28 : vector<5x32xf32>
    %30 = vector.broadcast %9 : vector<1x32xf32> to vector<5x32xf32>
    %31 = arith.addf %29, %30 : vector<5x32xf32>
    %c0_17 = arith.constant 0 : index
    %c0_18 = arith.constant 0 : index
    %c0_19 = arith.constant 0 : index
    %32 = vector.load %arg6[%c0_17, %c0_18, %c0_19] : memref<2x32x96xf32, #tpu.memory_space<vmem>>, vector<1x32x96xf32>
    %33 = vector.shape_cast %32 : vector<1x32x96xf32> to vector<32x96xf32>
    %cst_20 = arith.constant dense<0.000000e+00> : vector<5x96xf32>
    %34 = tpu.matmul %31, %33, %cst_20 {dimension_numbers = #tpu.dot_dimension_numbers<[1], [0], [0], [1], [0, 0, 1, 1], [], []>} : vector<5x32xf32>, vector<32x96xf32>, vector<5x96xf32> -> vector<5x96xf32>
    %c0_21 = arith.constant 0 : index
    %c0_22 = arith.constant 0 : index
    %c0_23 = arith.constant 0 : index
    %35 = vector.load %arg7[%c0_21, %c0_22, %c0_23] : memref<2x1x96xf32, #tpu.memory_space<vmem>>, vector<1x1x96xf32>
    %36 = vector.shape_cast %35 : vector<1x1x96xf32> to vector<1x96xf32>
    %37 = vector.broadcast %36 : vector<1x96xf32> to vector<5x96xf32>
    %38 = arith.addf %34, %37 : vector<5x96xf32>
    %c0_24 = arith.constant 0 : index
    %c0_25 = arith.constant 0 : index
    %c0_26 = arith.constant 0 : index
    %39 = vector.load %arg8[%c0_24, %c0_25, %c0_26] : memref<2x32x32xf32, #tpu.memory_space<vmem>>, vector<1x32x32xf32>
    %40 = vector.shape_cast %39 : vector<1x32x32xf32> to vector<32x32xf32>
    %cst_27 = arith.constant 0.000000e+00 : f32
    %41 = vector.broadcast %cst_27 : f32 to vector<5x32xf32>
    %42 = vector.extract_strided_slice %38 {offsets = [0, 0], sizes = [5, 8], strides = [1, 1]} : vector<5x96xf32> to vector<5x8xf32>
    %43 = vector.extract_strided_slice %38 {offsets = [0, 32], sizes = [5, 8], strides = [1, 1]} : vector<5x96xf32> to vector<5x8xf32>
    %44 = vector.extract_strided_slice %38 {offsets = [0, 64], sizes = [5, 8], strides = [1, 1]} : vector<5x96xf32> to vector<5x8xf32>
    %cst_28 = arith.constant dense<0.000000e+00> : vector<5x5xf32>
    %45 = tpu.matmul %42, %43, %cst_28 {dimension_numbers = #tpu.dot_dimension_numbers<[1], [1], [0], [0], [0, 0, 1, 0], [], []>} : vector<5x8xf32>, vector<5x8xf32>, vector<5x5xf32> -> vector<5x5xf32>
    %cst_29 = arith.constant 0.353553385 : f32
    %46 = vector.broadcast %cst_29 : f32 to vector<5x5xf32>
    %47 = arith.mulf %45, %46 : vector<5x5xf32>
    %cst_30 = arith.constant dense<0xFF800000> : vector<5xf32>
    %48 = vector.multi_reduction <maximumf>, %47, %cst_30 [1] : vector<5x5xf32> to vector<5xf32>
    %49 = vector.shape_cast %48 : vector<5xf32> to vector<5x1xf32>
    %50 = vector.broadcast %49 : vector<5x1xf32> to vector<5x5xf32>
    %51 = arith.subf %47, %50 : vector<5x5xf32>
    %52 = math.exp %51 : vector<5x5xf32>
    %cst_31 = arith.constant dense<0.000000e+00> : vector<5xf32>
    %53 = vector.multi_reduction <add>, %52, %cst_31 [1] : vector<5x5xf32> to vector<5xf32>
    %54 = vector.shape_cast %53 : vector<5xf32> to vector<5x1xf32>
    %55 = vector.broadcast %54 : vector<5x1xf32> to vector<5x5xf32>
    %56 = arith.divf %52, %55 : vector<5x5xf32>
    %cst_32 = arith.constant dense<0.000000e+00> : vector<5x8xf32>
    %57 = tpu.matmul %56, %44, %cst_32 {dimension_numbers = #tpu.dot_dimension_numbers<[1], [0], [0], [1], [0, 0, 1, 1], [], []>} : vector<5x5xf32>, vector<5x8xf32>, vector<5x8xf32> -> vector<5x8xf32>
    %58 = vector.extract_strided_slice %40 {offsets = [0, 0], sizes = [8, 32], strides = [1, 1]} : vector<32x32xf32> to vector<8x32xf32>
    %cst_33 = arith.constant dense<0.000000e+00> : vector<5x32xf32>
    %59 = tpu.matmul %57, %58, %cst_33 {dimension_numbers = #tpu.dot_dimension_numbers<[1], [0], [0], [1], [0, 0, 1, 1], [], []>} : vector<5x8xf32>, vector<8x32xf32>, vector<5x32xf32> -> vector<5x32xf32>
    %60 = arith.addf %41, %59 : vector<5x32xf32>
    %61 = vector.extract_strided_slice %38 {offsets = [0, 8], sizes = [5, 8], strides = [1, 1]} : vector<5x96xf32> to vector<5x8xf32>
    %62 = vector.extract_strided_slice %38 {offsets = [0, 40], sizes = [5, 8], strides = [1, 1]} : vector<5x96xf32> to vector<5x8xf32>
    %63 = vector.extract_strided_slice %38 {offsets = [0, 72], sizes = [5, 8], strides = [1, 1]} : vector<5x96xf32> to vector<5x8xf32>
    %cst_34 = arith.constant dense<0.000000e+00> : vector<5x5xf32>
    %64 = tpu.matmul %61, %62, %cst_34 {dimension_numbers = #tpu.dot_dimension_numbers<[1], [1], [0], [0], [0, 0, 1, 0], [], []>} : vector<5x8xf32>, vector<5x8xf32>, vector<5x5xf32> -> vector<5x5xf32>
    %cst_35 = arith.constant 0.353553385 : f32
    %65 = vector.broadcast %cst_35 : f32 to vector<5x5xf32>
    %66 = arith.mulf %64, %65 : vector<5x5xf32>
    %cst_36 = arith.constant dense<0xFF800000> : vector<5xf32>
    %67 = vector.multi_reduction <maximumf>, %66, %cst_36 [1] : vector<5x5xf32> to vector<5xf32>
    %68 = vector.shape_cast %67 : vector<5xf32> to vector<5x1xf32>
    %69 = vector.broadcast %68 : vector<5x1xf32> to vector<5x5xf32>
    %70 = arith.subf %66, %69 : vector<5x5xf32>
    %71 = math.exp %70 : vector<5x5xf32>
    %cst_37 = arith.constant dense<0.000000e+00> : vector<5xf32>
    %72 = vector.multi_reduction <add>, %71, %cst_37 [1] : vector<5x5xf32> to vector<5xf32>
    %73 = vector.shape_cast %72 : vector<5xf32> to vector<5x1xf32>
    %74 = vector.broadcast %73 : vector<5x1xf32> to vector<5x5xf32>
    %75 = arith.divf %71, %74 : vector<5x5xf32>
    %cst_38 = arith.constant dense<0.000000e+00> : vector<5x8xf32>
    %76 = tpu.matmul %75, %63, %cst_38 {dimension_numbers = #tpu.dot_dimension_numbers<[1], [0], [0], [1], [0, 0, 1, 1], [], []>} : vector<5x5xf32>, vector<5x8xf32>, vector<5x8xf32> -> vector<5x8xf32>
    %77 = vector.extract_strided_slice %40 {offsets = [8, 0], sizes = [8, 32], strides = [1, 1]} : vector<32x32xf32> to vector<8x32xf32>
    %cst_39 = arith.constant dense<0.000000e+00> : vector<5x32xf32>
    %78 = tpu.matmul %76, %77, %cst_39 {dimension_numbers = #tpu.dot_dimension_numbers<[1], [0], [0], [1], [0, 0, 1, 1], [], []>} : vector<5x8xf32>, vector<8x32xf32>, vector<5x32xf32> -> vector<5x32xf32>
    %79 = arith.addf %60, %78 : vector<5x32xf32>
    %80 = vector.extract_strided_slice %38 {offsets = [0, 16], sizes = [5, 8], strides = [1, 1]} : vector<5x96xf32> to vector<5x8xf32>
    %81 = vector.extract_strided_slice %38 {offsets = [0, 48], sizes = [5, 8], strides = [1, 1]} : vector<5x96xf32> to vector<5x8xf32>
    %82 = vector.extract_strided_slice %38 {offsets = [0, 80], sizes = [5, 8], strides = [1, 1]} : vector<5x96xf32> to vector<5x8xf32>
    %cst_40 = arith.constant dense<0.000000e+00> : vector<5x5xf32>
    %83 = tpu.matmul %80, %81, %cst_40 {dimension_numbers = #tpu.dot_dimension_numbers<[1], [1], [0], [0], [0, 0, 1, 0], [], []>} : vector<5x8xf32>, vector<5x8xf32>, vector<5x5xf32> -> vector<5x5xf32>
    %cst_41 = arith.constant 0.353553385 : f32
    %84 = vector.broadcast %cst_41 : f32 to vector<5x5xf32>
    %85 = arith.mulf %83, %84 : vector<5x5xf32>
    %cst_42 = arith.constant dense<0xFF800000> : vector<5xf32>
    %86 = vector.multi_reduction <maximumf>, %85, %cst_42 [1] : vector<5x5xf32> to vector<5xf32>
    %87 = vector.shape_cast %86 : vector<5xf32> to vector<5x1xf32>
    %88 = vector.broadcast %87 : vector<5x1xf32> to vector<5x5xf32>
    %89 = arith.subf %85, %88 : vector<5x5xf32>
    %90 = math.exp %89 : vector<5x5xf32>
    %cst_43 = arith.constant dense<0.000000e+00> : vector<5xf32>
    %91 = vector.multi_reduction <add>, %90, %cst_43 [1] : vector<5x5xf32> to vector<5xf32>
    %92 = vector.shape_cast %91 : vector<5xf32> to vector<5x1xf32>
    %93 = vector.broadcast %92 : vector<5x1xf32> to vector<5x5xf32>
    %94 = arith.divf %90, %93 : vector<5x5xf32>
    %cst_44 = arith.constant dense<0.000000e+00> : vector<5x8xf32>
    %95 = tpu.matmul %94, %82, %cst_44 {dimension_numbers = #tpu.dot_dimension_numbers<[1], [0], [0], [1], [0, 0, 1, 1], [], []>} : vector<5x5xf32>, vector<5x8xf32>, vector<5x8xf32> -> vector<5x8xf32>
    %96 = vector.extract_strided_slice %40 {offsets = [16, 0], sizes = [8, 32], strides = [1, 1]} : vector<32x32xf32> to vector<8x32xf32>
    %cst_45 = arith.constant dense<0.000000e+00> : vector<5x32xf32>
    %97 = tpu.matmul %95, %96, %cst_45 {dimension_numbers = #tpu.dot_dimension_numbers<[1], [0], [0], [1], [0, 0, 1, 1], [], []>} : vector<5x8xf32>, vector<8x32xf32>, vector<5x32xf32> -> vector<5x32xf32>
    %98 = arith.addf %79, %97 : vector<5x32xf32>
    %99 = vector.extract_strided_slice %38 {offsets = [0, 24], sizes = [5, 8], strides = [1, 1]} : vector<5x96xf32> to vector<5x8xf32>
    %100 = vector.extract_strided_slice %38 {offsets = [0, 56], sizes = [5, 8], strides = [1, 1]} : vector<5x96xf32> to vector<5x8xf32>
    %101 = vector.extract_strided_slice %38 {offsets = [0, 88], sizes = [5, 8], strides = [1, 1]} : vector<5x96xf32> to vector<5x8xf32>
    %cst_46 = arith.constant dense<0.000000e+00> : vector<5x5xf32>
    %102 = tpu.matmul %99, %100, %cst_46 {dimension_numbers = #tpu.dot_dimension_numbers<[1], [1], [0], [0], [0, 0, 1, 0], [], []>} : vector<5x8xf32>, vector<5x8xf32>, vector<5x5xf32> -> vector<5x5xf32>
    %cst_47 = arith.constant 0.353553385 : f32
    %103 = vector.broadcast %cst_47 : f32 to vector<5x5xf32>
    %104 = arith.mulf %102, %103 : vector<5x5xf32>
    %cst_48 = arith.constant dense<0xFF800000> : vector<5xf32>
    %105 = vector.multi_reduction <maximumf>, %104, %cst_48 [1] : vector<5x5xf32> to vector<5xf32>
    %106 = vector.shape_cast %105 : vector<5xf32> to vector<5x1xf32>
    %107 = vector.broadcast %106 : vector<5x1xf32> to vector<5x5xf32>
    %108 = arith.subf %104, %107 : vector<5x5xf32>
    %109 = math.exp %108 : vector<5x5xf32>
    %cst_49 = arith.constant dense<0.000000e+00> : vector<5xf32>
    %110 = vector.multi_reduction <add>, %109, %cst_49 [1] : vector<5x5xf32> to vector<5xf32>
    %111 = vector.shape_cast %110 : vector<5xf32> to vector<5x1xf32>
    %112 = vector.broadcast %111 : vector<5x1xf32> to vector<5x5xf32>
    %113 = arith.divf %109, %112 : vector<5x5xf32>
    %cst_50 = arith.constant dense<0.000000e+00> : vector<5x8xf32>
    %114 = tpu.matmul %113, %101, %cst_50 {dimension_numbers = #tpu.dot_dimension_numbers<[1], [0], [0], [1], [0, 0, 1, 1], [], []>} : vector<5x5xf32>, vector<5x8xf32>, vector<5x8xf32> -> vector<5x8xf32>
    %115 = vector.extract_strided_slice %40 {offsets = [24, 0], sizes = [8, 32], strides = [1, 1]} : vector<32x32xf32> to vector<8x32xf32>
    %cst_51 = arith.constant dense<0.000000e+00> : vector<5x32xf32>
    %116 = tpu.matmul %114, %115, %cst_51 {dimension_numbers = #tpu.dot_dimension_numbers<[1], [0], [0], [1], [0, 0, 1, 1], [], []>} : vector<5x8xf32>, vector<8x32xf32>, vector<5x32xf32> -> vector<5x32xf32>
    %117 = arith.addf %98, %116 : vector<5x32xf32>
    %118 = arith.addf %5, %117 : vector<5x32xf32>
    %c0_52 = arith.constant 0 : index
    %c0_53 = arith.constant 0 : index
    %c0_54 = arith.constant 0 : index
    %119 = vector.load %arg9[%c0_52, %c0_53, %c0_54] : memref<2x1x32xf32, #tpu.memory_space<vmem>>, vector<1x1x32xf32>
    %120 = vector.shape_cast %119 : vector<1x1x32xf32> to vector<1x32xf32>
    %121 = vector.broadcast %120 : vector<1x32xf32> to vector<5x32xf32>
    %122 = arith.addf %118, %121 : vector<5x32xf32>
    %c0_55 = arith.constant 0 : index
    %c0_56 = arith.constant 0 : index
    %c0_57 = arith.constant 0 : index
    %123 = vector.load %arg10[%c0_55, %c0_56, %c0_57] : memref<2x1x32xf32, #tpu.memory_space<vmem>>, vector<1x1x32xf32>
    %124 = vector.shape_cast %123 : vector<1x1x32xf32> to vector<1x32xf32>
    %c0_58 = arith.constant 0 : index
    %c0_59 = arith.constant 0 : index
    %c0_60 = arith.constant 0 : index
    %125 = vector.load %arg11[%c0_58, %c0_59, %c0_60] : memref<2x1x32xf32, #tpu.memory_space<vmem>>, vector<1x1x32xf32>
    %126 = vector.shape_cast %125 : vector<1x1x32xf32> to vector<1x32xf32>
    %cst_61 = arith.constant dense<0.000000e+00> : vector<5xf32>
    %127 = vector.multi_reduction <add>, %122, %cst_61 [1] : vector<5x32xf32> to vector<5xf32>
    %128 = vector.shape_cast %127 : vector<5xf32> to vector<5x1xf32>
    %cst_62 = arith.constant 3.200000e+01 : f32
    %129 = vector.broadcast %cst_62 : f32 to vector<5x1xf32>
    %130 = arith.divf %128, %129 : vector<5x1xf32>
    %131 = vector.broadcast %130 : vector<5x1xf32> to vector<5x32xf32>
    %132 = arith.subf %122, %131 : vector<5x32xf32>
    %133 = arith.mulf %132, %132 : vector<5x32xf32>
    %cst_63 = arith.constant dense<0.000000e+00> : vector<5xf32>
    %134 = vector.multi_reduction <add>, %133, %cst_63 [1] : vector<5x32xf32> to vector<5xf32>
    %135 = vector.shape_cast %134 : vector<5xf32> to vector<5x1xf32>
    %cst_64 = arith.constant 3.200000e+01 : f32
    %136 = vector.broadcast %cst_64 : f32 to vector<5x1xf32>
    %137 = arith.divf %135, %136 : vector<5x1xf32>
    %138 = vector.broadcast %130 : vector<5x1xf32> to vector<5x32xf32>
    %139 = arith.subf %122, %138 : vector<5x32xf32>
    %cst_65 = arith.constant 9.99999996E-13 : f32
    %140 = vector.broadcast %cst_65 : f32 to vector<5x1xf32>
    %141 = arith.addf %137, %140 : vector<5x1xf32>
    %142 = math.rsqrt %141 : vector<5x1xf32>
    %143 = vector.broadcast %142 : vector<5x1xf32> to vector<5x32xf32>
    %144 = arith.mulf %139, %143 : vector<5x32xf32>
    %145 = vector.broadcast %124 : vector<1x32xf32> to vector<5x32xf32>
    %146 = arith.mulf %144, %145 : vector<5x32xf32>
    %147 = vector.broadcast %126 : vector<1x32xf32> to vector<5x32xf32>
    %148 = arith.addf %146, %147 : vector<5x32xf32>
    %c0_66 = arith.constant 0 : index
    %c0_67 = arith.constant 0 : index
    %c0_68 = arith.constant 0 : index
    %149 = vector.load %arg12[%c0_66, %c0_67, %c0_68] : memref<2x32x64xf32, #tpu.memory_space<vmem>>, vector<1x32x64xf32>
    %150 = vector.shape_cast %149 : vector<1x32x64xf32> to vector<32x64xf32>
    %cst_69 = arith.constant dense<0.000000e+00> : vector<5x64xf32>
    %151 = tpu.matmul %148, %150, %cst_69 {dimension_numbers = #tpu.dot_dimension_numbers<[1], [0], [0], [1], [0, 0, 1, 1], [], []>} : vector<5x32xf32>, vector<32x64xf32>, vector<5x64xf32> -> vector<5x64xf32>
    %c0_70 = arith.constant 0 : index
    %c0_71 = arith.constant 0 : index
    %c0_72 = arith.constant 0 : index
    %152 = vector.load %arg13[%c0_70, %c0_71, %c0_72] : memref<2x1x64xf32, #tpu.memory_space<vmem>>, vector<1x1x64xf32>
    %153 = vector.shape_cast %152 : vector<1x1x64xf32> to vector<1x64xf32>
    %154 = vector.broadcast %153 : vector<1x64xf32> to vector<5x64xf32>
    %155 = arith.addf %151, %154 : vector<5x64xf32>
    %cst_73 = arith.constant 5.000000e-01 : f32
    %156 = vector.broadcast %cst_73 : f32 to vector<5x64xf32>
    %157 = arith.mulf %156, %155 : vector<5x64xf32>
    %cst_74 = arith.constant 0.707106769 : f32
    %158 = vector.broadcast %cst_74 : f32 to vector<5x64xf32>
    %159 = arith.mulf %155, %158 : vector<5x64xf32>
    %cst_75 = arith.constant 0.000000e+00 : f32
    %160 = vector.broadcast %cst_75 : f32 to vector<5x64xf32>
    %161 = arith.cmpf oge, %159, %160 : vector<5x64xf32>
    %cst_76 = arith.constant 1.000000e+00 : f32
    %cst_77 = arith.constant -1.000000e+00 : f32
    %162 = vector.broadcast %cst_76 : f32 to vector<5x64xf32>
    %163 = vector.broadcast %cst_77 : f32 to vector<5x64xf32>
    %164 = arith.select %161, %162, %163 : vector<5x64xi1>, vector<5x64xf32>
    %165 = math.absf %159 : vector<5x64xf32>
    %cst_78 = arith.constant 0.327591091 : f32
    %166 = vector.broadcast %cst_78 : f32 to vector<5x64xf32>
    %167 = arith.mulf %166, %165 : vector<5x64xf32>
    %cst_79 = arith.constant 1.000000e+00 : f32
    %168 = vector.broadcast %cst_79 : f32 to vector<5x64xf32>
    %169 = arith.addf %168, %167 : vector<5x64xf32>
    %cst_80 = arith.constant 1.000000e+00 : f32
    %170 = vector.broadcast %cst_80 : f32 to vector<5x64xf32>
    %171 = arith.divf %170, %169 : vector<5x64xf32>
    %cst_81 = arith.constant 1.06140542 : f32
    %172 = vector.broadcast %cst_81 : f32 to vector<5x64xf32>
    %173 = arith.mulf %172, %171 : vector<5x64xf32>
    %cst_82 = arith.constant -1.45315206 : f32
    %174 = vector.broadcast %cst_82 : f32 to vector<5x64xf32>
    %175 = arith.addf %173, %174 : vector<5x64xf32>
    %176 = arith.mulf %175, %171 : vector<5x64xf32>
    %cst_83 = arith.constant 1.42141378 : f32
    %177 = vector.broadcast %cst_83 : f32 to vector<5x64xf32>
    %178 = arith.addf %176, %177 : vector<5x64xf32>
    %179 = arith.mulf %178, %171 : vector<5x64xf32>
    %cst_84 = arith.constant -0.284496725 : f32
    %180 = vector.broadcast %cst_84 : f32 to vector<5x64xf32>
    %181 = arith.addf %179, %180 : vector<5x64xf32>
    %182 = arith.mulf %181, %171 : vector<5x64xf32>
    %cst_85 = arith.constant 0.254829586 : f32
    %183 = vector.broadcast %cst_85 : f32 to vector<5x64xf32>
    %184 = arith.addf %182, %183 : vector<5x64xf32>
    %185 = arith.mulf %184, %171 : vector<5x64xf32>
    %cst_86 = arith.constant 0.000000e+00 : f32
    %186 = vector.broadcast %cst_86 : f32 to vector<5x64xf32>
    %187 = arith.subf %186, %165 : vector<5x64xf32>
    %188 = arith.mulf %187, %165 : vector<5x64xf32>
    %189 = math.exp %188 : vector<5x64xf32>
    %190 = arith.mulf %185, %189 : vector<5x64xf32>
    %cst_87 = arith.constant 1.000000e+00 : f32
    %191 = vector.broadcast %cst_87 : f32 to vector<5x64xf32>
    %192 = arith.subf %191, %190 : vector<5x64xf32>
    %193 = arith.mulf %164, %192 : vector<5x64xf32>
    %cst_88 = arith.constant 1.000000e+00 : f32
    %194 = vector.broadcast %cst_88 : f32 to vector<5x64xf32>
    %195 = arith.addf %194, %193 : vector<5x64xf32>
    %196 = arith.mulf %157, %195 : vector<5x64xf32>
    %c0_89 = arith.constant 0 : index
    %c0_90 = arith.constant 0 : index
    %c0_91 = arith.constant 0 : index
    %197 = vector.load %arg14[%c0_89, %c0_90, %c0_91] : memref<2x64x32xf32, #tpu.memory_space<vmem>>, vector<1x64x32xf32>
    %198 = vector.shape_cast %197 : vector<1x64x32xf32> to vector<64x32xf32>
    %cst_92 = arith.constant dense<0.000000e+00> : vector<5x32xf32>
    %199 = tpu.matmul %196, %198, %cst_92 {dimension_numbers = #tpu.dot_dimension_numbers<[1], [0], [0], [1], [0, 0, 1, 1], [], []>} : vector<5x64xf32>, vector<64x32xf32>, vector<5x32xf32> -> vector<5x32xf32>
    %c0_93 = arith.constant 0 : index
    %c0_94 = arith.constant 0 : index
    %c0_95 = arith.constant 0 : index
    %200 = vector.load %arg15[%c0_93, %c0_94, %c0_95] : memref<2x1x32xf32, #tpu.memory_space<vmem>>, vector<1x1x32xf32>
    %201 = vector.shape_cast %200 : vector<1x1x32xf32> to vector<1x32xf32>
    %202 = vector.broadcast %201 : vector<1x32xf32> to vector<5x32xf32>
    %203 = arith.addf %199, %202 : vector<5x32xf32>
    %204 = arith.addf %122, %203 : vector<5x32xf32>
    %c1 = arith.constant 1 : index
    %c0_96 = arith.constant 0 : index
    %c0_97 = arith.constant 0 : index
    %205 = vector.load %arg4[%c1, %c0_96, %c0_97] : memref<2x1x32xf32, #tpu.memory_space<vmem>>, vector<1x1x32xf32>
    %206 = vector.shape_cast %205 : vector<1x1x32xf32> to vector<1x32xf32>
    %c1_98 = arith.constant 1 : index
    %c0_99 = arith.constant 0 : index
    %c0_100 = arith.constant 0 : index
    %207 = vector.load %arg5[%c1_98, %c0_99, %c0_100] : memref<2x1x32xf32, #tpu.memory_space<vmem>>, vector<1x1x32xf32>
    %208 = vector.shape_cast %207 : vector<1x1x32xf32> to vector<1x32xf32>
    %cst_101 = arith.constant dense<0.000000e+00> : vector<5xf32>
    %209 = vector.multi_reduction <add>, %204, %cst_101 [1] : vector<5x32xf32> to vector<5xf32>
    %210 = vector.shape_cast %209 : vector<5xf32> to vector<5x1xf32>
    %cst_102 = arith.constant 3.200000e+01 : f32
    %211 = vector.broadcast %cst_102 : f32 to vector<5x1xf32>
    %212 = arith.divf %210, %211 : vector<5x1xf32>
    %213 = vector.broadcast %212 : vector<5x1xf32> to vector<5x32xf32>
    %214 = arith.subf %204, %213 : vector<5x32xf32>
    %215 = arith.mulf %214, %214 : vector<5x32xf32>
    %cst_103 = arith.constant dense<0.000000e+00> : vector<5xf32>
    %216 = vector.multi_reduction <add>, %215, %cst_103 [1] : vector<5x32xf32> to vector<5xf32>
    %217 = vector.shape_cast %216 : vector<5xf32> to vector<5x1xf32>
    %cst_104 = arith.constant 3.200000e+01 : f32
    %218 = vector.broadcast %cst_104 : f32 to vector<5x1xf32>
    %219 = arith.divf %217, %218 : vector<5x1xf32>
    %220 = vector.broadcast %212 : vector<5x1xf32> to vector<5x32xf32>
    %221 = arith.subf %204, %220 : vector<5x32xf32>
    %cst_105 = arith.constant 9.99999996E-13 : f32
    %222 = vector.broadcast %cst_105 : f32 to vector<5x1xf32>
    %223 = arith.addf %219, %222 : vector<5x1xf32>
    %224 = math.rsqrt %223 : vector<5x1xf32>
    %225 = vector.broadcast %224 : vector<5x1xf32> to vector<5x32xf32>
    %226 = arith.mulf %221, %225 : vector<5x32xf32>
    %227 = vector.broadcast %206 : vector<1x32xf32> to vector<5x32xf32>
    %228 = arith.mulf %226, %227 : vector<5x32xf32>
    %229 = vector.broadcast %208 : vector<1x32xf32> to vector<5x32xf32>
    %230 = arith.addf %228, %229 : vector<5x32xf32>
    %c1_106 = arith.constant 1 : index
    %c0_107 = arith.constant 0 : index
    %c0_108 = arith.constant 0 : index
    %231 = vector.load %arg6[%c1_106, %c0_107, %c0_108] : memref<2x32x96xf32, #tpu.memory_space<vmem>>, vector<1x32x96xf32>
    %232 = vector.shape_cast %231 : vector<1x32x96xf32> to vector<32x96xf32>
    %cst_109 = arith.constant dense<0.000000e+00> : vector<5x96xf32>
    %233 = tpu.matmul %230, %232, %cst_109 {dimension_numbers = #tpu.dot_dimension_numbers<[1], [0], [0], [1], [0, 0, 1, 1], [], []>} : vector<5x32xf32>, vector<32x96xf32>, vector<5x96xf32> -> vector<5x96xf32>
    %c1_110 = arith.constant 1 : index
    %c0_111 = arith.constant 0 : index
    %c0_112 = arith.constant 0 : index
    %234 = vector.load %arg7[%c1_110, %c0_111, %c0_112] : memref<2x1x96xf32, #tpu.memory_space<vmem>>, vector<1x1x96xf32>
    %235 = vector.shape_cast %234 : vector<1x1x96xf32> to vector<1x96xf32>
    %236 = vector.broadcast %235 : vector<1x96xf32> to vector<5x96xf32>
    %237 = arith.addf %233, %236 : vector<5x96xf32>
    %c1_113 = arith.constant 1 : index
    %c0_114 = arith.constant 0 : index
    %c0_115 = arith.constant 0 : index
    %238 = vector.load %arg8[%c1_113, %c0_114, %c0_115] : memref<2x32x32xf32, #tpu.memory_space<vmem>>, vector<1x32x32xf32>
    %239 = vector.shape_cast %238 : vector<1x32x32xf32> to vector<32x32xf32>
    %cst_116 = arith.constant 0.000000e+00 : f32
    %240 = vector.broadcast %cst_116 : f32 to vector<5x32xf32>
    %241 = vector.extract_strided_slice %237 {offsets = [0, 0], sizes = [5, 8], strides = [1, 1]} : vector<5x96xf32> to vector<5x8xf32>
    %242 = vector.extract_strided_slice %237 {offsets = [0, 32], sizes = [5, 8], strides = [1, 1]} : vector<5x96xf32> to vector<5x8xf32>
    %243 = vector.extract_strided_slice %237 {offsets = [0, 64], sizes = [5, 8], strides = [1, 1]} : vector<5x96xf32> to vector<5x8xf32>
    %cst_117 = arith.constant dense<0.000000e+00> : vector<5x5xf32>
    %244 = tpu.matmul %241, %242, %cst_117 {dimension_numbers = #tpu.dot_dimension_numbers<[1], [1], [0], [0], [0, 0, 1, 0], [], []>} : vector<5x8xf32>, vector<5x8xf32>, vector<5x5xf32> -> vector<5x5xf32>
    %cst_118 = arith.constant 0.353553385 : f32
    %245 = vector.broadcast %cst_118 : f32 to vector<5x5xf32>
    %246 = arith.mulf %244, %245 : vector<5x5xf32>
    %cst_119 = arith.constant dense<0xFF800000> : vector<5xf32>
    %247 = vector.multi_reduction <maximumf>, %246, %cst_119 [1] : vector<5x5xf32> to vector<5xf32>
    %248 = vector.shape_cast %247 : vector<5xf32> to vector<5x1xf32>
    %249 = vector.broadcast %248 : vector<5x1xf32> to vector<5x5xf32>
    %250 = arith.subf %246, %249 : vector<5x5xf32>
    %251 = math.exp %250 : vector<5x5xf32>
    %cst_120 = arith.constant dense<0.000000e+00> : vector<5xf32>
    %252 = vector.multi_reduction <add>, %251, %cst_120 [1] : vector<5x5xf32> to vector<5xf32>
    %253 = vector.shape_cast %252 : vector<5xf32> to vector<5x1xf32>
    %254 = vector.broadcast %253 : vector<5x1xf32> to vector<5x5xf32>
    %255 = arith.divf %251, %254 : vector<5x5xf32>
    %cst_121 = arith.constant dense<0.000000e+00> : vector<5x8xf32>
    %256 = tpu.matmul %255, %243, %cst_121 {dimension_numbers = #tpu.dot_dimension_numbers<[1], [0], [0], [1], [0, 0, 1, 1], [], []>} : vector<5x5xf32>, vector<5x8xf32>, vector<5x8xf32> -> vector<5x8xf32>
    %257 = vector.extract_strided_slice %239 {offsets = [0, 0], sizes = [8, 32], strides = [1, 1]} : vector<32x32xf32> to vector<8x32xf32>
    %cst_122 = arith.constant dense<0.000000e+00> : vector<5x32xf32>
    %258 = tpu.matmul %256, %257, %cst_122 {dimension_numbers = #tpu.dot_dimension_numbers<[1], [0], [0], [1], [0, 0, 1, 1], [], []>} : vector<5x8xf32>, vector<8x32xf32>, vector<5x32xf32> -> vector<5x32xf32>
    %259 = arith.addf %240, %258 : vector<5x32xf32>
    %260 = vector.extract_strided_slice %237 {offsets = [0, 8], sizes = [5, 8], strides = [1, 1]} : vector<5x96xf32> to vector<5x8xf32>
    %261 = vector.extract_strided_slice %237 {offsets = [0, 40], sizes = [5, 8], strides = [1, 1]} : vector<5x96xf32> to vector<5x8xf32>
    %262 = vector.extract_strided_slice %237 {offsets = [0, 72], sizes = [5, 8], strides = [1, 1]} : vector<5x96xf32> to vector<5x8xf32>
    %cst_123 = arith.constant dense<0.000000e+00> : vector<5x5xf32>
    %263 = tpu.matmul %260, %261, %cst_123 {dimension_numbers = #tpu.dot_dimension_numbers<[1], [1], [0], [0], [0, 0, 1, 0], [], []>} : vector<5x8xf32>, vector<5x8xf32>, vector<5x5xf32> -> vector<5x5xf32>
    %cst_124 = arith.constant 0.353553385 : f32
    %264 = vector.broadcast %cst_124 : f32 to vector<5x5xf32>
    %265 = arith.mulf %263, %264 : vector<5x5xf32>
    %cst_125 = arith.constant dense<0xFF800000> : vector<5xf32>
    %266 = vector.multi_reduction <maximumf>, %265, %cst_125 [1] : vector<5x5xf32> to vector<5xf32>
    %267 = vector.shape_cast %266 : vector<5xf32> to vector<5x1xf32>
    %268 = vector.broadcast %267 : vector<5x1xf32> to vector<5x5xf32>
    %269 = arith.subf %265, %268 : vector<5x5xf32>
    %270 = math.exp %269 : vector<5x5xf32>
    %cst_126 = arith.constant dense<0.000000e+00> : vector<5xf32>
    %271 = vector.multi_reduction <add>, %270, %cst_126 [1] : vector<5x5xf32> to vector<5xf32>
    %272 = vector.shape_cast %271 : vector<5xf32> to vector<5x1xf32>
    %273 = vector.broadcast %272 : vector<5x1xf32> to vector<5x5xf32>
    %274 = arith.divf %270, %273 : vector<5x5xf32>
    %cst_127 = arith.constant dense<0.000000e+00> : vector<5x8xf32>
    %275 = tpu.matmul %274, %262, %cst_127 {dimension_numbers = #tpu.dot_dimension_numbers<[1], [0], [0], [1], [0, 0, 1, 1], [], []>} : vector<5x5xf32>, vector<5x8xf32>, vector<5x8xf32> -> vector<5x8xf32>
    %276 = vector.extract_strided_slice %239 {offsets = [8, 0], sizes = [8, 32], strides = [1, 1]} : vector<32x32xf32> to vector<8x32xf32>
    %cst_128 = arith.constant dense<0.000000e+00> : vector<5x32xf32>
    %277 = tpu.matmul %275, %276, %cst_128 {dimension_numbers = #tpu.dot_dimension_numbers<[1], [0], [0], [1], [0, 0, 1, 1], [], []>} : vector<5x8xf32>, vector<8x32xf32>, vector<5x32xf32> -> vector<5x32xf32>
    %278 = arith.addf %259, %277 : vector<5x32xf32>
    %279 = vector.extract_strided_slice %237 {offsets = [0, 16], sizes = [5, 8], strides = [1, 1]} : vector<5x96xf32> to vector<5x8xf32>
    %280 = vector.extract_strided_slice %237 {offsets = [0, 48], sizes = [5, 8], strides = [1, 1]} : vector<5x96xf32> to vector<5x8xf32>
    %281 = vector.extract_strided_slice %237 {offsets = [0, 80], sizes = [5, 8], strides = [1, 1]} : vector<5x96xf32> to vector<5x8xf32>
    %cst_129 = arith.constant dense<0.000000e+00> : vector<5x5xf32>
    %282 = tpu.matmul %279, %280, %cst_129 {dimension_numbers = #tpu.dot_dimension_numbers<[1], [1], [0], [0], [0, 0, 1, 0], [], []>} : vector<5x8xf32>, vector<5x8xf32>, vector<5x5xf32> -> vector<5x5xf32>
    %cst_130 = arith.constant 0.353553385 : f32
    %283 = vector.broadcast %cst_130 : f32 to vector<5x5xf32>
    %284 = arith.mulf %282, %283 : vector<5x5xf32>
    %cst_131 = arith.constant dense<0xFF800000> : vector<5xf32>
    %285 = vector.multi_reduction <maximumf>, %284, %cst_131 [1] : vector<5x5xf32> to vector<5xf32>
    %286 = vector.shape_cast %285 : vector<5xf32> to vector<5x1xf32>
    %287 = vector.broadcast %286 : vector<5x1xf32> to vector<5x5xf32>
    %288 = arith.subf %284, %287 : vector<5x5xf32>
    %289 = math.exp %288 : vector<5x5xf32>
    %cst_132 = arith.constant dense<0.000000e+00> : vector<5xf32>
    %290 = vector.multi_reduction <add>, %289, %cst_132 [1] : vector<5x5xf32> to vector<5xf32>
    %291 = vector.shape_cast %290 : vector<5xf32> to vector<5x1xf32>
    %292 = vector.broadcast %291 : vector<5x1xf32> to vector<5x5xf32>
    %293 = arith.divf %289, %292 : vector<5x5xf32>
    %cst_133 = arith.constant dense<0.000000e+00> : vector<5x8xf32>
    %294 = tpu.matmul %293, %281, %cst_133 {dimension_numbers = #tpu.dot_dimension_numbers<[1], [0], [0], [1], [0, 0, 1, 1], [], []>} : vector<5x5xf32>, vector<5x8xf32>, vector<5x8xf32> -> vector<5x8xf32>
    %295 = vector.extract_strided_slice %239 {offsets = [16, 0], sizes = [8, 32], strides = [1, 1]} : vector<32x32xf32> to vector<8x32xf32>
    %cst_134 = arith.constant dense<0.000000e+00> : vector<5x32xf32>
    %296 = tpu.matmul %294, %295, %cst_134 {dimension_numbers = #tpu.dot_dimension_numbers<[1], [0], [0], [1], [0, 0, 1, 1], [], []>} : vector<5x8xf32>, vector<8x32xf32>, vector<5x32xf32> -> vector<5x32xf32>
    %297 = arith.addf %278, %296 : vector<5x32xf32>
    %298 = vector.extract_strided_slice %237 {offsets = [0, 24], sizes = [5, 8], strides = [1, 1]} : vector<5x96xf32> to vector<5x8xf32>
    %299 = vector.extract_strided_slice %237 {offsets = [0, 56], sizes = [5, 8], strides = [1, 1]} : vector<5x96xf32> to vector<5x8xf32>
    %300 = vector.extract_strided_slice %237 {offsets = [0, 88], sizes = [5, 8], strides = [1, 1]} : vector<5x96xf32> to vector<5x8xf32>
    %cst_135 = arith.constant dense<0.000000e+00> : vector<5x5xf32>
    %301 = tpu.matmul %298, %299, %cst_135 {dimension_numbers = #tpu.dot_dimension_numbers<[1], [1], [0], [0], [0, 0, 1, 0], [], []>} : vector<5x8xf32>, vector<5x8xf32>, vector<5x5xf32> -> vector<5x5xf32>
    %cst_136 = arith.constant 0.353553385 : f32
    %302 = vector.broadcast %cst_136 : f32 to vector<5x5xf32>
    %303 = arith.mulf %301, %302 : vector<5x5xf32>
    %cst_137 = arith.constant dense<0xFF800000> : vector<5xf32>
    %304 = vector.multi_reduction <maximumf>, %303, %cst_137 [1] : vector<5x5xf32> to vector<5xf32>
    %305 = vector.shape_cast %304 : vector<5xf32> to vector<5x1xf32>
    %306 = vector.broadcast %305 : vector<5x1xf32> to vector<5x5xf32>
    %307 = arith.subf %303, %306 : vector<5x5xf32>
    %308 = math.exp %307 : vector<5x5xf32>
    %cst_138 = arith.constant dense<0.000000e+00> : vector<5xf32>
    %309 = vector.multi_reduction <add>, %308, %cst_138 [1] : vector<5x5xf32> to vector<5xf32>
    %310 = vector.shape_cast %309 : vector<5xf32> to vector<5x1xf32>
    %311 = vector.broadcast %310 : vector<5x1xf32> to vector<5x5xf32>
    %312 = arith.divf %308, %311 : vector<5x5xf32>
    %cst_139 = arith.constant dense<0.000000e+00> : vector<5x8xf32>
    %313 = tpu.matmul %312, %300, %cst_139 {dimension_numbers = #tpu.dot_dimension_numbers<[1], [0], [0], [1], [0, 0, 1, 1], [], []>} : vector<5x5xf32>, vector<5x8xf32>, vector<5x8xf32> -> vector<5x8xf32>
    %314 = vector.extract_strided_slice %239 {offsets = [24, 0], sizes = [8, 32], strides = [1, 1]} : vector<32x32xf32> to vector<8x32xf32>
    %cst_140 = arith.constant dense<0.000000e+00> : vector<5x32xf32>
    %315 = tpu.matmul %313, %314, %cst_140 {dimension_numbers = #tpu.dot_dimension_numbers<[1], [0], [0], [1], [0, 0, 1, 1], [], []>} : vector<5x8xf32>, vector<8x32xf32>, vector<5x32xf32> -> vector<5x32xf32>
    %316 = arith.addf %297, %315 : vector<5x32xf32>
    %317 = arith.addf %204, %316 : vector<5x32xf32>
    %c1_141 = arith.constant 1 : index
    %c0_142 = arith.constant 0 : index
    %c0_143 = arith.constant 0 : index
    %318 = vector.load %arg9[%c1_141, %c0_142, %c0_143] : memref<2x1x32xf32, #tpu.memory_space<vmem>>, vector<1x1x32xf32>
    %319 = vector.shape_cast %318 : vector<1x1x32xf32> to vector<1x32xf32>
    %320 = vector.broadcast %319 : vector<1x32xf32> to vector<5x32xf32>
    %321 = arith.addf %317, %320 : vector<5x32xf32>
    %c1_144 = arith.constant 1 : index
    %c0_145 = arith.constant 0 : index
    %c0_146 = arith.constant 0 : index
    %322 = vector.load %arg10[%c1_144, %c0_145, %c0_146] : memref<2x1x32xf32, #tpu.memory_space<vmem>>, vector<1x1x32xf32>
    %323 = vector.shape_cast %322 : vector<1x1x32xf32> to vector<1x32xf32>
    %c1_147 = arith.constant 1 : index
    %c0_148 = arith.constant 0 : index
    %c0_149 = arith.constant 0 : index
    %324 = vector.load %arg11[%c1_147, %c0_148, %c0_149] : memref<2x1x32xf32, #tpu.memory_space<vmem>>, vector<1x1x32xf32>
    %325 = vector.shape_cast %324 : vector<1x1x32xf32> to vector<1x32xf32>
    %cst_150 = arith.constant dense<0.000000e+00> : vector<5xf32>
    %326 = vector.multi_reduction <add>, %321, %cst_150 [1] : vector<5x32xf32> to vector<5xf32>
    %327 = vector.shape_cast %326 : vector<5xf32> to vector<5x1xf32>
    %cst_151 = arith.constant 3.200000e+01 : f32
    %328 = vector.broadcast %cst_151 : f32 to vector<5x1xf32>
    %329 = arith.divf %327, %328 : vector<5x1xf32>
    %330 = vector.broadcast %329 : vector<5x1xf32> to vector<5x32xf32>
    %331 = arith.subf %321, %330 : vector<5x32xf32>
    %332 = arith.mulf %331, %331 : vector<5x32xf32>
    %cst_152 = arith.constant dense<0.000000e+00> : vector<5xf32>
    %333 = vector.multi_reduction <add>, %332, %cst_152 [1] : vector<5x32xf32> to vector<5xf32>
    %334 = vector.shape_cast %333 : vector<5xf32> to vector<5x1xf32>
    %cst_153 = arith.constant 3.200000e+01 : f32
    %335 = vector.broadcast %cst_153 : f32 to vector<5x1xf32>
    %336 = arith.divf %334, %335 : vector<5x1xf32>
    %337 = vector.broadcast %329 : vector<5x1xf32> to vector<5x32xf32>
    %338 = arith.subf %321, %337 : vector<5x32xf32>
    %cst_154 = arith.constant 9.99999996E-13 : f32
    %339 = vector.broadcast %cst_154 : f32 to vector<5x1xf32>
    %340 = arith.addf %336, %339 : vector<5x1xf32>
    %341 = math.rsqrt %340 : vector<5x1xf32>
    %342 = vector.broadcast %341 : vector<5x1xf32> to vector<5x32xf32>
    %343 = arith.mulf %338, %342 : vector<5x32xf32>
    %344 = vector.broadcast %323 : vector<1x32xf32> to vector<5x32xf32>
    %345 = arith.mulf %343, %344 : vector<5x32xf32>
    %346 = vector.broadcast %325 : vector<1x32xf32> to vector<5x32xf32>
    %347 = arith.addf %345, %346 : vector<5x32xf32>
    %c1_155 = arith.constant 1 : index
    %c0_156 = arith.constant 0 : index
    %c0_157 = arith.constant 0 : index
    %348 = vector.load %arg12[%c1_155, %c0_156, %c0_157] : memref<2x32x64xf32, #tpu.memory_space<vmem>>, vector<1x32x64xf32>
    %349 = vector.shape_cast %348 : vector<1x32x64xf32> to vector<32x64xf32>
    %cst_158 = arith.constant dense<0.000000e+00> : vector<5x64xf32>
    %350 = tpu.matmul %347, %349, %cst_158 {dimension_numbers = #tpu.dot_dimension_numbers<[1], [0], [0], [1], [0, 0, 1, 1], [], []>} : vector<5x32xf32>, vector<32x64xf32>, vector<5x64xf32> -> vector<5x64xf32>
    %c1_159 = arith.constant 1 : index
    %c0_160 = arith.constant 0 : index
    %c0_161 = arith.constant 0 : index
    %351 = vector.load %arg13[%c1_159, %c0_160, %c0_161] : memref<2x1x64xf32, #tpu.memory_space<vmem>>, vector<1x1x64xf32>
    %352 = vector.shape_cast %351 : vector<1x1x64xf32> to vector<1x64xf32>
    %353 = vector.broadcast %352 : vector<1x64xf32> to vector<5x64xf32>
    %354 = arith.addf %350, %353 : vector<5x64xf32>
    %cst_162 = arith.constant 5.000000e-01 : f32
    %355 = vector.broadcast %cst_162 : f32 to vector<5x64xf32>
    %356 = arith.mulf %355, %354 : vector<5x64xf32>
    %cst_163 = arith.constant 0.707106769 : f32
    %357 = vector.broadcast %cst_163 : f32 to vector<5x64xf32>
    %358 = arith.mulf %354, %357 : vector<5x64xf32>
    %cst_164 = arith.constant 0.000000e+00 : f32
    %359 = vector.broadcast %cst_164 : f32 to vector<5x64xf32>
    %360 = arith.cmpf oge, %358, %359 : vector<5x64xf32>
    %cst_165 = arith.constant 1.000000e+00 : f32
    %cst_166 = arith.constant -1.000000e+00 : f32
    %361 = vector.broadcast %cst_165 : f32 to vector<5x64xf32>
    %362 = vector.broadcast %cst_166 : f32 to vector<5x64xf32>
    %363 = arith.select %360, %361, %362 : vector<5x64xi1>, vector<5x64xf32>
    %364 = math.absf %358 : vector<5x64xf32>
    %cst_167 = arith.constant 0.327591091 : f32
    %365 = vector.broadcast %cst_167 : f32 to vector<5x64xf32>
    %366 = arith.mulf %365, %364 : vector<5x64xf32>
    %cst_168 = arith.constant 1.000000e+00 : f32
    %367 = vector.broadcast %cst_168 : f32 to vector<5x64xf32>
    %368 = arith.addf %367, %366 : vector<5x64xf32>
    %cst_169 = arith.constant 1.000000e+00 : f32
    %369 = vector.broadcast %cst_169 : f32 to vector<5x64xf32>
    %370 = arith.divf %369, %368 : vector<5x64xf32>
    %cst_170 = arith.constant 1.06140542 : f32
    %371 = vector.broadcast %cst_170 : f32 to vector<5x64xf32>
    %372 = arith.mulf %371, %370 : vector<5x64xf32>
    %cst_171 = arith.constant -1.45315206 : f32
    %373 = vector.broadcast %cst_171 : f32 to vector<5x64xf32>
    %374 = arith.addf %372, %373 : vector<5x64xf32>
    %375 = arith.mulf %374, %370 : vector<5x64xf32>
    %cst_172 = arith.constant 1.42141378 : f32
    %376 = vector.broadcast %cst_172 : f32 to vector<5x64xf32>
    %377 = arith.addf %375, %376 : vector<5x64xf32>
    %378 = arith.mulf %377, %370 : vector<5x64xf32>
    %cst_173 = arith.constant -0.284496725 : f32
    %379 = vector.broadcast %cst_173 : f32 to vector<5x64xf32>
    %380 = arith.addf %378, %379 : vector<5x64xf32>
    %381 = arith.mulf %380, %370 : vector<5x64xf32>
    %cst_174 = arith.constant 0.254829586 : f32
    %382 = vector.broadcast %cst_174 : f32 to vector<5x64xf32>
    %383 = arith.addf %381, %382 : vector<5x64xf32>
    %384 = arith.mulf %383, %370 : vector<5x64xf32>
    %cst_175 = arith.constant 0.000000e+00 : f32
    %385 = vector.broadcast %cst_175 : f32 to vector<5x64xf32>
    %386 = arith.subf %385, %364 : vector<5x64xf32>
    %387 = arith.mulf %386, %364 : vector<5x64xf32>
    %388 = math.exp %387 : vector<5x64xf32>
    %389 = arith.mulf %384, %388 : vector<5x64xf32>
    %cst_176 = arith.constant 1.000000e+00 : f32
    %390 = vector.broadcast %cst_176 : f32 to vector<5x64xf32>
    %391 = arith.subf %390, %389 : vector<5x64xf32>
    %392 = arith.mulf %363, %391 : vector<5x64xf32>
    %cst_177 = arith.constant 1.000000e+00 : f32
    %393 = vector.broadcast %cst_177 : f32 to vector<5x64xf32>
    %394 = arith.addf %393, %392 : vector<5x64xf32>
    %395 = arith.mulf %356, %394 : vector<5x64xf32>
    %c1_178 = arith.constant 1 : index
    %c0_179 = arith.constant 0 : index
    %c0_180 = arith.constant 0 : index
    %396 = vector.load %arg14[%c1_178, %c0_179, %c0_180] : memref<2x64x32xf32, #tpu.memory_space<vmem>>, vector<1x64x32xf32>
    %397 = vector.shape_cast %396 : vector<1x64x32xf32> to vector<64x32xf32>
    %cst_181 = arith.constant dense<0.000000e+00> : vector<5x32xf32>
    %398 = tpu.matmul %395, %397, %cst_181 {dimension_numbers = #tpu.dot_dimension_numbers<[1], [0], [0], [1], [0, 0, 1, 1], [], []>} : vector<5x64xf32>, vector<64x32xf32>, vector<5x32xf32> -> vector<5x32xf32>
    %c1_182 = arith.constant 1 : index
    %c0_183 = arith.constant 0 : index
    %c0_184 = arith.constant 0 : index
    %399 = vector.load %arg15[%c1_182, %c0_183, %c0_184] : memref<2x1x32xf32, #tpu.memory_space<vmem>>, vector<1x1x32xf32>
    %400 = vector.shape_cast %399 : vector<1x1x32xf32> to vector<1x32xf32>
    %401 = vector.broadcast %400 : vector<1x32xf32> to vector<5x32xf32>
    %402 = arith.addf %398, %401 : vector<5x32xf32>
    %403 = arith.addf %321, %402 : vector<5x32xf32>
    %c0_185 = arith.constant 0 : index
    %c0_186 = arith.constant 0 : index
    %404 = vector.load %arg16[%c0_185, %c0_186] : memref<1x32xf32, #tpu.memory_space<vmem>>, vector<1x32xf32>
    %c0_187 = arith.constant 0 : index
    %c0_188 = arith.constant 0 : index
    %405 = vector.load %arg17[%c0_187, %c0_188] : memref<1x32xf32, #tpu.memory_space<vmem>>, vector<1x32xf32>
    %cst_189 = arith.constant dense<0.000000e+00> : vector<5xf32>
    %406 = vector.multi_reduction <add>, %403, %cst_189 [1] : vector<5x32xf32> to vector<5xf32>
    %407 = vector.shape_cast %406 : vector<5xf32> to vector<5x1xf32>
    %cst_190 = arith.constant 3.200000e+01 : f32
    %408 = vector.broadcast %cst_190 : f32 to vector<5x1xf32>
    %409 = arith.divf %407, %408 : vector<5x1xf32>
    %410 = vector.broadcast %409 : vector<5x1xf32> to vector<5x32xf32>
    %411 = arith.subf %403, %410 : vector<5x32xf32>
    %412 = arith.mulf %411, %411 : vector<5x32xf32>
    %cst_191 = arith.constant dense<0.000000e+00> : vector<5xf32>
    %413 = vector.multi_reduction <add>, %412, %cst_191 [1] : vector<5x32xf32> to vector<5xf32>
    %414 = vector.shape_cast %413 : vector<5xf32> to vector<5x1xf32>
    %cst_192 = arith.constant 3.200000e+01 : f32
    %415 = vector.broadcast %cst_192 : f32 to vector<5x1xf32>
    %416 = arith.divf %414, %415 : vector<5x1xf32>
    %417 = vector.broadcast %409 : vector<5x1xf32> to vector<5x32xf32>
    %418 = arith.subf %403, %417 : vector<5x32xf32>
    %cst_193 = arith.constant 9.99999996E-13 : f32
    %419 = vector.broadcast %cst_193 : f32 to vector<5x1xf32>
    %420 = arith.addf %416, %419 : vector<5x1xf32>
    %421 = math.rsqrt %420 : vector<5x1xf32>
    %422 = vector.broadcast %421 : vector<5x1xf32> to vector<5x32xf32>
    %423 = arith.mulf %418, %422 : vector<5x32xf32>
    %424 = vector.broadcast %404 : vector<1x32xf32> to vector<5x32xf32>
    %425 = arith.mulf %423, %424 : vector<5x32xf32>
    %426 = vector.broadcast %405 : vector<1x32xf32> to vector<5x32xf32>
    %427 = arith.addf %425, %426 : vector<5x32xf32>
    %428 = vector.extract_strided_slice %427 {offsets = [0, 0], sizes = [1, 32], strides = [1, 1]} : vector<5x32xf32> to vector<1x32xf32>
    %c0_194 = arith.constant 0 : index
    %c0_195 = arith.constant 0 : index
    %429 = vector.load %arg18[%c0_194, %c0_195] : memref<32x32xf32, #tpu.memory_space<vmem>>, vector<32x32xf32>
    %cst_196 = arith.constant dense<0.000000e+00> : vector<1x32xf32>
    %430 = tpu.matmul %428, %429, %cst_196 {dimension_numbers = #tpu.dot_dimension_numbers<[1], [0], [0], [1], [0, 0, 1, 1], [], []>} : vector<1x32xf32>, vector<32x32xf32>, vector<1x32xf32> -> vector<1x32xf32>
    %c0_197 = arith.constant 0 : index
    %c0_198 = arith.constant 0 : index
    %431 = vector.load %arg19[%c0_197, %c0_198] : memref<1x32xf32, #tpu.memory_space<vmem>>, vector<1x32xf32>
    %432 = arith.addf %430, %431 : vector<1x32xf32>
    %433 = math.tanh %432 : vector<1x32xf32>
    %c0_199 = arith.constant 0 : index
    %c0_200 = arith.constant 0 : index
    %c0_201 = arith.constant 0 : index
    %434 = vector.load %arg20[%c0_199, %c0_200, %c0_201] : memref<1x1x32xf32, #tpu.memory_space<vmem>>, vector<1x1x32xf32>
    %435 = vector.shape_cast %434 : vector<1x1x32xf32> to vector<1x32xf32>
    %cst_202 = arith.constant 2.000000e-01 : f32
    %436 = vector.broadcast %cst_202 : f32 to vector<1x32xf32>
    %437 = arith.cmpf oge, %435, %436 : vector<1x32xf32>
    %cst_203 = arith.constant 1.250000e+00 : f32
    %438 = vector.broadcast %cst_203 : f32 to vector<1x32xf32>
    %439 = arith.mulf %433, %438 : vector<1x32xf32>
    %cst_204 = arith.constant 0.000000e+00 : f32
    %440 = vector.broadcast %cst_204 : f32 to vector<1x32xf32>
    %441 = arith.select %437, %439, %440 : vector<1x32xi1>, vector<1x32xf32>
    %c0_205 = arith.constant 0 : index
    %c0_206 = arith.constant 0 : index
    %c0_207 = arith.constant 0 : index
    %442 = vector.load %arg21[%c0_205, %c0_206, %c0_207] : memref<1x1x32xf32, #tpu.memory_space<vmem>>, vector<1x1x32xf32>
    %443 = vector.shape_cast %442 : vector<1x1x32xf32> to vector<1x32xf32>
    %444 = vector.shape_cast %441 : vector<1x32xf32> to vector<1x1x32xf32>
    tpu.vector_store %arg21[%c0_205, %c0_206, %c0_207], %444 {strides = array<i32>} : memref<1x1x32xf32, #tpu.memory_space<vmem>>, vector<1x1x32xf32>,
    return
  }
  func.func @transform_0(%arg0: i32) -> (i32, i32, i32) {
    %c0_i32 = arith.constant 0 : i32
    %c0_i32_0 = arith.constant 0 : i32
    %c0_i32_1 = arith.constant 0 : i32
    return %arg0, %c0_i32, %c0_i32_0 : i32, i32, i32
  }
  func.func @transform_1(%arg0: i32) -> (i32, i32) {
    %c0_i32 = arith.constant 0 : i32
    %c0_i32_0 = arith.constant 0 : i32
    %c0_i32_1 = arith.constant 0 : i32
    return %c0_i32, %c0_i32_0 : i32, i32
  }
  func.func @transform_2(%arg0: i32) -> (i32, i32) {
    %c0_i32 = arith.constant 0 : i32
    %c0_i32_0 = arith.constant 0 : i32
    %c0_i32_1 = arith.constant 0 : i32
    return %c0_i32, %c0_i32_0 : i32, i32
  }
  func.func @transform_3(%arg0: i32) -> (i32, i32, i32) {
    %c0_i32 = arith.constant 0 : i32
    %c0_i32_0 = arith.constant 0 : i32
    %c0_i32_1 = arith.constant 0 : i32
    %c0_i32_2 = arith.constant 0 : i32
    return %c0_i32, %c0_i32_0, %c0_i32_1 : i32, i32, i32
  }
  func.func @transform_4(%arg0: i32) -> (i32, i32, i32) {
    %c0_i32 = arith.constant 0 : i32
    %c0_i32_0 = arith.constant 0 : i32
    %c0_i32_1 = arith.constant 0 : i32
    %c0_i32_2 = arith.constant 0 : i32
    return %c0_i32, %c0_i32_0, %c0_i32_1 : i32, i32, i32
  }
  func.func @transform_5(%arg0: i32) -> (i32, i32, i32) {
    %c0_i32 = arith.constant 0 : i32
    %c0_i32_0 = arith.constant 0 : i32
    %c0_i32_1 = arith.constant 0 : i32
    %c0_i32_2 = arith.constant 0 : i32
    return %c0_i32, %c0_i32_0, %c0_i32_1 : i32, i32, i32
  }
  func.func @transform_6(%arg0: i32) -> (i32, i32, i32) {
    %c0_i32 = arith.constant 0 : i32
    %c0_i32_0 = arith.constant 0 : i32
    %c0_i32_1 = arith.constant 0 : i32
    %c0_i32_2 = arith.constant 0 : i32
    return %c0_i32, %c0_i32_0, %c0_i32_1 : i32, i32, i32
  }
  func.func @transform_7(%arg0: i32) -> (i32, i32, i32) {
    %c0_i32 = arith.constant 0 : i32
    %c0_i32_0 = arith.constant 0 : i32
    %c0_i32_1 = arith.constant 0 : i32
    %c0_i32_2 = arith.constant 0 : i32
    return %c0_i32, %c0_i32_0, %c0_i32_1 : i32, i32, i32
  }
  func.func @transform_8(%arg0: i32) -> (i32, i32, i32) {
    %c0_i32 = arith.constant 0 : i32
    %c0_i32_0 = arith.constant 0 : i32
    %c0_i32_1 = arith.constant 0 : i32
    %c0_i32_2 = arith.constant 0 : i32
    return %c0_i32, %c0_i32_0, %c0_i32_1 : i32, i32, i32
  }
  func.func @transform_9(%arg0: i32) -> (i32, i32, i32) {
    %c0_i32 = arith.constant 0 : i32
    %c0_i32_0 = arith.constant 0 : i32
    %c0_i32_1 = arith.constant 0 : i32
    %c0_i32_2 = arith.constant 0 : i32
    return %c0_i32, %c0_i32_0, %c0_i32_1 : i32, i32, i32
  }
  func.func @transform_10(%arg0: i32) -> (i32, i32, i32) {
    %c0_i32 = arith.constant 0 : i32
    %c0_i32_0 = arith.constant 0 : i32
    %c0_i32_1 = arith.constant 0 : i32
    %c0_i32_2 = arith.constant 0 : i32
    return %c0_i32, %c0_i32_0, %c0_i32_1 : i32, i32, i32
  }
  func.func @transform_11(%arg0: i32) -> (i32, i32, i32) {
    %c0_i32 = arith.constant 0 : i32
    %c0_i32_0 = arith.constant 0 : i32
    %c0_i32_1 = arith.constant 0 : i32
    %c0_i32_2 = arith.constant 0 : i32
    return %c0_i32, %c0_i32_0, %c0_i32_1 : i32, i32, i32
  }
  func.func @transform_12(%arg0: i32) -> (i32, i32, i32) {
    %c0_i32 = arith.constant 0 : i32
    %c0_i32_0 = arith.constant 0 : i32
    %c0_i32_1 = arith.constant 0 : i32
    %c0_i32_2 = arith.constant 0 : i32
    return %c0_i32, %c0_i32_0, %c0_i32_1 : i32, i32, i32
  }
  func.func @transform_13(%arg0: i32) -> (i32, i32, i32) {
    %c0_i32 = arith.constant 0 : i32
    %c0_i32_0 = arith.constant 0 : i32
    %c0_i32_1 = arith.constant 0 : i32
    %c0_i32_2 = arith.constant 0 : i32
    return %c0_i32, %c0_i32_0, %c0_i32_1 : i32, i32, i32
  }
  func.func @transform_14(%arg0: i32) -> (i32, i32, i32) {
    %c0_i32 = arith.constant 0 : i32
    %c0_i32_0 = arith.constant 0 : i32
    %c0_i32_1 = arith.constant 0 : i32
    %c0_i32_2 = arith.constant 0 : i32
    return %c0_i32, %c0_i32_0, %c0_i32_1 : i32, i32, i32
  }
  func.func @transform_15(%arg0: i32) -> (i32, i32) {
    %c0_i32 = arith.constant 0 : i32
    %c0_i32_0 = arith.constant 0 : i32
    %c0_i32_1 = arith.constant 0 : i32
    return %c0_i32, %c0_i32_0 : i32, i32
  }
  func.func @transform_16(%arg0: i32) -> (i32, i32) {
    %c0_i32 = arith.constant 0 : i32
    %c0_i32_0 = arith.constant 0 : i32
    %c0_i32_1 = arith.constant 0 : i32
    return %c0_i32, %c0_i32_0 : i32, i32
  }
  func.func @transform_17(%arg0: i32) -> (i32, i32) {
    %c0_i32 = arith.constant 0 : i32
    %c0_i32_0 = arith.constant 0 : i32
    %c0_i32_1 = arith.constant 0 : i32
    return %c0_i32, %c0_i32_0 : i32, i32
  }
  func.func @transform_18(%arg0: i32) -> (i32, i32) {
    %c0_i32 = arith.constant 0 : i32
    %c0_i32_0 = arith.constant 0 : i32
    %c0_i32_1 = arith.constant 0 : i32
    return %c0_i32, %c0_i32_0 : i32, i32
  }
  func.func @transform_19(%arg0: i32) -> (i32, i32, i32) {
    %c0_i32 = arith.constant 0 : i32
    %c0_i32_0 = arith.constant 0 : i32
    %c0_i32_1 = arith.constant 0 : i32
    return %arg0, %c0_i32, %c0_i32_0 : i32, i32, i32
  }
  func.func @transform_20(%arg0: i32) -> (i32, i32, i32) {
    %c0_i32 = arith.constant 0 : i32
    %c0_i32_0 = arith.constant 0 : i32
    %c0_i32_1 = arith.constant 0 : i32
    return %arg0, %c0_i32, %c0_i32_0 : i32, i32, i32
  }
}

</mosaic_0001>

<llo_original>
// kernel: tpu_custom_call.1
$region0: #{tpu_custom_call.1}
  #allocation0 [shape = 'u32[]', space=smem, size = 0x4, offset = 0x4, fixed_abs, tag = 'smem constant byte address 0x4 - core index']
  #allocation1 [shape = 'u32[144,128]{1,0:T(1,128)}', space=vmem, size = 0x12000, scoped, tag = 'internal scratch']
  %s0 = inlined_call_operand.vmem [shape: f32[2,5,192], index: 0, kind: input, shape index: {}]
  %s1 = inlined_call_operand.vmem [shape: f32[192,32], index: 1, kind: input, shape index: {}]
  %s2 = inlined_call_operand.vmem [shape: f32[5,32], index: 2, kind: input, shape index: {}]
  %s3 = inlined_call_operand.vmem [shape: f32[2,1,32], index: 3, kind: input, shape index: {}]
  %s4 = inlined_call_operand.vmem [shape: f32[2,1,32], index: 4, kind: input, shape index: {}]
  %s5 = inlined_call_operand.vmem [shape: f32[2,32,96], index: 5, kind: input, shape index: {}]
  %s6 = inlined_call_operand.vmem [shape: f32[2,1,96], index: 6, kind: input, shape index: {}]
  %s7 = inlined_call_operand.vmem [shape: f32[2,32,32], index: 7, kind: input, shape index: {}]
  %s8 = inlined_call_operand.vmem [shape: f32[2,1,32], index: 8, kind: input, shape index: {}]
  %s9 = inlined_call_operand.vmem [shape: f32[2,1,32], index: 9, kind: input, shape index: {}]
  %s10 = inlined_call_operand.vmem [shape: f32[2,1,32], index: 10, kind: input, shape index: {}]
  %s11 = inlined_call_operand.vmem [shape: f32[2,32,64], index: 11, kind: input, shape index: {}]
  %s12 = inlined_call_operand.vmem [shape: f32[2,1,64], index: 12, kind: input, shape index: {}]
  %s13 = inlined_call_operand.vmem [shape: f32[2,64,32], index: 13, kind: input, shape index: {}]
  %s14 = inlined_call_operand.vmem [shape: f32[2,1,32], index: 14, kind: input, shape index: {}]
  %s15 = inlined_call_operand.vmem [shape: f32[1,32], index: 15, kind: input, shape index: {}]
  %s16 = inlined_call_operand.vmem [shape: f32[1,32], index: 16, kind: input, shape index: {}]
  %s17 = inlined_call_operand.vmem [shape: f32[32,32], index: 17, kind: input, shape index: {}]
  %s18 = inlined_call_operand.vmem [shape: f32[1,32], index: 18, kind: input, shape index: {}]
  %s19 = inlined_call_operand.vmem [shape: f32[2,1,32], index: 19, kind: input, shape index: {}]
  %s20 = inlined_call_operand.hbm [shape: f32[2,1,32], index: 20, kind: output, shape index: {}]
  %s21 = sld [smem:[#allocation0]]
  $region113: #{tpu_custom_call.1} parent=0
    _
  %s23 = ssub.s32 1, %s21
  %s24 = scalar_select 0, %s23, %s21
  $region1: #{tpu_custom_call.1} parent=0
    #allocation2 [shape = 'u8[1024]{0}', space=vmem, size = 0x400, scoped, tag = 'output window, operand 0']
    #allocation3 [shape = 's32[2]{0}', space=sflag, size = 0x8, scoped, tag = 'scoped memory for tpu_custom_call.1']
    %25 = vsyncpa [#allocation3], 0
    %s26 = scalar_lea.sflag [#allocation3], 1
    %27 = vsyncpa %s26, 0
    loop: start=0, step=1, limit=4
    $region2: #{tpu_custom_call.1} parent=1 // loop_pre_header
      _
    $region3: #{tpu_custom_call.1} parent=1 // loop_header
      %s29 = sphi 0, %s33
      %p30 = scmp.ge.s32.totalorder %s29, 4
      %s39 = sphi 0, %s41
      %s42 = sphi 0, %s39
      %s43 = sphi 0, %s42
      %s59 = sphi 0, %s43
      %s63 = sphi 0, %s63
      %s65 = sphi 0, %s63
      %s66 = sphi 0, %s65
      %s80 = sphi 0, %s66
      %s84 = sphi 0, %s84
      %s86 = sphi 0, %s84
      %s87 = sphi 0, %s86
      %s101 = sphi 0, %s87
      %s105 = sphi 0, %s105
      %s107 = sphi 0, %s105
      %s108 = sphi 0, %s107
      %s122 = sphi 0, %s108
      %s126 = sphi 0, %s126
      %s128 = sphi 0, %s126
      %s129 = sphi 0, %s128
      %s143 = sphi 0, %s129
      %s147 = sphi 0, %s147
      %s149 = sphi 0, %s147
      %s150 = sphi 0, %s149
      %s164 = sphi 0, %s150
      %s168 = sphi 0, %s168
      %s170 = sphi 0, %s168
      %s171 = sphi 0, %s170
      %s185 = sphi 0, %s171
      %s189 = sphi 0, %s189
      %s191 = sphi 0, %s189
      %s192 = sphi 0, %s191
      %s206 = sphi 0, %s192
      %s210 = sphi 0, %s210
      %s212 = sphi 0, %s210
      %s213 = sphi 0, %s212
      %s227 = sphi 0, %s213
      %s231 = sphi 0, %s231
      %s233 = sphi 0, %s231
      %s234 = sphi 0, %s233
      %s248 = sphi 0, %s234
      %s252 = sphi 0, %s252
      %s254 = sphi 0, %s252
      %s255 = sphi 0, %s254
      %s269 = sphi 0, %s255
      %s273 = sphi 0, %s273
      %s275 = sphi 0, %s273
      %s276 = sphi 0, %s275
      %s290 = sphi 0, %s276
      %s294 = sphi 0, %s294
      %s296 = sphi 0, %s294
      %s297 = sphi 0, %s296
      %s311 = sphi 0, %s297
      %s315 = sphi 0, %s315
      %s317 = sphi 0, %s315
      %s318 = sphi 0, %s317
      %s332 = sphi 0, %s318
      %s336 = sphi 0, %s336
      %s338 = sphi 0, %s336
      %s339 = sphi 0, %s338
      %s353 = sphi 0, %s339
      %s357 = sphi 0, %s357
      %s359 = sphi 0, %s357
      %s360 = sphi 0, %s359
      %s374 = sphi 0, %s360
      %s378 = sphi 0, %s378
      %s380 = sphi 0, %s378
      %s381 = sphi 0, %s380
      %s395 = sphi 0, %s381
      %s399 = sphi 0, %s399
      %s401 = sphi 0, %s399
      %s402 = sphi 0, %s401
      %s416 = sphi 0, %s402
      %s420 = sphi 0, %s420
      %s422 = sphi 0, %s420
      %s423 = sphi 0, %s422
      %s437 = sphi 0, %s423
      %s443 = sphi 0, %s445
      %s446 = sphi 0, %s443
      %s447 = sphi 0, %s446
      %s463 = sphi 0, %s447
      %s469 = sphi 0, %s471
      %s472 = sphi 0, %s469
      %s473 = sphi 0, %s472
      %s489 = sphi 0, %s473
    $region4: #{tpu_custom_call.1} parent=1 // loop_header_branch
      %32 = sbr.rel (%p30) target = $region8
    $region5: #{tpu_custom_call.1} parent=1 // loop_body
      %s34 = ssub.s32 %s29, 1
      %s35 = ssub.s32 %s29, 2
      %s36 = sadd.s32 %s29, 1
      %s37 = ssub.s32 %s29, %s36
      %p38 = scmp.eq.s32.totalorder %s37, 0
      %s40 = sadd.s32 %s39, 1
      %s41 = scalar_select %p38, %s39, %s40
      %p44 = pneg %p38
      %p45 = scmp.eq.s32.totalorder %s29, 1
      %p46 = por %p44, %p45
      %p47 = scmp.ne.s32.totalorder %s39, %s42
      %p48 = scmp.eq.s32.totalorder %s29, 0
      %p49 = por %p47, %p48
      %p50 = scmp.ne.s32.totalorder %s39, %s42
      %p51 = scmp.eq.s32.totalorder %s34, 1
      %p52 = por %p50, %p51
      %p53 = scmp.ne.s32.totalorder %s42, %s43
      %p54 = scmp.eq.s32.totalorder %s34, 0
      %p55 = por %p53, %p54
      %p56 = scmp.ne.s32.totalorder %s42, %s43
      %p57 = scmp.eq.s32.totalorder %s35, 1
      %p58 = por %p56, %p57
      %p60 = scmp.ne.s32.totalorder %s43, %s59
      %p61 = scmp.eq.s32.totalorder %s35, 0
      %p62 = por %p60, %p61
      %s64 = sadd.s32 %s63, 1
      %p67 = scmp.eq.s32.totalorder %s29, 1
      %p68 = scmp.ne.s32.totalorder %s63, %s65
      %p69 = scmp.eq.s32.totalorder %s29, 0
      %p70 = por %p68, %p69
      %p71 = scmp.ne.s32.totalorder %s63, %s65
      %p72 = scmp.eq.s32.totalorder %s34, 1
      %p73 = por %p71, %p72
      %p74 = scmp.ne.s32.totalorder %s65, %s66
      %p75 = scmp.eq.s32.totalorder %s34, 0
      %p76 = por %p74, %p75
      %p77 = scmp.ne.s32.totalorder %s65, %s66
      %p78 = scmp.eq.s32.totalorder %s35, 1
      %p79 = por %p77, %p78
      %p81 = scmp.ne.s32.totalorder %s66, %s80
      %p82 = scmp.eq.s32.totalorder %s35, 0
      %p83 = por %p81, %p82
      %s85 = sadd.s32 %s84, 1
      %p88 = scmp.eq.s32.totalorder %s29, 1
      %p89 = scmp.ne.s32.totalorder %s84, %s86
      %p90 = scmp.eq.s32.totalorder %s29, 0
      %p91 = por %p89, %p90
      %p92 = scmp.ne.s32.totalorder %s84, %s86
      %p93 = scmp.eq.s32.totalorder %s34, 1
      %p94 = por %p92, %p93
      %p95 = scmp.ne.s32.totalorder %s86, %s87
      %p96 = scmp.eq.s32.totalorder %s34, 0
      %p97 = por %p95, %p96
      %p98 = scmp.ne.s32.totalorder %s86, %s87
      %p99 = scmp.eq.s32.totalorder %s35, 1
      %p100 = por %p98, %p99
      %p102 = scmp.ne.s32.totalorder %s87, %s101
      %p103 = scmp.eq.s32.totalorder %s35, 0
      %p104 = por %p102, %p103
      %s106 = sadd.s32 %s105, 1
      %p109 = scmp.eq.s32.totalorder %s29, 1
      %p110 = scmp.ne.s32.totalorder %s105, %s107
      %p111 = scmp.eq.s32.totalorder %s29, 0
      %p112 = por %p110, %p111
      %p113 = scmp.ne.s32.totalorder %s105, %s107
      %p114 = scmp.eq.s32.totalorder %s34, 1
      %p115 = por %p113, %p114
      %p116 = scmp.ne.s32.totalorder %s107, %s108
      %p117 = scmp.eq.s32.totalorder %s34, 0
      %p118 = por %p116, %p117
      %p119 = scmp.ne.s32.totalorder %s107, %s108
      %p120 = scmp.eq.s32.totalorder %s35, 1
      %p121 = por %p119, %p120
      %p123 = scmp.ne.s32.totalorder %s108, %s122
      %p124 = scmp.eq.s32.totalorder %s35, 0
      %p125 = por %p123, %p124
      %s127 = sadd.s32 %s126, 1
      %p130 = scmp.eq.s32.totalorder %s29, 1
      %p131 = scmp.ne.s32.totalorder %s126, %s128
      %p132 = scmp.eq.s32.totalorder %s29, 0
      %p133 = por %p131, %p132
      %p134 = scmp.ne.s32.totalorder %s126, %s128
      %p135 = scmp.eq.s32.totalorder %s34, 1
      %p136 = por %p134, %p135
      %p137 = scmp.ne.s32.totalorder %s128, %s129
      %p138 = scmp.eq.s32.totalorder %s34, 0
      %p139 = por %p137, %p138
      %p140 = scmp.ne.s32.totalorder %s128, %s129
      %p141 = scmp.eq.s32.totalorder %s35, 1
      %p142 = por %p140, %p141
      %p144 = scmp.ne.s32.totalorder %s129, %s143
      %p145 = scmp.eq.s32.totalorder %s35, 0
      %p146 = por %p144, %p145
      %s148 = sadd.s32 %s147, 1
      %p151 = scmp.eq.s32.totalorder %s29, 1
      %p152 = scmp.ne.s32.totalorder %s147, %s149
      %p153 = scmp.eq.s32.totalorder %s29, 0
      %p154 = por %p152, %p153
      %p155 = scmp.ne.s32.totalorder %s147, %s149
      %p156 = scmp.eq.s32.totalorder %s34, 1
      %p157 = por %p155, %p156
      %p158 = scmp.ne.s32.totalorder %s149, %s150
      %p159 = scmp.eq.s32.totalorder %s34, 0
      %p160 = por %p158, %p159
      %p161 = scmp.ne.s32.totalorder %s149, %s150
      %p162 = scmp.eq.s32.totalorder %s35, 1
      %p163 = por %p161, %p162
      %p165 = scmp.ne.s32.totalorder %s150, %s164
      %p166 = scmp.eq.s32.totalorder %s35, 0
      %p167 = por %p165, %p166
      %s169 = sadd.s32 %s168, 1
      %p172 = scmp.eq.s32.totalorder %s29, 1
      %p173 = scmp.ne.s32.totalorder %s168, %s170
      %p174 = scmp.eq.s32.totalorder %s29, 0
      %p175 = por %p173, %p174
      %p176 = scmp.ne.s32.totalorder %s168, %s170
      %p177 = scmp.eq.s32.totalorder %s34, 1
      %p178 = por %p176, %p177
      %p179 = scmp.ne.s32.totalorder %s170, %s171
      %p180 = scmp.eq.s32.totalorder %s34, 0
      %p181 = por %p179, %p180
      %p182 = scmp.ne.s32.totalorder %s170, %s171
      %p183 = scmp.eq.s32.totalorder %s35, 1
      %p184 = por %p182, %p183
      %p186 = scmp.ne.s32.totalorder %s171, %s185
      %p187 = scmp.eq.s32.totalorder %s35, 0
      %p188 = por %p186, %p187
      %s190 = sadd.s32 %s189, 1
      %p193 = scmp.eq.s32.totalorder %s29, 1
      %p194 = scmp.ne.s32.totalorder %s189, %s191
      %p195 = scmp.eq.s32.totalorder %s29, 0
      %p196 = por %p194, %p195
      %p197 = scmp.ne.s32.totalorder %s189, %s191
      %p198 = scmp.eq.s32.totalorder %s34, 1
      %p199 = por %p197, %p198
      %p200 = scmp.ne.s32.totalorder %s191, %s192
      %p201 = scmp.eq.s32.totalorder %s34, 0
      %p202 = por %p200, %p201
      %p203 = scmp.ne.s32.totalorder %s191, %s192
      %p204 = scmp.eq.s32.totalorder %s35, 1
      %p205 = por %p203, %p204
      %p207 = scmp.ne.s32.totalorder %s192, %s206
      %p208 = scmp.eq.s32.totalorder %s35, 0
      %p209 = por %p207, %p208
      %s211 = sadd.s32 %s210, 1
      %p214 = scmp.eq.s32.totalorder %s29, 1
      %p215 = scmp.ne.s32.totalorder %s210, %s212
      %p216 = scmp.eq.s32.totalorder %s29, 0
      %p217 = por %p215, %p216
      %p218 = scmp.ne.s32.totalorder %s210, %s212
      %p219 = scmp.eq.s32.totalorder %s34, 1
      %p220 = por %p218, %p219
      %p221 = scmp.ne.s32.totalorder %s212, %s213
      %p222 = scmp.eq.s32.totalorder %s34, 0
      %p223 = por %p221, %p222
      %p224 = scmp.ne.s32.totalorder %s212, %s213
      %p225 = scmp.eq.s32.totalorder %s35, 1
      %p226 = por %p224, %p225
      %p228 = scmp.ne.s32.totalorder %s213, %s227
      %p229 = scmp.eq.s32.totalorder %s35, 0
      %p230 = por %p228, %p229
      %s232 = sadd.s32 %s231, 1
      %p235 = scmp.eq.s32.totalorder %s29, 1
      %p236 = scmp.ne.s32.totalorder %s231, %s233
      %p237 = scmp.eq.s32.totalorder %s29, 0
      %p238 = por %p236, %p237
      %p239 = scmp.ne.s32.totalorder %s231, %s233
      %p240 = scmp.eq.s32.totalorder %s34, 1
      %p241 = por %p239, %p240
      %p242 = scmp.ne.s32.totalorder %s233, %s234
      %p243 = scmp.eq.s32.totalorder %s34, 0
      %p244 = por %p242, %p243
      %p245 = scmp.ne.s32.totalorder %s233, %s234
      %p246 = scmp.eq.s32.totalorder %s35, 1
      %p247 = por %p245, %p246
      %p249 = scmp.ne.s32.totalorder %s234, %s248
      %p250 = scmp.eq.s32.totalorder %s35, 0
      %p251 = por %p249, %p250
      %s253 = sadd.s32 %s252, 1
      %p256 = scmp.eq.s32.totalorder %s29, 1
      %p257 = scmp.ne.s32.totalorder %s252, %s254
      %p258 = scmp.eq.s32.totalorder %s29, 0
      %p259 = por %p257, %p258
      %p260 = scmp.ne.s32.totalorder %s252, %s254
      %p261 = scmp.eq.s32.totalorder %s34, 1
      %p262 = por %p260, %p261
      %p263 = scmp.ne.s32.totalorder %s254, %s255
      %p264 = scmp.eq.s32.totalorder %s34, 0
      %p265 = por %p263, %p264
      %p266 = scmp.ne.s32.totalorder %s254, %s255
      %p267 = scmp.eq.s32.totalorder %s35, 1
      %p268 = por %p266, %p267
      %p270 = scmp.ne.s32.totalorder %s255, %s269
      %p271 = scmp.eq.s32.totalorder %s35, 0
      %p272 = por %p270, %p271
      %s274 = sadd.s32 %s273, 1
      %p277 = scmp.eq.s32.totalorder %s29, 1
      %p278 = scmp.ne.s32.totalorder %s273, %s275
      %p279 = scmp.eq.s32.totalorder %s29, 0
      %p280 = por %p278, %p279
      %p281 = scmp.ne.s32.totalorder %s273, %s275
      %p282 = scmp.eq.s32.totalorder %s34, 1
      %p283 = por %p281, %p282
      %p284 = scmp.ne.s32.totalorder %s275, %s276
      %p285 = scmp.eq.s32.totalorder %s34, 0
      %p286 = por %p284, %p285
      %p287 = scmp.ne.s32.totalorder %s275, %s276
      %p288 = scmp.eq.s32.totalorder %s35, 1
      %p289 = por %p287, %p288
      %p291 = scmp.ne.s32.totalorder %s276, %s290
      %p292 = scmp.eq.s32.totalorder %s35, 0
      %p293 = por %p291, %p292
      %s295 = sadd.s32 %s294, 1
      %p298 = scmp.eq.s32.totalorder %s29, 1
      %p299 = scmp.ne.s32.totalorder %s294, %s296
      %p300 = scmp.eq.s32.totalorder %s29, 0
      %p301 = por %p299, %p300
      %p302 = scmp.ne.s32.totalorder %s294, %s296
      %p303 = scmp.eq.s32.totalorder %s34, 1
      %p304 = por %p302, %p303
      %p305 = scmp.ne.s32.totalorder %s296, %s297
      %p306 = scmp.eq.s32.totalorder %s34, 0
      %p307 = por %p305, %p306
      %p308 = scmp.ne.s32.totalorder %s296, %s297
      %p309 = scmp.eq.s32.totalorder %s35, 1
      %p310 = por %p308, %p309
      %p312 = scmp.ne.s32.totalorder %s297, %s311
      %p313 = scmp.eq.s32.totalorder %s35, 0
      %p314 = por %p312, %p313
      %s316 = sadd.s32 %s315, 1
      %p319 = scmp.eq.s32.totalorder %s29, 1
      %p320 = scmp.ne.s32.totalorder %s315, %s317
      %p321 = scmp.eq.s32.totalorder %s29, 0
      %p322 = por %p320, %p321
      %p323 = scmp.ne.s32.totalorder %s315, %s317
      %p324 = scmp.eq.s32.totalorder %s34, 1
      %p325 = por %p323, %p324
      %p326 = scmp.ne.s32.totalorder %s317, %s318
      %p327 = scmp.eq.s32.totalorder %s34, 0
      %p328 = por %p326, %p327
      %p329 = scmp.ne.s32.totalorder %s317, %s318
      %p330 = scmp.eq.s32.totalorder %s35, 1
      %p331 = por %p329, %p330
      %p333 = scmp.ne.s32.totalorder %s318, %s332
      %p334 = scmp.eq.s32.totalorder %s35, 0
      %p335 = por %p333, %p334
      %s337 = sadd.s32 %s336, 1
      %p340 = scmp.eq.s32.totalorder %s29, 1
      %p341 = scmp.ne.s32.totalorder %s336, %s338
      %p342 = scmp.eq.s32.totalorder %s29, 0
      %p343 = por %p341, %p342
      %p344 = scmp.ne.s32.totalorder %s336, %s338
      %p345 = scmp.eq.s32.totalorder %s34, 1
      %p346 = por %p344, %p345
      %p347 = scmp.ne.s32.totalorder %s338, %s339
      %p348 = scmp.eq.s32.totalorder %s34, 0
      %p349 = por %p347, %p348
      %p350 = scmp.ne.s32.totalorder %s338, %s339
      %p351 = scmp.eq.s32.totalorder %s35, 1
      %p352 = por %p350, %p351
      %p354 = scmp.ne.s32.totalorder %s339, %s353
      %p355 = scmp.eq.s32.totalorder %s35, 0
      %p356 = por %p354, %p355
      %s358 = sadd.s32 %s357, 1
      %p361 = scmp.eq.s32.totalorder %s29, 1
      %p362 = scmp.ne.s32.totalorder %s357, %s359
      %p363 = scmp.eq.s32.totalorder %s29, 0
      %p364 = por %p362, %p363
      %p365 = scmp.ne.s32.totalorder %s357, %s359
      %p366 = scmp.eq.s32.totalorder %s34, 1
      %p367 = por %p365, %p366
      %p368 = scmp.ne.s32.totalorder %s359, %s360
      %p369 = scmp.eq.s32.totalorder %s34, 0
      %p370 = por %p368, %p369
      %p371 = scmp.ne.s32.totalorder %s359, %s360
      %p372 = scmp.eq.s32.totalorder %s35, 1
      %p373 = por %p371, %p372
      %p375 = scmp.ne.s32.totalorder %s360, %s374
      %p376 = scmp.eq.s32.totalorder %s35, 0
      %p377 = por %p375, %p376
      %s379 = sadd.s32 %s378, 1
      %p382 = scmp.eq.s32.totalorder %s29, 1
      %p383 = scmp.ne.s32.totalorder %s378, %s380
      %p384 = scmp.eq.s32.totalorder %s29, 0
      %p385 = por %p383, %p384
      %p386 = scmp.ne.s32.totalorder %s378, %s380
      %p387 = scmp.eq.s32.totalorder %s34, 1
      %p388 = por %p386, %p387
      %p389 = scmp.ne.s32.totalorder %s380, %s381
      %p390 = scmp.eq.s32.totalorder %s34, 0
      %p391 = por %p389, %p390
      %p392 = scmp.ne.s32.totalorder %s380, %s381
      %p393 = scmp.eq.s32.totalorder %s35, 1
      %p394 = por %p392, %p393
      %p396 = scmp.ne.s32.totalorder %s381, %s395
      %p397 = scmp.eq.s32.totalorder %s35, 0
      %p398 = por %p396, %p397
      %s400 = sadd.s32 %s399, 1
      %p403 = scmp.eq.s32.totalorder %s29, 1
      %p404 = scmp.ne.s32.totalorder %s399, %s401
      %p405 = scmp.eq.s32.totalorder %s29, 0
      %p406 = por %p404, %p405
      %p407 = scmp.ne.s32.totalorder %s399, %s401
      %p408 = scmp.eq.s32.totalorder %s34, 1
      %p409 = por %p407, %p408
      %p410 = scmp.ne.s32.totalorder %s401, %s402
      %p411 = scmp.eq.s32.totalorder %s34, 0
      %p412 = por %p410, %p411
      %p413 = scmp.ne.s32.totalorder %s401, %s402
      %p414 = scmp.eq.s32.totalorder %s35, 1
      %p415 = por %p413, %p414
      %p417 = scmp.ne.s32.totalorder %s402, %s416
      %p418 = scmp.eq.s32.totalorder %s35, 0
      %p419 = por %p417, %p418
      %s421 = sadd.s32 %s420, 1
      %p424 = scmp.eq.s32.totalorder %s29, 1
      %p425 = scmp.ne.s32.totalorder %s420, %s422
      %p426 = scmp.eq.s32.totalorder %s29, 0
      %p427 = por %p425, %p426
      %p428 = scmp.ne.s32.totalorder %s420, %s422
      %p429 = scmp.eq.s32.totalorder %s34, 1
      %p430 = por %p428, %p429
      %p431 = scmp.ne.s32.totalorder %s422, %s423
      %p432 = scmp.eq.s32.totalorder %s34, 0
      %p433 = por %p431, %p432
      %p434 = scmp.ne.s32.totalorder %s422, %s423
      %p435 = scmp.eq.s32.totalorder %s35, 1
      %p436 = por %p434, %p435
      %p438 = scmp.ne.s32.totalorder %s423, %s437
      %p439 = scmp.eq.s32.totalorder %s35, 0
      %p440 = por %p438, %p439
      %s441 = ssub.s32 %s29, %s36
      %p442 = scmp.eq.s32.totalorder %s441, 0
      %s444 = sadd.s32 %s443, 1
      %s445 = scalar_select %p442, %s443, %s444
      %p448 = pneg %p442
      %p449 = scmp.eq.s32.totalorder %s29, 1
      %p450 = por %p448, %p449
      %p451 = scmp.ne.s32.totalorder %s443, %s446
      %p452 = scmp.eq.s32.totalorder %s29, 0
      %p453 = por %p451, %p452
      %p454 = scmp.ne.s32.totalorder %s443, %s446
      %p455 = scmp.eq.s32.totalorder %s34, 1
      %p456 = por %p454, %p455
      %p457 = scmp.ne.s32.totalorder %s446, %s447
      %p458 = scmp.eq.s32.totalorder %s34, 0
      %p459 = por %p457, %p458
      %p460 = scmp.ne.s32.totalorder %s446, %s447
      %p461 = scmp.eq.s32.totalorder %s35, 1
      %p462 = por %p460, %p461
      %p464 = scmp.ne.s32.totalorder %s447, %s463
      %p465 = scmp.eq.s32.totalorder %s35, 0
      %p466 = por %p464, %p465
      %s467 = ssub.s32 %s29, %s36
      %p468 = scmp.eq.s32.totalorder %s467, 0
      %s470 = sadd.s32 %s469, 1
      %s471 = scalar_select %p468, %s469, %s470
      %p474 = pneg %p468
      %p475 = scmp.eq.s32.totalorder %s29, 1
      %p476 = por %p474, %p475
      %p477 = scmp.ne.s32.totalorder %s469, %s472
      %p478 = scmp.eq.s32.totalorder %s29, 0
      %p479 = por %p477, %p478
      %p480 = scmp.ne.s32.totalorder %s469, %s472
      %p481 = scmp.eq.s32.totalorder %s34, 1
      %p482 = por %p480, %p481
      %p483 = scmp.ne.s32.totalorder %s472, %s473
      %p484 = scmp.eq.s32.totalorder %s34, 0
      %p485 = por %p483, %p484
      %p486 = scmp.ne.s32.totalorder %s472, %s473
      %p487 = scmp.eq.s32.totalorder %s35, 1
      %p488 = por %p486, %p487
      %p490 = scmp.ne.s32.totalorder %s473, %s489
      %p491 = scmp.eq.s32.totalorder %s35, 0
      %p492 = por %p490, %p491
      %p493 = scmp.le.s32.totalorder 1, %s29
      %p494 = scmp.lt.s32.totalorder %s29, 3
      %p495 = pnand %p493, %p494
      %p496 = pneg %p495
      // Predicated region
      $region9: #{tpu_custom_call.1} parent=5 // pred_check
        _
      $region10: #{tpu_custom_call.1} parent=5 // pred_check_branch
        %498 = sbr.rel (%p495) target = $region12
      $region11: #{tpu_custom_call.1} parent=5 // pred_region
        %s499 = ssub.s32 %s29, 1
        // Predicated region
        $region13: #{tpu_custom_call.1} parent=11 // pred_check
          %p500 = pneg %p76
        $region14: #{tpu_custom_call.1} parent=11 // pred_check_branch
          %502 = sbr.rel (%p500) target = $region16
        $region15: #{tpu_custom_call.1} parent=11 // pred_region
          _
        $region16: #{tpu_custom_call.1} parent=11 // pred_fallthru
          _
        // Predicated region
        $region17: #{tpu_custom_call.1} parent=11 // pred_check
          %p503 = pneg %p97
        $region18: #{tpu_custom_call.1} parent=11 // pred_check_branch
          %505 = sbr.rel (%p503) target = $region20
        $region19: #{tpu_custom_call.1} parent=11 // pred_region
          _
        $region20: #{tpu_custom_call.1} parent=11 // pred_fallthru
          _
        // Predicated region
        $region21: #{tpu_custom_call.1} parent=11 // pred_check
          %p506 = pneg %p118
        $region22: #{tpu_custom_call.1} parent=11 // pred_check_branch
          %508 = sbr.rel (%p506) target = $region24
        $region23: #{tpu_custom_call.1} parent=11 // pred_region
          _
        $region24: #{tpu_custom_call.1} parent=11 // pred_fallthru
          _
        // Predicated region
        $region25: #{tpu_custom_call.1} parent=11 // pred_check
          %p509 = pneg %p139
        $region26: #{tpu_custom_call.1} parent=11 // pred_check_branch
          %511 = sbr.rel (%p509) target = $region28
        $region27: #{tpu_custom_call.1} parent=11 // pred_region
          _
        $region28: #{tpu_custom_call.1} parent=11 // pred_fallthru
          _
        // Predicated region
        $region29: #{tpu_custom_call.1} parent=11 // pred_check
          %p512 = pneg %p160
        $region30: #{tpu_custom_call.1} parent=11 // pred_check_branch
          %514 = sbr.rel (%p512) target = $region32
        $region31: #{tpu_custom_call.1} parent=11 // pred_region
          _
        $region32: #{tpu_custom_call.1} parent=11 // pred_fallthru
          _
        // Predicated region
        $region33: #{tpu_custom_call.1} parent=11 // pred_check
          %p515 = pneg %p181
        $region34: #{tpu_custom_call.1} parent=11 // pred_check_branch
          %517 = sbr.rel (%p515) target = $region36
        $region35: #{tpu_custom_call.1} parent=11 // pred_region
          _
        $region36: #{tpu_custom_call.1} parent=11 // pred_fallthru
          _
        // Predicated region
        $region37: #{tpu_custom_call.1} parent=11 // pred_check
          %p518 = pneg %p202
        $region38: #{tpu_custom_call.1} parent=11 // pred_check_branch
          %520 = sbr.rel (%p518) target = $region40
        $region39: #{tpu_custom_call.1} parent=11 // pred_region
          _
        $region40: #{tpu_custom_call.1} parent=11 // pred_fallthru
          _
        // Predicated region
        $region41: #{tpu_custom_call.1} parent=11 // pred_check
          %p521 = pneg %p223
        $region42: #{tpu_custom_call.1} parent=11 // pred_check_branch
          %523 = sbr.rel (%p521) target = $region44
        $region43: #{tpu_custom_call.1} parent=11 // pred_region
          _
        $region44: #{tpu_custom_call.1} parent=11 // pred_fallthru
          _
        // Predicated region
        $region45: #{tpu_custom_call.1} parent=11 // pred_check
          %p524 = pneg %p244
        $region46: #{tpu_custom_call.1} parent=11 // pred_check_branch
          %526 = sbr.rel (%p524) target = $region48
        $region47: #{tpu_custom_call.1} parent=11 // pred_region
          _
        $region48: #{tpu_custom_call.1} parent=11 // pred_fallthru
          _
        // Predicated region
        $region49: #{tpu_custom_call.1} parent=11 // pred_check
          %p527 = pneg %p265
        $region50: #{tpu_custom_call.1} parent=11 // pred_check_branch
          %529 = sbr.rel (%p527) target = $region52
        $region51: #{tpu_custom_call.1} parent=11 // pred_region
          _
        $region52: #{tpu_custom_call.1} parent=11 // pred_fallthru
          _
        // Predicated region
        $region53: #{tpu_custom_call.1} parent=11 // pred_check
          %p530 = pneg %p286
        $region54: #{tpu_custom_call.1} parent=11 // pred_check_branch
          %532 = sbr.rel (%p530) target = $region56
        $region55: #{tpu_custom_call.1} parent=11 // pred_region
          _
        $region56: #{tpu_custom_call.1} parent=11 // pred_fallthru
          _
        // Predicated region
        $region57: #{tpu_custom_call.1} parent=11 // pred_check
          %p533 = pneg %p307
        $region58: #{tpu_custom_call.1} parent=11 // pred_check_branch
          %535 = sbr.rel (%p533) target = $region60
        $region59: #{tpu_custom_call.1} parent=11 // pred_region
          _
        $region60: #{tpu_custom_call.1} parent=11 // pred_fallthru
          _
        // Predicated region
        $region61: #{tpu_custom_call.1} parent=11 // pred_check
          %p536 = pneg %p328
        $region62: #{tpu_custom_call.1} parent=11 // pred_check_branch
          %538 = sbr.rel (%p536) target = $region64
        $region63: #{tpu_custom_call.1} parent=11 // pred_region
          _
        $region64: #{tpu_custom_call.1} parent=11 // pred_fallthru
          _
        // Predicated region
        $region65: #{tpu_custom_call.1} parent=11 // pred_check
          %p539 = pneg %p349
        $region66: #{tpu_custom_call.1} parent=11 // pred_check_branch
          %541 = sbr.rel (%p539) target = $region68
        $region67: #{tpu_custom_call.1} parent=11 // pred_region
          _
        $region68: #{tpu_custom_call.1} parent=11 // pred_fallthru
          _
        // Predicated region
        $region69: #{tpu_custom_call.1} parent=11 // pred_check
          %p542 = pneg %p370
        $region70: #{tpu_custom_call.1} parent=11 // pred_check_branch
          %544 = sbr.rel (%p542) target = $region72
        $region71: #{tpu_custom_call.1} parent=11 // pred_region
          _
        $region72: #{tpu_custom_call.1} parent=11 // pred_fallthru
          _
        // Predicated region
        $region73: #{tpu_custom_call.1} parent=11 // pred_check
          %p545 = pneg %p391
        $region74: #{tpu_custom_call.1} parent=11 // pred_check_branch
          %547 = sbr.rel (%p545) target = $region76
        $region75: #{tpu_custom_call.1} parent=11 // pred_region
          _
        $region76: #{tpu_custom_call.1} parent=11 // pred_fallthru
          _
        // Predicated region
        $region77: #{tpu_custom_call.1} parent=11 // pred_check
          %p548 = pneg %p412
        $region78: #{tpu_custom_call.1} parent=11 // pred_check_branch
          %550 = sbr.rel (%p548) target = $region80
        $region79: #{tpu_custom_call.1} parent=11 // pred_region
          _
        $region80: #{tpu_custom_call.1} parent=11 // pred_fallthru
          _
        // Predicated region
        $region81: #{tpu_custom_call.1} parent=11 // pred_check
          %p551 = pneg %p433
        $region82: #{tpu_custom_call.1} parent=11 // pred_check_branch
          %553 = sbr.rel (%p551) target = $region84
        $region83: #{tpu_custom_call.1} parent=11 // pred_region
          _
        $region84: #{tpu_custom_call.1} parent=11 // pred_fallthru
          _
      $region12: #{tpu_custom_call.1} parent=5 // pred_fallthru
        _
      %p554 = scmp.lt.s32.totalorder %s29, 2
      // Predicated region
      $region85: #{tpu_custom_call.1} parent=5 // pred_check
        %p555 = pneg %p554
      $region86: #{tpu_custom_call.1} parent=5 // pred_check_branch
        %557 = sbr.rel (%p555) target = $region88
      $region87: #{tpu_custom_call.1} parent=5 // pred_region
        // Predicated region
        $region89: #{tpu_custom_call.1} parent=87 // pred_check
          %p558 = pneg %p49
        $region90: #{tpu_custom_call.1} parent=87 // pred_check_branch
          %560 = sbr.rel (%p558) target = $region92
        $region91: #{tpu_custom_call.1} parent=87 // pred_region
          %p561 = scmp.lt.s32.totalorder %s29, 1
          %s562 = scalar_select %p561, %s29, 1
          %s563 = smul.addr %s562, 2
          %s564 = smul.addr %s563, 8
          %s565 = scalar_lea.vmem %s0, %s564
        $region92: #{tpu_custom_call.1} parent=87 // pred_fallthru
          _
        // Predicated region
        $region93: #{tpu_custom_call.1} parent=87 // pred_check
          %p566 = pneg %p453
        $region94: #{tpu_custom_call.1} parent=87 // pred_check_branch
          %568 = sbr.rel (%p566) target = $region96
        $region95: #{tpu_custom_call.1} parent=87 // pred_region
          %p569 = scmp.lt.s32.totalorder %s29, 1
          %s570 = scalar_select %p569, %s29, 1
          %s571 = scalar_lea.vmem %s19, %s570
        $region96: #{tpu_custom_call.1} parent=87 // pred_fallthru
          _
      $region88: #{tpu_custom_call.1} parent=5 // pred_fallthru
        _
      %p572 = scmp.le.s32.totalorder 1, %s29
      %p573 = scmp.lt.s32.totalorder %s29, 3
      %p574 = pnand %p572, %p573
      %p575 = pneg %p574
      // Predicated region
      $region97: #{tpu_custom_call.1} parent=5 // pred_check
        _
      $region98: #{tpu_custom_call.1} parent=5 // pred_check_branch
        %577 = sbr.rel (%p574) target = $region100
      $region99: #{tpu_custom_call.1} parent=5 // pred_region
        %s578 = ssub.s32 %s29, 1
        %p579 = scmp.lt.s32.totalorder %s34, 1
        %s580 = scalar_select %p579, %s34, 1
        %s581 = smul.addr %s580, 2
        %s582 = smul.addr %s581, 8
        %s583 = scalar_lea.vmem %s0, %s582
        %p584 = pneg %p55
        %p585 = pneg %p52
        %p586 = pneg %p76
        %p587 = pneg %p73
        %p588 = pneg %p97
        %p589 = pneg %p94
        %p590 = pneg %p118
        %p591 = pneg %p115
        %p592 = pneg %p139
        %p593 = pneg %p136
        %p594 = pneg %p160
        %p595 = pneg %p157
        %p596 = pneg %p181
        %p597 = pneg %p178
        %p598 = pneg %p202
        %p599 = pneg %p199
        %p600 = pneg %p223
        %p601 = pneg %p220
        %p602 = pneg %p244
        %p603 = pneg %p241
        %p604 = pneg %p265
        %p605 = pneg %p262
        %p606 = pneg %p286
        %p607 = pneg %p283
        %p608 = pneg %p307
        %p609 = pneg %p304
        %p610 = pneg %p328
        %p611 = pneg %p325
        %p612 = pneg %p349
        %p613 = pneg %p346
        %p614 = pneg %p370
        %p615 = pneg %p367
        %p616 = pneg %p391
        %p617 = pneg %p388
        %p618 = pneg %p412
        %p619 = pneg %p409
        %p620 = pneg %p433
        %p621 = pneg %p430
        %p622 = scmp.lt.s32.totalorder %s34, 1
        %s623 = scalar_select %p622, %s34, 1
        %s624 = scalar_lea.vmem %s19, %s623
        %p625 = pneg %p459
        %p626 = pneg %p456
        %p627 = pneg %p485
        %p628 = pneg %p482
        %s629 = sand.u32 %s472, 1
        %s630 = scalar_lea.sflag [#allocation3], %s629
        %s631 = sand.u32 %s472, 1
        %s632 = scalar_lea.vmem [#allocation2], %s631
        %p633 = scmp.lt.s32.totalorder %s34, 1
        %s634 = scalar_select %p633, %s34, 1
        %s635 = smul.addr %s634, 2
        %s636 = smul.addr %s635, 8
        %s637 = scalar_lea.vmem %s0, %s636
        %p638 = scmp.lt.s32.totalorder %s34, 1
        %s639 = scalar_select %p638, %s34, 1
        %s640 = scalar_lea.vmem %s19, %s639
        %v641 = vld [vmem:[%s637] sm:$0x1f]
        %v642 = vld [vmem:[%s637 + $0x8] sm:$0x1f]
        %v643 = vld [vmem:[%s1] sm:$0xff]
        %v644 = vld [vmem:[%s1 + $0x8] sm:$0xff]
        %v645 = vld [vmem:[%s1 + $0x10] sm:$0xff]
        %v646 = vld [vmem:[%s1 + $0x18] sm:$0xff]
        %v647 = vld [vmem:[%s1 + $0x20] sm:$0xff]
        %v648 = vld [vmem:[%s1 + $0x28] sm:$0xff]
        %v649 = vld [vmem:[%s1 + $0x30] sm:$0xff]
        %v650 = vld [vmem:[%s1 + $0x38] sm:$0xff]
        %v651 = vld [vmem:[%s1 + $0x40] sm:$0xff]
        %v652 = vld [vmem:[%s1 + $0x48] sm:$0xff]
        %v653 = vld [vmem:[%s1 + $0x50] sm:$0xff]
        %v654 = vld [vmem:[%s1 + $0x58] sm:$0xff]
        %v655 = vld [vmem:[%s1 + $0x60] sm:$0xff]
        %v656 = vld [vmem:[%s1 + $0x68] sm:$0xff]
        %v657 = vld [vmem:[%s1 + $0x70] sm:$0xff]
        %v658 = vld [vmem:[%s1 + $0x78] sm:$0xff]
        %v659 = vld [vmem:[%s1 + $0x80] sm:$0xff]
        %v660 = vld [vmem:[%s1 + $0x88] sm:$0xff]
        %v661 = vld [vmem:[%s1 + $0x90] sm:$0xff]
        %v662 = vld [vmem:[%s1 + $0x98] sm:$0xff]
        %v663 = vld [vmem:[%s1 + $0xa0] sm:$0xff]
        %v664 = vld [vmem:[%s1 + $0xa8] sm:$0xff]
        %v665 = vld [vmem:[%s1 + $0xb0] sm:$0xff]
        %v666 = vld [vmem:[%s1 + $0xb8] sm:$0xff]
        %v667 = vld [vmem:[%s2] sm:$0x1f]
        %vm668 = vcmask 523264
        %v670 = vsel %vm668, %v642, 0
        %672 = vmatprep.subr.mxu0 0.0
        %673 = vmatpush1.msra.mxu0 %v658
        %674 = vmatprep.subr.mxu0 0.0
        %675 = vmatpush1.msra.mxu0 %v657
        %676 = vmatprep.subr.mxu0 0.0
        %677 = vmatpush1.msra.mxu0 %v656
        %678 = vmatprep.subr.mxu0 0.0
        %679 = vmatpush1.msra.mxu0 %v655
        %680 = vmatprep.subr.mxu0 0.0
        %681 = vmatpush1.msra.mxu0 %v654
        %682 = vmatprep.subr.mxu0 0.0
        %683 = vmatpush1.msra.mxu0 %v653
        %684 = vmatprep.subr.mxu0 0.0
        %685 = vmatpush1.msra.mxu0 %v652
        %686 = vmatprep.subr.mxu0 0.0
        %687 = vmatpush1.msra.mxu0 %v651
        %688 = vmatprep.subr.mxu0 0.0
        %689 = vmatpush1.msra.mxu0 %v650
        %690 = vmatprep.subr.mxu0 0.0
        %691 = vmatpush1.msra.mxu0 %v649
        %692 = vmatprep.subr.mxu0 0.0
        %693 = vmatpush1.msra.mxu0 %v648
        %694 = vmatprep.subr.mxu0 0.0
        %695 = vmatpush1.msra.mxu0 %v647
        %696 = vmatprep.subr.mxu0 0.0
        %697 = vmatpush1.msra.mxu0 %v646
        %698 = vmatprep.subr.mxu0 0.0
        %699 = vmatpush1.msra.mxu0 %v645
        %700 = vmatprep.subr.mxu0 0.0
        %701 = vmatpush1.msra.mxu0 %v644
        %702 = vmatprep.subr.mxu0 0.0
        %703 = vmatpush1.msra.mxu0 %v643
        %704 = vmatprep.subr.mxu0 0.0
        %705 = vmatpush2.msra.mxu0 0.0
        %706 = vmatprep.subr.mxu0 0.0
        %707 = vmatpush2.msra.mxu0 0.0
        %708 = vmatprep.subr.mxu0 0.0
        %709 = vmatpush2.msra.mxu0 0.0
        %710 = vmatprep.subr.mxu0 0.0
        %711 = vmatpush2.msra.mxu0 0.0
        %712 = vmatprep.subr.mxu0 0.0
        %713 = vmatpush2.msra.mxu0 0.0
        %714 = vmatprep.subr.mxu0 0.0
        %715 = vmatpush2.msra.mxu0 0.0
        %716 = vmatprep.subr.mxu0 0.0
        %717 = vmatpush2.msra.mxu0 0.0
        %718 = vmatprep.subr.mxu0 0.0
        %719 = vmatpush2.msra.mxu0 0.0
        %720 = vmatprep.subr.mxu0 0.0
        %721 = vmatpush2.msra.mxu0 %v666
        %722 = vmatprep.subr.mxu0 0.0
        %723 = vmatpush2.msra.mxu0 %v665
        %724 = vmatprep.subr.mxu0 0.0
        %725 = vmatpush2.msra.mxu0 %v664
        %726 = vmatprep.subr.mxu0 0.0
        %727 = vmatpush2.msra.mxu0 %v663
        %728 = vmatprep.subr.mxu0 0.0
        %729 = vmatpush2.msra.mxu0 %v662
        %730 = vmatprep.subr.mxu0 0.0
        %731 = vmatpush2.msra.mxu0 %v661
        %732 = vmatprep.subr.mxu0 0.0
        %733 = vmatpush2.msra.mxu0 %v660
        %734 = vmatprep.subr.mxu0 0.0
        %735 = vmatpush2.msra.mxu0 %v659
        %736 = vmatprep.mubr.f32.mxu0 %v670
        %737 = vmatmul.mubr.f32.gmra.mxu0 %v641
        %v738 = vpop.f32.mrf.mxu0
        %v739 = vadd.f32 %v667, %v738
        %v740 = vpop.f32.mrf.mxu0
        %741 = vdwg.mxu0
        %v742 = vld [vmem:[%s3] sm:$0x1]
        %v743 = vld [vmem:[%s4] sm:$0x1]
        %vm744 = vcmask 258048
        %v745 = vsel %vm744, %v739, 0.0
        %746 = vadd.xlane.f32.xlu0 %v745
        %v747 = vpop.xlane.xlu0 %746
        %v748 = vrcp.pop 32.0
        %v749 = vmul.f32 %v747, %v748
        %v750 = vsub.f32 %v739, %v749
        %v751 = vmul.f32 %v750, %v750
        %v752 = vsel %vm744, %v751, 0.0
        %753 = vadd.xlane.f32.xlu0 %v752
        %v754 = vpop.xlane.xlu0 %753
        %v755 = vmul.f32 %v754, %v748
        %v756 = vadd.f32 %v755, 1e-12
        %v757 = vrsqrt.pop %v756
        %v758 = vmul.f32 %v750, %v757
        %v760 = vlaneseq
        %v761 = vshrl.u32 %v760, 7
        %v762 = vsub.s32 0, %v761
        %v763 = vrot.slane %v742, %v762
        %v765 = vmul.f32 %v758, %v763
        %v767 = vlaneseq
        %v768 = vshrl.u32 %v767, 7
        %v769 = vsub.s32 0, %v768
        %v770 = vrot.slane %v743, %v769
        %v772 = vadd.f32 %v765, %v770
        %v773 = vld [vmem:[%s5] sm:$0xff]
        %v774 = vld [vmem:[%s5 + $0x8] sm:$0xff]
        %v775 = vld [vmem:[%s5 + $0x10] sm:$0xff]
        %v776 = vld [vmem:[%s5 + $0x18] sm:$0xff]
        %v777 = vld [vmem:[%s6] sm:$0x1]
        %v779 = vlaneseq
        %v780 = vshrl.u32 %v779, 7
        %v781 = vsub.s32 0, %v780
        %v782 = vrot.slane %v777, %v781
        %vm784 = vcmask 261120
        %v786 = vsel %vm784, %v772, 0
        %788 = vmatprep.subr.mxu0 0.0
        %789 = vmatpush1.msra.mxu0 0.0
        %790 = vmatprep.subr.mxu0 0.0
        %791 = vmatpush1.msra.mxu0 0.0
        %792 = vmatprep.subr.mxu0 0.0
        %793 = vmatpush1.msra.mxu0 0.0
        %794 = vmatprep.subr.mxu0 0.0
        %795 = vmatpush1.msra.mxu0 0.0
        %796 = vmatprep.subr.mxu0 0.0
        %797 = vmatpush1.msra.mxu0 0.0
        %798 = vmatprep.subr.mxu0 0.0
        %799 = vmatpush1.msra.mxu0 0.0
        %800 = vmatprep.subr.mxu0 0.0
        %801 = vmatpush1.msra.mxu0 0.0
        %802 = vmatprep.subr.mxu0 0.0
        %803 = vmatpush1.msra.mxu0 0.0
        %804 = vmatprep.subr.mxu0 0.0
        %805 = vmatpush1.msra.mxu0 0.0
        %806 = vmatprep.subr.mxu0 0.0
        %807 = vmatpush1.msra.mxu0 0.0
        %808 = vmatprep.subr.mxu0 0.0
        %809 = vmatpush1.msra.mxu0 0.0
        %810 = vmatprep.subr.mxu0 0.0
        %811 = vmatpush1.msra.mxu0 0.0
        %812 = vmatprep.subr.mxu0 0.0
        %813 = vmatpush1.msra.mxu0 %v776
        %814 = vmatprep.subr.mxu0 0.0
        %815 = vmatpush1.msra.mxu0 %v775
        %816 = vmatprep.subr.mxu0 0.0
        %817 = vmatpush1.msra.mxu0 %v774
        %818 = vmatprep.subr.mxu0 0.0
        %819 = vmatpush1.msra.mxu0 %v773
        %820 = vmatprep.subr.mxu0 0.0
        %821 = vmatpush2.msra.mxu0 0.0
        %822 = vmatprep.subr.mxu0 0.0
        %823 = vmatpush2.msra.mxu0 0.0
        %824 = vmatprep.subr.mxu0 0.0
        %825 = vmatpush2.msra.mxu0 0.0
        %826 = vmatprep.subr.mxu0 0.0
        %827 = vmatpush2.msra.mxu0 0.0
        %828 = vmatprep.subr.mxu0 0.0
        %829 = vmatpush2.msra.mxu0 0.0
        %830 = vmatprep.subr.mxu0 0.0
        %831 = vmatpush2.msra.mxu0 0.0
        %832 = vmatprep.subr.mxu0 0.0
        %833 = vmatpush2.msra.mxu0 0.0
        %834 = vmatprep.subr.mxu0 0.0
        %835 = vmatpush2.msra.mxu0 0.0
        %836 = vmatprep.subr.mxu0 0.0
        %837 = vmatpush2.msra.mxu0 0.0
        %838 = vmatprep.subr.mxu0 0.0
        %839 = vmatpush2.msra.mxu0 0.0
        %840 = vmatprep.subr.mxu0 0.0
        %841 = vmatpush2.msra.mxu0 0.0
        %842 = vmatprep.subr.mxu0 0.0
        %843 = vmatpush2.msra.mxu0 0.0
        %844 = vmatprep.subr.mxu0 0.0
        %845 = vmatpush2.msra.mxu0 0.0
        %846 = vmatprep.subr.mxu0 0.0
        %847 = vmatpush2.msra.mxu0 0.0
        %848 = vmatprep.subr.mxu0 0.0
        %849 = vmatpush2.msra.mxu0 0.0
        %850 = vmatprep.subr.mxu0 0.0
        %851 = vmatpush2.msra.mxu0 0.0
        %852 = vmatprep.mubr.f32.mxu0 0.0
        %853 = vmatmul.mubr.f32.gmra.mxu0 %v786
        %v854 = vpop.f32.mrf.mxu0
        %v855 = vadd.f32 %v782, %v854
        %v856 = vpop.f32.mrf.mxu0
        %857 = vdwg.mxu0
        %v858 = vld [vmem:[%s7] sm:$0xff]
        %v859 = vld [vmem:[%s7 + $0x8] sm:$0xff]
        %v860 = vld [vmem:[%s7 + $0x10] sm:$0xff]
        %v861 = vld [vmem:[%s7 + $0x18] sm:$0xff]
        %863 = vrot.lane.b32.xlu0 %v855, 96
        %v864 = vpop.permute.xlu0 %863
        %vm865 = vcmask 64512
        %v866 = vsel %vm865, %v855, 0
        %v868 = vsel %vm865, %v864, 0
        %870 = vmatprep.subr.mxu0 0.0
        %871 = vmatpush1.xpose.msra.mxu0 0.0
        %872 = vmatprep.subr.mxu0 0.0
        %873 = vmatpush1.xpose.msra.mxu0 0.0
        %874 = vmatprep.subr.mxu0 0.0
        %875 = vmatpush1.xpose.msra.mxu0 0.0
        %876 = vmatprep.subr.mxu0 0.0
        %877 = vmatpush1.xpose.msra.mxu0 0.0
        %878 = vmatprep.subr.mxu0 0.0
        %879 = vmatpush1.xpose.msra.mxu0 0.0
        %880 = vmatprep.subr.mxu0 0.0
        %881 = vmatpush1.xpose.msra.mxu0 0.0
        %882 = vmatprep.subr.mxu0 0.0
        %883 = vmatpush1.xpose.msra.mxu0 0.0
        %884 = vmatprep.subr.mxu0 0.0
        %885 = vmatpush1.xpose.msra.mxu0 0.0
        %886 = vmatprep.subr.mxu0 0.0
        %887 = vmatpush1.xpose.msra.mxu0 0.0
        %888 = vmatprep.subr.mxu0 0.0
        %889 = vmatpush1.xpose.msra.mxu0 0.0
        %890 = vmatprep.subr.mxu0 0.0
        %891 = vmatpush1.xpose.msra.mxu0 0.0
        %892 = vmatprep.subr.mxu0 0.0
        %893 = vmatpush1.xpose.msra.mxu0 0.0
        %894 = vmatprep.subr.mxu0 0.0
        %895 = vmatpush1.xpose.msra.mxu0 0.0
        %896 = vmatprep.subr.mxu0 0.0
        %897 = vmatpush1.xpose.msra.mxu0 0.0
        %898 = vmatprep.subr.mxu0 0.0
        %899 = vmatpush1.xpose.msra.mxu0 0.0
        %900 = vmatprep.subr.mxu0 0.0
        %901 = vmatpush1.xpose.msra.mxu0 %v868
        %902 = vmatprep.subr.mxu0 0.0
        %903 = vmatpush2.xpose.msra.mxu0 0.0
        %904 = vmatprep.subr.mxu0 0.0
        %905 = vmatpush2.xpose.msra.mxu0 0.0
        %906 = vmatprep.subr.mxu0 0.0
        %907 = vmatpush2.xpose.msra.mxu0 0.0
        %908 = vmatprep.subr.mxu0 0.0
        %909 = vmatpush2.xpose.msra.mxu0 0.0
        %910 = vmatprep.subr.mxu0 0.0
        %911 = vmatpush2.xpose.msra.mxu0 0.0
        %912 = vmatprep.subr.mxu0 0.0
        %913 = vmatpush2.xpose.msra.mxu0 0.0
        %914 = vmatprep.subr.mxu0 0.0
        %915 = vmatpush2.xpose.msra.mxu0 0.0
        %916 = vmatprep.subr.mxu0 0.0
        %917 = vmatpush2.xpose.msra.mxu0 0.0
        %918 = vmatprep.subr.mxu0 0.0
        %919 = vmatpush2.xpose.msra.mxu0 0.0
        %920 = vmatprep.subr.mxu0 0.0
        %921 = vmatpush2.xpose.msra.mxu0 0.0
        %922 = vmatprep.subr.mxu0 0.0
        %923 = vmatpush2.xpose.msra.mxu0 0.0
        %924 = vmatprep.subr.mxu0 0.0
        %925 = vmatpush2.xpose.msra.mxu0 0.0
        %926 = vmatprep.subr.mxu0 0.0
        %927 = vmatpush2.xpose.msra.mxu0 0.0
        %928 = vmatprep.subr.mxu0 0.0
        %929 = vmatpush2.xpose.msra.mxu0 0.0
        %930 = vmatprep.subr.mxu0 0.0
        %931 = vmatpush2.xpose.msra.mxu0 0.0
        %932 = vmatprep.subr.mxu0 0.0
        %933 = vmatpush2.xpose.msra.mxu0 0.0
        %934 = vmatprep.mubr.f32.mxu0 0.0
        %935 = vmatmul.mubr.f32.gmra.mxu0 %v866
        %v936 = vpop.f32.mrf.mxu0
        %v937 = vadd.f32 0.0, %v936
        %v938 = vpop.f32.mrf.mxu0
        %939 = vdwg.mxu0
        %v940 = vmul.f32 %v937, 0.35355338
        %vm941 = vcmask 36864
        %v942 = vsel %vm941, %v940, -inf
        %943 = vmax.xlane.f32.xlu0 %v942
        %v944 = vpop.xlane.xlu0 %943
        %v945 = vsub.f32 %v940, %v944
        %v946 = vmul.f32 %v945, 1.442695
        %v947 = vpow.pop %v946
        %v948 = vsel %vm941, %v947, 0.0
        %949 = vadd.xlane.f32.xlu0 %v948
        %v950 = vpop.xlane.xlu0 %949
        %v951 = vrcp.pop %v950
        %v952 = vmul.f32 %v947, %v951
        %953 = vrot.lane.b32.xlu0 %v855, 64
        %v954 = vpop.permute.xlu0 %953
        %vm955 = vcmask 39936
        %v957 = vsel %vm955, %v952, 0
        %vm959 = vcmask 1044480
        %v960 = vsel %vm959, %v954, 0
        %962 = vmatprep.subr.mxu0 0.0
        %963 = vmatpush1.msra.mxu0 0.0
        %964 = vmatprep.subr.mxu0 0.0
        %965 = vmatpush1.msra.mxu0 0.0
        %966 = vmatprep.subr.mxu0 0.0
        %967 = vmatpush1.msra.mxu0 0.0
        %968 = vmatprep.subr.mxu0 0.0
        %969 = vmatpush1.msra.mxu0 0.0
        %970 = vmatprep.subr.mxu0 0.0
        %971 = vmatpush1.msra.mxu0 0.0
        %972 = vmatprep.subr.mxu0 0.0
        %973 = vmatpush1.msra.mxu0 0.0
        %974 = vmatprep.subr.mxu0 0.0
        %975 = vmatpush1.msra.mxu0 0.0
        %976 = vmatprep.subr.mxu0 0.0
        %977 = vmatpush1.msra.mxu0 0.0
        %978 = vmatprep.subr.mxu0 0.0
        %979 = vmatpush1.msra.mxu0 0.0
        %980 = vmatprep.subr.mxu0 0.0
        %981 = vmatpush1.msra.mxu0 0.0
        %982 = vmatprep.subr.mxu0 0.0
        %983 = vmatpush1.msra.mxu0 0.0
        %984 = vmatprep.subr.mxu0 0.0
        %985 = vmatpush1.msra.mxu0 0.0
        %986 = vmatprep.subr.mxu0 0.0
        %987 = vmatpush1.msra.mxu0 0.0
        %988 = vmatprep.subr.mxu0 0.0
        %989 = vmatpush1.msra.mxu0 0.0
        %990 = vmatprep.subr.mxu0 0.0
        %991 = vmatpush1.msra.mxu0 0.0
        %992 = vmatprep.subr.mxu0 0.0
        %993 = vmatpush1.msra.mxu0 %v960
        %994 = vmatprep.subr.mxu0 0.0
        %995 = vmatpush2.msra.mxu0 0.0
        %996 = vmatprep.subr.mxu0 0.0
        %997 = vmatpush2.msra.mxu0 0.0
        %998 = vmatprep.subr.mxu0 0.0
        %999 = vmatpush2.msra.mxu0 0.0
        %1000 = vmatprep.subr.mxu0 0.0
        %1001 = vmatpush2.msra.mxu0 0.0
        %1002 = vmatprep.subr.mxu0 0.0
        %1003 = vmatpush2.msra.mxu0 0.0
        %1004 = vmatprep.subr.mxu0 0.0
        %1005 = vmatpush2.msra.mxu0 0.0
        %1006 = vmatprep.subr.mxu0 0.0
        %1007 = vmatpush2.msra.mxu0 0.0
        %1008 = vmatprep.subr.mxu0 0.0
        %1009 = vmatpush2.msra.mxu0 0.0
        %1010 = vmatprep.subr.mxu0 0.0
        %1011 = vmatpush2.msra.mxu0 0.0
        %1012 = vmatprep.subr.mxu0 0.0
        %1013 = vmatpush2.msra.mxu0 0.0
        %1014 = vmatprep.subr.mxu0 0.0
        %1015 = vmatpush2.msra.mxu0 0.0
        %1016 = vmatprep.subr.mxu0 0.0
        %1017 = vmatpush2.msra.mxu0 0.0
        %1018 = vmatprep.subr.mxu0 0.0
        %1019 = vmatpush2.msra.mxu0 0.0
        %1020 = vmatprep.subr.mxu0 0.0
        %1021 = vmatpush2.msra.mxu0 0.0
        %1022 = vmatprep.subr.mxu0 0.0
        %1023 = vmatpush2.msra.mxu0 0.0
        %1024 = vmatprep.subr.mxu0 0.0
        %1025 = vmatpush2.msra.mxu0 0.0
        %1026 = vmatprep.mubr.f32.mxu0 0.0
        %1027 = vmatmul.mubr.f32.gmra.mxu0 %v957
        %v1028 = vpop.f32.mrf.mxu0
        %v1029 = vadd.f32 0.0, %v1028
        %v1030 = vpop.f32.mrf.mxu0
        %1031 = vdwg.mxu0
        %1032 = vrot.lane.b32.xlu0 %v855, 120
        %v1033 = vpop.permute.xlu0 %1032
        %1034 = vrot.lane.b32.xlu0 %v855, 88
        %v1035 = vpop.permute.xlu0 %1034
        %v1036 = vsel %vm865, %v1033, 0
        %v1038 = vsel %vm865, %v1035, 0
        %1040 = vmatprep.subr.mxu0 0.0
        %1041 = vmatpush1.xpose.msra.mxu0 0.0
        %1042 = vmatprep.subr.mxu0 0.0
        %1043 = vmatpush1.xpose.msra.mxu0 0.0
        %1044 = vmatprep.subr.mxu0 0.0
        %1045 = vmatpush1.xpose.msra.mxu0 0.0
        %1046 = vmatprep.subr.mxu0 0.0
        %1047 = vmatpush1.xpose.msra.mxu0 0.0
        %1048 = vmatprep.subr.mxu0 0.0
        %1049 = vmatpush1.xpose.msra.mxu0 0.0
        %1050 = vmatprep.subr.mxu0 0.0
        %1051 = vmatpush1.xpose.msra.mxu0 0.0
        %1052 = vmatprep.subr.mxu0 0.0
        %1053 = vmatpush1.xpose.msra.mxu0 0.0
        %1054 = vmatprep.subr.mxu0 0.0
        %1055 = vmatpush1.xpose.msra.mxu0 0.0
        %1056 = vmatprep.subr.mxu0 0.0
        %1057 = vmatpush1.xpose.msra.mxu0 0.0
        %1058 = vmatprep.subr.mxu0 0.0
        %1059 = vmatpush1.xpose.msra.mxu0 0.0
        %1060 = vmatprep.subr.mxu0 0.0
        %1061 = vmatpush1.xpose.msra.mxu0 0.0
        %1062 = vmatprep.subr.mxu0 0.0
        %1063 = vmatpush1.xpose.msra.mxu0 0.0
        %1064 = vmatprep.subr.mxu0 0.0
        %1065 = vmatpush1.xpose.msra.mxu0 0.0
        %1066 = vmatprep.subr.mxu0 0.0
        %1067 = vmatpush1.xpose.msra.mxu0 0.0
        %1068 = vmatprep.subr.mxu0 0.0
        %1069 = vmatpush1.xpose.msra.mxu0 0.0
        %1070 = vmatprep.subr.mxu0 0.0
        %1071 = vmatpush1.xpose.msra.mxu0 %v1038
        %1072 = vmatprep.subr.mxu0 0.0
        %1073 = vmatpush2.xpose.msra.mxu0 0.0
        %1074 = vmatprep.subr.mxu0 0.0
        %1075 = vmatpush2.xpose.msra.mxu0 0.0
        %1076 = vmatprep.subr.mxu0 0.0
        %1077 = vmatpush2.xpose.msra.mxu0 0.0
        %1078 = vmatprep.subr.mxu0 0.0
        %1079 = vmatpush2.xpose.msra.mxu0 0.0
        %1080 = vmatprep.subr.mxu0 0.0
        %1081 = vmatpush2.xpose.msra.mxu0 0.0
        %1082 = vmatprep.subr.mxu0 0.0
        %1083 = vmatpush2.xpose.msra.mxu0 0.0
        %1084 = vmatprep.subr.mxu0 0.0
        %1085 = vmatpush2.xpose.msra.mxu0 0.0
        %1086 = vmatprep.subr.mxu0 0.0
        %1087 = vmatpush2.xpose.msra.mxu0 0.0
        %1088 = vmatprep.subr.mxu0 0.0
        %1089 = vmatpush2.xpose.msra.mxu0 0.0
        %1090 = vmatprep.subr.mxu0 0.0
        %1091 = vmatpush2.xpose.msra.mxu0 0.0
        %1092 = vmatprep.subr.mxu0 0.0
        %1093 = vmatpush2.xpose.msra.mxu0 0.0
        %1094 = vmatprep.subr.mxu0 0.0
        %1095 = vmatpush2.xpose.msra.mxu0 0.0
        %1096 = vmatprep.subr.mxu0 0.0
        %1097 = vmatpush2.xpose.msra.mxu0 0.0
        %1098 = vmatprep.subr.mxu0 0.0
        %1099 = vmatpush2.xpose.msra.mxu0 0.0
        %1100 = vmatprep.subr.mxu0 0.0
        %1101 = vmatpush2.xpose.msra.mxu0 0.0
        %1102 = vmatprep.subr.mxu0 0.0
        %1103 = vmatpush2.xpose.msra.mxu0 0.0
        %1104 = vmatprep.mubr.f32.mxu0 0.0
        %1105 = vmatmul.mubr.f32.gmra.mxu0 %v1036
        %v1106 = vpop.f32.mrf.mxu0
        %v1107 = vadd.f32 0.0, %v1106
        %v1108 = vpop.f32.mrf.mxu0
        %1109 = vdwg.mxu0
        %v1110 = vmul.f32 %v1107, 0.35355338
        %v1111 = vsel %vm941, %v1110, -inf
        %1112 = vmax.xlane.f32.xlu0 %v1111
        %v1113 = vpop.xlane.xlu0 %1112
        %v1114 = vsub.f32 %v1110, %v1113
        %v1115 = vmul.f32 %v1114, 1.442695
        %v1116 = vpow.pop %v1115
        %v1117 = vsel %vm941, %v1116, 0.0
        %1118 = vadd.xlane.f32.xlu0 %v1117
        %v1119 = vpop.xlane.xlu0 %1118
        %v1120 = vrcp.pop %v1119
        %v1121 = vmul.f32 %v1116, %v1120
        %1122 = vrot.lane.b32.xlu0 %v855, 56
        %v1123 = vpop.permute.xlu0 %1122
        %v1125 = vsel %vm955, %v1121, 0
        %v1127 = vsel %vm959, %v1123, 0
        %1129 = vmatprep.subr.mxu0 0.0
        %1130 = vmatpush1.msra.mxu0 0.0
        %1131 = vmatprep.subr.mxu0 0.0
        %1132 = vmatpush1.msra.mxu0 0.0
        %1133 = vmatprep.subr.mxu0 0.0
        %1134 = vmatpush1.msra.mxu0 0.0
        %1135 = vmatprep.subr.mxu0 0.0
        %1136 = vmatpush1.msra.mxu0 0.0
        %1137 = vmatprep.subr.mxu0 0.0
        %1138 = vmatpush1.msra.mxu0 0.0
        %1139 = vmatprep.subr.mxu0 0.0
        %1140 = vmatpush1.msra.mxu0 0.0
        %1141 = vmatprep.subr.mxu0 0.0
        %1142 = vmatpush1.msra.mxu0 0.0
        %1143 = vmatprep.subr.mxu0 0.0
        %1144 = vmatpush1.msra.mxu0 0.0
        %1145 = vmatprep.subr.mxu0 0.0
        %1146 = vmatpush1.msra.mxu0 0.0
        %1147 = vmatprep.subr.mxu0 0.0
        %1148 = vmatpush1.msra.mxu0 0.0
        %1149 = vmatprep.subr.mxu0 0.0
        %1150 = vmatpush1.msra.mxu0 0.0
        %1151 = vmatprep.subr.mxu0 0.0
        %1152 = vmatpush1.msra.mxu0 0.0
        %1153 = vmatprep.subr.mxu0 0.0
        %1154 = vmatpush1.msra.mxu0 0.0
        %1155 = vmatprep.subr.mxu0 0.0
        %1156 = vmatpush1.msra.mxu0 0.0
        %1157 = vmatprep.subr.mxu0 0.0
        %1158 = vmatpush1.msra.mxu0 0.0
        %1159 = vmatprep.subr.mxu0 0.0
        %1160 = vmatpush1.msra.mxu0 %v1127
        %1161 = vmatprep.subr.mxu0 0.0
        %1162 = vmatpush2.msra.mxu0 0.0
        %1163 = vmatprep.subr.mxu0 0.0
        %1164 = vmatpush2.msra.mxu0 0.0
        %1165 = vmatprep.subr.mxu0 0.0
        %1166 = vmatpush2.msra.mxu0 0.0
        %1167 = vmatprep.subr.mxu0 0.0
        %1168 = vmatpush2.msra.mxu0 0.0
        %1169 = vmatprep.subr.mxu0 0.0
        %1170 = vmatpush2.msra.mxu0 0.0
        %1171 = vmatprep.subr.mxu0 0.0
        %1172 = vmatpush2.msra.mxu0 0.0
        %1173 = vmatprep.subr.mxu0 0.0
        %1174 = vmatpush2.msra.mxu0 0.0
        %1175 = vmatprep.subr.mxu0 0.0
        %1176 = vmatpush2.msra.mxu0 0.0
        %1177 = vmatprep.subr.mxu0 0.0
        %1178 = vmatpush2.msra.mxu0 0.0
        %1179 = vmatprep.subr.mxu0 0.0
        %1180 = vmatpush2.msra.mxu0 0.0
        %1181 = vmatprep.subr.mxu0 0.0
        %1182 = vmatpush2.msra.mxu0 0.0
        %1183 = vmatprep.subr.mxu0 0.0
        %1184 = vmatpush2.msra.mxu0 0.0
        %1185 = vmatprep.subr.mxu0 0.0
        %1186 = vmatpush2.msra.mxu0 0.0
        %1187 = vmatprep.subr.mxu0 0.0
        %1188 = vmatpush2.msra.mxu0 0.0
        %1189 = vmatprep.subr.mxu0 0.0
        %1190 = vmatpush2.msra.mxu0 0.0
        %1191 = vmatprep.subr.mxu0 0.0
        %1192 = vmatpush2.msra.mxu0 0.0
        %1193 = vmatprep.mubr.f32.mxu0 0.0
        %1194 = vmatmul.mubr.f32.gmra.mxu0 %v1125
        %v1195 = vpop.f32.mrf.mxu0
        %v1196 = vadd.f32 0.0, %v1195
        %v1197 = vpop.f32.mrf.mxu0
        %1198 = vdwg.mxu0
        %v1200 = vsel %vm865, %v1196, 0
        %1202 = vmatprep.subr.mxu0 0.0
        %1203 = vmatpush1.msra.mxu0 0.0
        %1204 = vmatprep.subr.mxu0 0.0
        %1205 = vmatpush1.msra.mxu0 0.0
        %1206 = vmatprep.subr.mxu0 0.0
        %1207 = vmatpush1.msra.mxu0 0.0
        %1208 = vmatprep.subr.mxu0 0.0
        %1209 = vmatpush1.msra.mxu0 0.0
        %1210 = vmatprep.subr.mxu0 0.0
        %1211 = vmatpush1.msra.mxu0 0.0
        %1212 = vmatprep.subr.mxu0 0.0
        %1213 = vmatpush1.msra.mxu0 0.0
        %1214 = vmatprep.subr.mxu0 0.0
        %1215 = vmatpush1.msra.mxu0 0.0
        %1216 = vmatprep.subr.mxu0 0.0
        %1217 = vmatpush1.msra.mxu0 0.0
        %1218 = vmatprep.subr.mxu0 0.0
        %1219 = vmatpush1.msra.mxu0 0.0
        %1220 = vmatprep.subr.mxu0 0.0
        %1221 = vmatpush1.msra.mxu0 0.0
        %1222 = vmatprep.subr.mxu0 0.0
        %1223 = vmatpush1.msra.mxu0 0.0
        %1224 = vmatprep.subr.mxu0 0.0
        %1225 = vmatpush1.msra.mxu0 0.0
        %1226 = vmatprep.subr.mxu0 0.0
        %1227 = vmatpush1.msra.mxu0 0.0
        %1228 = vmatprep.subr.mxu0 0.0
        %1229 = vmatpush1.msra.mxu0 0.0
        %1230 = vmatprep.subr.mxu0 0.0
        %1231 = vmatpush1.msra.mxu0 0.0
        %1232 = vmatprep.subr.mxu0 0.0
        %1233 = vmatpush1.msra.mxu0 %v859
        %1234 = vmatprep.subr.mxu0 0.0
        %1235 = vmatpush2.msra.mxu0 0.0
        %1236 = vmatprep.subr.mxu0 0.0
        %1237 = vmatpush2.msra.mxu0 0.0
        %1238 = vmatprep.subr.mxu0 0.0
        %1239 = vmatpush2.msra.mxu0 0.0
        %1240 = vmatprep.subr.mxu0 0.0
        %1241 = vmatpush2.msra.mxu0 0.0
        %1242 = vmatprep.subr.mxu0 0.0
        %1243 = vmatpush2.msra.mxu0 0.0
        %1244 = vmatprep.subr.mxu0 0.0
        %1245 = vmatpush2.msra.mxu0 0.0
        %1246 = vmatprep.subr.mxu0 0.0
        %1247 = vmatpush2.msra.mxu0 0.0
        %1248 = vmatprep.subr.mxu0 0.0
        %1249 = vmatpush2.msra.mxu0 0.0
        %1250 = vmatprep.subr.mxu0 0.0
        %1251 = vmatpush2.msra.mxu0 0.0
        %1252 = vmatprep.subr.mxu0 0.0
        %1253 = vmatpush2.msra.mxu0 0.0
        %1254 = vmatprep.subr.mxu0 0.0
        %1255 = vmatpush2.msra.mxu0 0.0
        %1256 = vmatprep.subr.mxu0 0.0
        %1257 = vmatpush2.msra.mxu0 0.0
        %1258 = vmatprep.subr.mxu0 0.0
        %1259 = vmatpush2.msra.mxu0 0.0
        %1260 = vmatprep.subr.mxu0 0.0
        %1261 = vmatpush2.msra.mxu0 0.0
        %1262 = vmatprep.subr.mxu0 0.0
        %1263 = vmatpush2.msra.mxu0 0.0
        %1264 = vmatprep.subr.mxu0 0.0
        %1265 = vmatpush2.msra.mxu0 0.0
        %1266 = vmatprep.mubr.f32.mxu0 0.0
        %1267 = vmatmul.mubr.f32.gmra.mxu0 %v1200
        %v1268 = vpop.f32.mrf.mxu0
        %v1269 = vadd.f32 0.0, %v1268
        %v1270 = vpop.f32.mrf.mxu0
        %1271 = vdwg.mxu0
        %v1273 = vsel %vm865, %v1029, 0
        %1275 = vmatprep.subr.mxu0 0.0
        %1276 = vmatpush1.msra.mxu0 0.0
        %1277 = vmatprep.subr.mxu0 0.0
        %1278 = vmatpush1.msra.mxu0 0.0
        %1279 = vmatprep.subr.mxu0 0.0
        %1280 = vmatpush1.msra.mxu0 0.0
        %1281 = vmatprep.subr.mxu0 0.0
        %1282 = vmatpush1.msra.mxu0 0.0
        %1283 = vmatprep.subr.mxu0 0.0
        %1284 = vmatpush1.msra.mxu0 0.0
        %1285 = vmatprep.subr.mxu0 0.0
        %1286 = vmatpush1.msra.mxu0 0.0
        %1287 = vmatprep.subr.mxu0 0.0
        %1288 = vmatpush1.msra.mxu0 0.0
        %1289 = vmatprep.subr.mxu0 0.0
        %1290 = vmatpush1.msra.mxu0 0.0
        %1291 = vmatprep.subr.mxu0 0.0
        %1292 = vmatpush1.msra.mxu0 0.0
        %1293 = vmatprep.subr.mxu0 0.0
        %1294 = vmatpush1.msra.mxu0 0.0
        %1295 = vmatprep.subr.mxu0 0.0
        %1296 = vmatpush1.msra.mxu0 0.0
        %1297 = vmatprep.subr.mxu0 0.0
        %1298 = vmatpush1.msra.mxu0 0.0
        %1299 = vmatprep.subr.mxu0 0.0
        %1300 = vmatpush1.msra.mxu0 0.0
        %1301 = vmatprep.subr.mxu0 0.0
        %1302 = vmatpush1.msra.mxu0 0.0
        %1303 = vmatprep.subr.mxu0 0.0
        %1304 = vmatpush1.msra.mxu0 0.0
        %1305 = vmatprep.subr.mxu0 0.0
        %1306 = vmatpush1.msra.mxu0 %v858
        %1307 = vmatprep.subr.mxu0 0.0
        %1308 = vmatpush2.msra.mxu0 0.0
        %1309 = vmatprep.subr.mxu0 0.0
        %1310 = vmatpush2.msra.mxu0 0.0
        %1311 = vmatprep.subr.mxu0 0.0
        %1312 = vmatpush2.msra.mxu0 0.0
        %1313 = vmatprep.subr.mxu0 0.0
        %1314 = vmatpush2.msra.mxu0 0.0
        %1315 = vmatprep.subr.mxu0 0.0
        %1316 = vmatpush2.msra.mxu0 0.0
        %1317 = vmatprep.subr.mxu0 0.0
        %1318 = vmatpush2.msra.mxu0 0.0
        %1319 = vmatprep.subr.mxu0 0.0
        %1320 = vmatpush2.msra.mxu0 0.0
        %1321 = vmatprep.subr.mxu0 0.0
        %1322 = vmatpush2.msra.mxu0 0.0
        %1323 = vmatprep.subr.mxu0 0.0
        %1324 = vmatpush2.msra.mxu0 0.0
        %1325 = vmatprep.subr.mxu0 0.0
        %1326 = vmatpush2.msra.mxu0 0.0
        %1327 = vmatprep.subr.mxu0 0.0
        %1328 = vmatpush2.msra.mxu0 0.0
        %1329 = vmatprep.subr.mxu0 0.0
        %1330 = vmatpush2.msra.mxu0 0.0
        %1331 = vmatprep.subr.mxu0 0.0
        %1332 = vmatpush2.msra.mxu0 0.0
        %1333 = vmatprep.subr.mxu0 0.0
        %1334 = vmatpush2.msra.mxu0 0.0
        %1335 = vmatprep.subr.mxu0 0.0
        %1336 = vmatpush2.msra.mxu0 0.0
        %1337 = vmatprep.subr.mxu0 0.0
        %1338 = vmatpush2.msra.mxu0 0.0
        %1339 = vmatprep.mubr.f32.mxu0 0.0
        %1340 = vmatmul.mubr.f32.gmra.mxu0 %v1273
        %v1341 = vpop.f32.mrf.mxu0
        %v1342 = vadd.f32 %v1269, %v1341
        %v1343 = vpop.f32.mrf.mxu0
        %1344 = vdwg.mxu0
        %1345 = vrot.lane.b32.xlu0 %v855, 112
        %v1346 = vpop.permute.xlu0 %1345
        %1347 = vrot.lane.b32.xlu0 %v855, 80
        %v1348 = vpop.permute.xlu0 %1347
        %v1349 = vsel %vm865, %v1346, 0
        %v1351 = vsel %vm865, %v1348, 0
        %1353 = vmatprep.subr.mxu0 0.0
        %1354 = vmatpush1.xpose.msra.mxu0 0.0
        %1355 = vmatprep.subr.mxu0 0.0
        %1356 = vmatpush1.xpose.msra.mxu0 0.0
        %1357 = vmatprep.subr.mxu0 0.0
        %1358 = vmatpush1.xpose.msra.mxu0 0.0
        %1359 = vmatprep.subr.mxu0 0.0
        %1360 = vmatpush1.xpose.msra.mxu0 0.0
        %1361 = vmatprep.subr.mxu0 0.0
        %1362 = vmatpush1.xpose.msra.mxu0 0.0
        %1363 = vmatprep.subr.mxu0 0.0
        %1364 = vmatpush1.xpose.msra.mxu0 0.0
        %1365 = vmatprep.subr.mxu0 0.0
        %1366 = vmatpush1.xpose.msra.mxu0 0.0
        %1367 = vmatprep.subr.mxu0 0.0
        %1368 = vmatpush1.xpose.msra.mxu0 0.0
        %1369 = vmatprep.subr.mxu0 0.0
        %1370 = vmatpush1.xpose.msra.mxu0 0.0
        %1371 = vmatprep.subr.mxu0 0.0
        %1372 = vmatpush1.xpose.msra.mxu0 0.0
        %1373 = vmatprep.subr.mxu0 0.0
        %1374 = vmatpush1.xpose.msra.mxu0 0.0
        %1375 = vmatprep.subr.mxu0 0.0
        %1376 = vmatpush1.xpose.msra.mxu0 0.0
        %1377 = vmatprep.subr.mxu0 0.0
        %1378 = vmatpush1.xpose.msra.mxu0 0.0
        %1379 = vmatprep.subr.mxu0 0.0
        %1380 = vmatpush1.xpose.msra.mxu0 0.0
        %1381 = vmatprep.subr.mxu0 0.0
        %1382 = vmatpush1.xpose.msra.mxu0 0.0
        %1383 = vmatprep.subr.mxu0 0.0
        %1384 = vmatpush1.xpose.msra.mxu0 %v1351
        %1385 = vmatprep.subr.mxu0 0.0
        %1386 = vmatpush2.xpose.msra.mxu0 0.0
        %1387 = vmatprep.subr.mxu0 0.0
        %1388 = vmatpush2.xpose.msra.mxu0 0.0
        %1389 = vmatprep.subr.mxu0 0.0
        %1390 = vmatpush2.xpose.msra.mxu0 0.0
        %1391 = vmatprep.subr.mxu0 0.0
        %1392 = vmatpush2.xpose.msra.mxu0 0.0
        %1393 = vmatprep.subr.mxu0 0.0
        %1394 = vmatpush2.xpose.msra.mxu0 0.0
        %1395 = vmatprep.subr.mxu0 0.0
        %1396 = vmatpush2.xpose.msra.mxu0 0.0
        %1397 = vmatprep.subr.mxu0 0.0
        %1398 = vmatpush2.xpose.msra.mxu0 0.0
        %1399 = vmatprep.subr.mxu0 0.0
        %1400 = vmatpush2.xpose.msra.mxu0 0.0
        %1401 = vmatprep.subr.mxu0 0.0
        %1402 = vmatpush2.xpose.msra.mxu0 0.0
        %1403 = vmatprep.subr.mxu0 0.0
        %1404 = vmatpush2.xpose.msra.mxu0 0.0
        %1405 = vmatprep.subr.mxu0 0.0
        %1406 = vmatpush2.xpose.msra.mxu0 0.0
        %1407 = vmatprep.subr.mxu0 0.0
        %1408 = vmatpush2.xpose.msra.mxu0 0.0
        %1409 = vmatprep.subr.mxu0 0.0
        %1410 = vmatpush2.xpose.msra.mxu0 0.0
        %1411 = vmatprep.subr.mxu0 0.0
        %1412 = vmatpush2.xpose.msra.mxu0 0.0
        %1413 = vmatprep.subr.mxu0 0.0
        %1414 = vmatpush2.xpose.msra.mxu0 0.0
        %1415 = vmatprep.subr.mxu0 0.0
        %1416 = vmatpush2.xpose.msra.mxu0 0.0
        %1417 = vmatprep.mubr.f32.mxu0 0.0
        %1418 = vmatmul.mubr.f32.gmra.mxu0 %v1349
        %v1419 = vpop.f32.mrf.mxu0
        %v1420 = vadd.f32 0.0, %v1419
        %v1421 = vpop.f32.mrf.mxu0
        %1422 = vdwg.mxu0
        %v1423 = vmul.f32 %v1420, 0.35355338
        %v1424 = vsel %vm941, %v1423, -inf
        %1425 = vmax.xlane.f32.xlu0 %v1424
        %v1426 = vpop.xlane.xlu0 %1425
        %v1427 = vsub.f32 %v1423, %v1426
        %v1428 = vmul.f32 %v1427, 1.442695
        %v1429 = vpow.pop %v1428
        %v1430 = vsel %vm941, %v1429, 0.0
        %1431 = vadd.xlane.f32.xlu0 %v1430
        %v1432 = vpop.xlane.xlu0 %1431
        %v1433 = vrcp.pop %v1432
        %v1434 = vmul.f32 %v1429, %v1433
        %1435 = vrot.lane.b32.xlu0 %v855, 48
        %v1436 = vpop.permute.xlu0 %1435
        %v1438 = vsel %vm955, %v1434, 0
        %v1440 = vsel %vm959, %v1436, 0
        %1442 = vmatprep.subr.mxu0 0.0
        %1443 = vmatpush1.msra.mxu0 0.0
        %1444 = vmatprep.subr.mxu0 0.0
        %1445 = vmatpush1.msra.mxu0 0.0
        %1446 = vmatprep.subr.mxu0 0.0
        %1447 = vmatpush1.msra.mxu0 0.0
        %1448 = vmatprep.subr.mxu0 0.0
        %1449 = vmatpush1.msra.mxu0 0.0
        %1450 = vmatprep.subr.mxu0 0.0
        %1451 = vmatpush1.msra.mxu0 0.0
        %1452 = vmatprep.subr.mxu0 0.0
        %1453 = vmatpush1.msra.mxu0 0.0
        %1454 = vmatprep.subr.mxu0 0.0
        %1455 = vmatpush1.msra.mxu0 0.0
        %1456 = vmatprep.subr.mxu0 0.0
        %1457 = vmatpush1.msra.mxu0 0.0
        %1458 = vmatprep.subr.mxu0 0.0
        %1459 = vmatpush1.msra.mxu0 0.0
        %1460 = vmatprep.subr.mxu0 0.0
        %1461 = vmatpush1.msra.mxu0 0.0
        %1462 = vmatprep.subr.mxu0 0.0
        %1463 = vmatpush1.msra.mxu0 0.0
        %1464 = vmatprep.subr.mxu0 0.0
        %1465 = vmatpush1.msra.mxu0 0.0
        %1466 = vmatprep.subr.mxu0 0.0
        %1467 = vmatpush1.msra.mxu0 0.0
        %1468 = vmatprep.subr.mxu0 0.0
        %1469 = vmatpush1.msra.mxu0 0.0
        %1470 = vmatprep.subr.mxu0 0.0
        %1471 = vmatpush1.msra.mxu0 0.0
        %1472 = vmatprep.subr.mxu0 0.0
        %1473 = vmatpush1.msra.mxu0 %v1440
        %1474 = vmatprep.subr.mxu0 0.0
        %1475 = vmatpush2.msra.mxu0 0.0
        %1476 = vmatprep.subr.mxu0 0.0
        %1477 = vmatpush2.msra.mxu0 0.0
        %1478 = vmatprep.subr.mxu0 0.0
        %1479 = vmatpush2.msra.mxu0 0.0
        %1480 = vmatprep.subr.mxu0 0.0
        %1481 = vmatpush2.msra.mxu0 0.0
        %1482 = vmatprep.subr.mxu0 0.0
        %1483 = vmatpush2.msra.mxu0 0.0
        %1484 = vmatprep.subr.mxu0 0.0
        %1485 = vmatpush2.msra.mxu0 0.0
        %1486 = vmatprep.subr.mxu0 0.0
        %1487 = vmatpush2.msra.mxu0 0.0
        %1488 = vmatprep.subr.mxu0 0.0
        %1489 = vmatpush2.msra.mxu0 0.0
        %1490 = vmatprep.subr.mxu0 0.0
        %1491 = vmatpush2.msra.mxu0 0.0
        %1492 = vmatprep.subr.mxu0 0.0
        %1493 = vmatpush2.msra.mxu0 0.0
        %1494 = vmatprep.subr.mxu0 0.0
        %1495 = vmatpush2.msra.mxu0 0.0
        %1496 = vmatprep.subr.mxu0 0.0
        %1497 = vmatpush2.msra.mxu0 0.0
        %1498 = vmatprep.subr.mxu0 0.0
        %1499 = vmatpush2.msra.mxu0 0.0
        %1500 = vmatprep.subr.mxu0 0.0
        %1501 = vmatpush2.msra.mxu0 0.0
        %1502 = vmatprep.subr.mxu0 0.0
        %1503 = vmatpush2.msra.mxu0 0.0
        %1504 = vmatprep.subr.mxu0 0.0
        %1505 = vmatpush2.msra.mxu0 0.0
        %1506 = vmatprep.mubr.f32.mxu0 0.0
        %1507 = vmatmul.mubr.f32.gmra.mxu0 %v1438
        %v1508 = vpop.f32.mrf.mxu0
        %v1509 = vadd.f32 0.0, %v1508
        %v1510 = vpop.f32.mrf.mxu0
        %1511 = vdwg.mxu0
        %v1513 = vsel %vm865, %v1509, 0
        %1515 = vmatprep.subr.mxu0 0.0
        %1516 = vmatpush1.msra.mxu0 0.0
        %1517 = vmatprep.subr.mxu0 0.0
        %1518 = vmatpush1.msra.mxu0 0.0
        %1519 = vmatprep.subr.mxu0 0.0
        %1520 = vmatpush1.msra.mxu0 0.0
        %1521 = vmatprep.subr.mxu0 0.0
        %1522 = vmatpush1.msra.mxu0 0.0
        %1523 = vmatprep.subr.mxu0 0.0
        %1524 = vmatpush1.msra.mxu0 0.0
        %1525 = vmatprep.subr.mxu0 0.0
        %1526 = vmatpush1.msra.mxu0 0.0
        %1527 = vmatprep.subr.mxu0 0.0
        %1528 = vmatpush1.msra.mxu0 0.0
        %1529 = vmatprep.subr.mxu0 0.0
        %1530 = vmatpush1.msra.mxu0 0.0
        %1531 = vmatprep.subr.mxu0 0.0
        %1532 = vmatpush1.msra.mxu0 0.0
        %1533 = vmatprep.subr.mxu0 0.0
        %1534 = vmatpush1.msra.mxu0 0.0
        %1535 = vmatprep.subr.mxu0 0.0
        %1536 = vmatpush1.msra.mxu0 0.0
        %1537 = vmatprep.subr.mxu0 0.0
        %1538 = vmatpush1.msra.mxu0 0.0
        %1539 = vmatprep.subr.mxu0 0.0
        %1540 = vmatpush1.msra.mxu0 0.0
        %1541 = vmatprep.subr.mxu0 0.0
        %1542 = vmatpush1.msra.mxu0 0.0
        %1543 = vmatprep.subr.mxu0 0.0
        %1544 = vmatpush1.msra.mxu0 0.0
        %1545 = vmatprep.subr.mxu0 0.0
        %1546 = vmatpush1.msra.mxu0 %v860
        %1547 = vmatprep.subr.mxu0 0.0
        %1548 = vmatpush2.msra.mxu0 0.0
        %1549 = vmatprep.subr.mxu0 0.0
        %1550 = vmatpush2.msra.mxu0 0.0
        %1551 = vmatprep.subr.mxu0 0.0
        %1552 = vmatpush2.msra.mxu0 0.0
        %1553 = vmatprep.subr.mxu0 0.0
        %1554 = vmatpush2.msra.mxu0 0.0
        %1555 = vmatprep.subr.mxu0 0.0
        %1556 = vmatpush2.msra.mxu0 0.0
        %1557 = vmatprep.subr.mxu0 0.0
        %1558 = vmatpush2.msra.mxu0 0.0
        %1559 = vmatprep.subr.mxu0 0.0
        %1560 = vmatpush2.msra.mxu0 0.0
        %1561 = vmatprep.subr.mxu0 0.0
        %1562 = vmatpush2.msra.mxu0 0.0
        %1563 = vmatprep.subr.mxu0 0.0
        %1564 = vmatpush2.msra.mxu0 0.0
        %1565 = vmatprep.subr.mxu0 0.0
        %1566 = vmatpush2.msra.mxu0 0.0
        %1567 = vmatprep.subr.mxu0 0.0
        %1568 = vmatpush2.msra.mxu0 0.0
        %1569 = vmatprep.subr.mxu0 0.0
        %1570 = vmatpush2.msra.mxu0 0.0
        %1571 = vmatprep.subr.mxu0 0.0
        %1572 = vmatpush2.msra.mxu0 0.0
        %1573 = vmatprep.subr.mxu0 0.0
        %1574 = vmatpush2.msra.mxu0 0.0
        %1575 = vmatprep.subr.mxu0 0.0
        %1576 = vmatpush2.msra.mxu0 0.0
        %1577 = vmatprep.subr.mxu0 0.0
        %1578 = vmatpush2.msra.mxu0 0.0
        %1579 = vmatprep.mubr.f32.mxu0 0.0
        %1580 = vmatmul.mubr.f32.gmra.mxu0 %v1513
        %v1581 = vpop.f32.mrf.mxu0
        %v1582 = vadd.f32 0.0, %v1581
        %v1583 = vpop.f32.mrf.mxu0
        %1584 = vdwg.mxu0
        %v1585 = vadd.f32 %v1342, %v1582
        %1586 = vrot.lane.b32.xlu0 %v855, 104
        %v1587 = vpop.permute.xlu0 %1586
        %1588 = vrot.lane.b32.xlu0 %v855, 72
        %v1589 = vpop.permute.xlu0 %1588
        %v1590 = vsel %vm865, %v1587, 0
        %v1592 = vsel %vm865, %v1589, 0
        %1594 = vmatprep.subr.mxu0 0.0
        %1595 = vmatpush1.xpose.msra.mxu0 0.0
        %1596 = vmatprep.subr.mxu0 0.0
        %1597 = vmatpush1.xpose.msra.mxu0 0.0
        %1598 = vmatprep.subr.mxu0 0.0
        %1599 = vmatpush1.xpose.msra.mxu0 0.0
        %1600 = vmatprep.subr.mxu0 0.0
        %1601 = vmatpush1.xpose.msra.mxu0 0.0
        %1602 = vmatprep.subr.mxu0 0.0
        %1603 = vmatpush1.xpose.msra.mxu0 0.0
        %1604 = vmatprep.subr.mxu0 0.0
        %1605 = vmatpush1.xpose.msra.mxu0 0.0
        %1606 = vmatprep.subr.mxu0 0.0
        %1607 = vmatpush1.xpose.msra.mxu0 0.0
        %1608 = vmatprep.subr.mxu0 0.0
        %1609 = vmatpush1.xpose.msra.mxu0 0.0
        %1610 = vmatprep.subr.mxu0 0.0
        %1611 = vmatpush1.xpose.msra.mxu0 0.0
        %1612 = vmatprep.subr.mxu0 0.0
        %1613 = vmatpush1.xpose.msra.mxu0 0.0
        %1614 = vmatprep.subr.mxu0 0.0
        %1615 = vmatpush1.xpose.msra.mxu0 0.0
        %1616 = vmatprep.subr.mxu0 0.0
        %1617 = vmatpush1.xpose.msra.mxu0 0.0
        %1618 = vmatprep.subr.mxu0 0.0
        %1619 = vmatpush1.xpose.msra.mxu0 0.0
        %1620 = vmatprep.subr.mxu0 0.0
        %1621 = vmatpush1.xpose.msra.mxu0 0.0
        %1622 = vmatprep.subr.mxu0 0.0
        %1623 = vmatpush1.xpose.msra.mxu0 0.0
        %1624 = vmatprep.subr.mxu0 0.0
        %1625 = vmatpush1.xpose.msra.mxu0 %v1592
        %1626 = vmatprep.subr.mxu0 0.0
        %1627 = vmatpush2.xpose.msra.mxu0 0.0
        %1628 = vmatprep.subr.mxu0 0.0
        %1629 = vmatpush2.xpose.msra.mxu0 0.0
        %1630 = vmatprep.subr.mxu0 0.0
        %1631 = vmatpush2.xpose.msra.mxu0 0.0
        %1632 = vmatprep.subr.mxu0 0.0
        %1633 = vmatpush2.xpose.msra.mxu0 0.0
        %1634 = vmatprep.subr.mxu0 0.0
        %1635 = vmatpush2.xpose.msra.mxu0 0.0
        %1636 = vmatprep.subr.mxu0 0.0
        %1637 = vmatpush2.xpose.msra.mxu0 0.0
        %1638 = vmatprep.subr.mxu0 0.0
        %1639 = vmatpush2.xpose.msra.mxu0 0.0
        %1640 = vmatprep.subr.mxu0 0.0
        %1641 = vmatpush2.xpose.msra.mxu0 0.0
        %1642 = vmatprep.subr.mxu0 0.0
        %1643 = vmatpush2.xpose.msra.mxu0 0.0
        %1644 = vmatprep.subr.mxu0 0.0
        %1645 = vmatpush2.xpose.msra.mxu0 0.0
        %1646 = vmatprep.subr.mxu0 0.0
        %1647 = vmatpush2.xpose.msra.mxu0 0.0
        %1648 = vmatprep.subr.mxu0 0.0
        %1649 = vmatpush2.xpose.msra.mxu0 0.0
        %1650 = vmatprep.subr.mxu0 0.0
        %1651 = vmatpush2.xpose.msra.mxu0 0.0
        %1652 = vmatprep.subr.mxu0 0.0
        %1653 = vmatpush2.xpose.msra.mxu0 0.0
        %1654 = vmatprep.subr.mxu0 0.0
        %1655 = vmatpush2.xpose.msra.mxu0 0.0
        %1656 = vmatprep.subr.mxu0 0.0
        %1657 = vmatpush2.xpose.msra.mxu0 0.0
        %1658 = vmatprep.mubr.f32.mxu0 0.0
        %1659 = vmatmul.mubr.f32.gmra.mxu0 %v1590
        %v1660 = vpop.f32.mrf.mxu0
        %v1661 = vadd.f32 0.0, %v1660
        %v1662 = vpop.f32.mrf.mxu0
        %1663 = vdwg.mxu0
        %v1664 = vmul.f32 %v1661, 0.35355338
        %v1665 = vsel %vm941, %v1664, -inf
        %1666 = vmax.xlane.f32.xlu0 %v1665
        %v1667 = vpop.xlane.xlu0 %1666
        %v1668 = vsub.f32 %v1664, %v1667
        %v1669 = vmul.f32 %v1668, 1.442695
        %v1670 = vpow.pop %v1669
        %v1671 = vsel %vm941, %v1670, 0.0
        %1672 = vadd.xlane.f32.xlu0 %v1671
        %v1673 = vpop.xlane.xlu0 %1672
        %v1674 = vrcp.pop %v1673
        %v1675 = vmul.f32 %v1670, %v1674
        %1676 = vrot.lane.b32.xlu0 %v855, 40
        %v1677 = vpop.permute.xlu0 %1676
        %v1679 = vsel %vm955, %v1675, 0
        %v1681 = vsel %vm959, %v1677, 0
        %1683 = vmatprep.subr.mxu0 0.0
        %1684 = vmatpush1.msra.mxu0 0.0
        %1685 = vmatprep.subr.mxu0 0.0
        %1686 = vmatpush1.msra.mxu0 0.0
        %1687 = vmatprep.subr.mxu0 0.0
        %1688 = vmatpush1.msra.mxu0 0.0
        %1689 = vmatprep.subr.mxu0 0.0
        %1690 = vmatpush1.msra.mxu0 0.0
        %1691 = vmatprep.subr.mxu0 0.0
        %1692 = vmatpush1.msra.mxu0 0.0
        %1693 = vmatprep.subr.mxu0 0.0
        %1694 = vmatpush1.msra.mxu0 0.0
        %1695 = vmatprep.subr.mxu0 0.0
        %1696 = vmatpush1.msra.mxu0 0.0
        %1697 = vmatprep.subr.mxu0 0.0
        %1698 = vmatpush1.msra.mxu0 0.0
        %1699 = vmatprep.subr.mxu0 0.0
        %1700 = vmatpush1.msra.mxu0 0.0
        %1701 = vmatprep.subr.mxu0 0.0
        %1702 = vmatpush1.msra.mxu0 0.0
        %1703 = vmatprep.subr.mxu0 0.0
        %1704 = vmatpush1.msra.mxu0 0.0
        %1705 = vmatprep.subr.mxu0 0.0
        %1706 = vmatpush1.msra.mxu0 0.0
        %1707 = vmatprep.subr.mxu0 0.0
        %1708 = vmatpush1.msra.mxu0 0.0
        %1709 = vmatprep.subr.mxu0 0.0
        %1710 = vmatpush1.msra.mxu0 0.0
        %1711 = vmatprep.subr.mxu0 0.0
        %1712 = vmatpush1.msra.mxu0 0.0
        %1713 = vmatprep.subr.mxu0 0.0
        %1714 = vmatpush1.msra.mxu0 %v1681
        %1715 = vmatprep.subr.mxu0 0.0
        %1716 = vmatpush2.msra.mxu0 0.0
        %1717 = vmatprep.subr.mxu0 0.0
        %1718 = vmatpush2.msra.mxu0 0.0
        %1719 = vmatprep.subr.mxu0 0.0
        %1720 = vmatpush2.msra.mxu0 0.0
        %1721 = vmatprep.subr.mxu0 0.0
        %1722 = vmatpush2.msra.mxu0 0.0
        %1723 = vmatprep.subr.mxu0 0.0
        %1724 = vmatpush2.msra.mxu0 0.0
        %1725 = vmatprep.subr.mxu0 0.0
        %1726 = vmatpush2.msra.mxu0 0.0
        %1727 = vmatprep.subr.mxu0 0.0
        %1728 = vmatpush2.msra.mxu0 0.0
        %1729 = vmatprep.subr.mxu0 0.0
        %1730 = vmatpush2.msra.mxu0 0.0
        %1731 = vmatprep.subr.mxu0 0.0
        %1732 = vmatpush2.msra.mxu0 0.0
        %1733 = vmatprep.subr.mxu0 0.0
        %1734 = vmatpush2.msra.mxu0 0.0
        %1735 = vmatprep.subr.mxu0 0.0
        %1736 = vmatpush2.msra.mxu0 0.0
        %1737 = vmatprep.subr.mxu0 0.0
        %1738 = vmatpush2.msra.mxu0 0.0
        %1739 = vmatprep.subr.mxu0 0.0
        %1740 = vmatpush2.msra.mxu0 0.0
        %1741 = vmatprep.subr.mxu0 0.0
        %1742 = vmatpush2.msra.mxu0 0.0
        %1743 = vmatprep.subr.mxu0 0.0
        %1744 = vmatpush2.msra.mxu0 0.0
        %1745 = vmatprep.subr.mxu0 0.0
        %1746 = vmatpush2.msra.mxu0 0.0
        %1747 = vmatprep.mubr.f32.mxu0 0.0
        %1748 = vmatmul.mubr.f32.gmra.mxu0 %v1679
        %v1749 = vpop.f32.mrf.mxu0
        %v1750 = vadd.f32 0.0, %v1749
        %v1751 = vpop.f32.mrf.mxu0
        %1752 = vdwg.mxu0
        %v1754 = vsel %vm865, %v1750, 0
        %1756 = vmatprep.subr.mxu0 0.0
        %1757 = vmatpush1.msra.mxu0 0.0
        %1758 = vmatprep.subr.mxu0 0.0
        %1759 = vmatpush1.msra.mxu0 0.0
        %1760 = vmatprep.subr.mxu0 0.0
        %1761 = vmatpush1.msra.mxu0 0.0
        %1762 = vmatprep.subr.mxu0 0.0
        %1763 = vmatpush1.msra.mxu0 0.0
        %1764 = vmatprep.subr.mxu0 0.0
        %1765 = vmatpush1.msra.mxu0 0.0
        %1766 = vmatprep.subr.mxu0 0.0
        %1767 = vmatpush1.msra.mxu0 0.0
        %1768 = vmatprep.subr.mxu0 0.0
        %1769 = vmatpush1.msra.mxu0 0.0
        %1770 = vmatprep.subr.mxu0 0.0
        %1771 = vmatpush1.msra.mxu0 0.0
        %1772 = vmatprep.subr.mxu0 0.0
        %1773 = vmatpush1.msra.mxu0 0.0
        %1774 = vmatprep.subr.mxu0 0.0
        %1775 = vmatpush1.msra.mxu0 0.0
        %1776 = vmatprep.subr.mxu0 0.0
        %1777 = vmatpush1.msra.mxu0 0.0
        %1778 = vmatprep.subr.mxu0 0.0
        %1779 = vmatpush1.msra.mxu0 0.0
        %1780 = vmatprep.subr.mxu0 0.0
        %1781 = vmatpush1.msra.mxu0 0.0
        %1782 = vmatprep.subr.mxu0 0.0
        %1783 = vmatpush1.msra.mxu0 0.0
        %1784 = vmatprep.subr.mxu0 0.0
        %1785 = vmatpush1.msra.mxu0 0.0
        %1786 = vmatprep.subr.mxu0 0.0
        %1787 = vmatpush1.msra.mxu0 %v861
        %1788 = vmatprep.subr.mxu0 0.0
        %1789 = vmatpush2.msra.mxu0 0.0
        %1790 = vmatprep.subr.mxu0 0.0
        %1791 = vmatpush2.msra.mxu0 0.0
        %1792 = vmatprep.subr.mxu0 0.0
        %1793 = vmatpush2.msra.mxu0 0.0
        %1794 = vmatprep.subr.mxu0 0.0
        %1795 = vmatpush2.msra.mxu0 0.0
        %1796 = vmatprep.subr.mxu0 0.0
        %1797 = vmatpush2.msra.mxu0 0.0
        %1798 = vmatprep.subr.mxu0 0.0
        %1799 = vmatpush2.msra.mxu0 0.0
        %1800 = vmatprep.subr.mxu0 0.0
        %1801 = vmatpush2.msra.mxu0 0.0
        %1802 = vmatprep.subr.mxu0 0.0
        %1803 = vmatpush2.msra.mxu0 0.0
        %1804 = vmatprep.subr.mxu0 0.0
        %1805 = vmatpush2.msra.mxu0 0.0
        %1806 = vmatprep.subr.mxu0 0.0
        %1807 = vmatpush2.msra.mxu0 0.0
        %1808 = vmatprep.subr.mxu0 0.0
        %1809 = vmatpush2.msra.mxu0 0.0
        %1810 = vmatprep.subr.mxu0 0.0
        %1811 = vmatpush2.msra.mxu0 0.0
        %1812 = vmatprep.subr.mxu0 0.0
        %1813 = vmatpush2.msra.mxu0 0.0
        %1814 = vmatprep.subr.mxu0 0.0
        %1815 = vmatpush2.msra.mxu0 0.0
        %1816 = vmatprep.subr.mxu0 0.0
        %1817 = vmatpush2.msra.mxu0 0.0
        %1818 = vmatprep.subr.mxu0 0.0
        %1819 = vmatpush2.msra.mxu0 0.0
        %1820 = vmatprep.mubr.f32.mxu0 0.0
        %1821 = vmatmul.mubr.f32.gmra.mxu0 %v1754
        %v1822 = vpop.f32.mrf.mxu0
        %v1823 = vadd.f32 0.0, %v1822
        %v1824 = vpop.f32.mrf.mxu0
        %1825 = vdwg.mxu0
        %v1826 = vadd.f32 %v1585, %v1823
        %v1827 = vadd.f32 %v739, %v1826
        %v1828 = vld [vmem:[%s8] sm:$0x1]
        %v1830 = vlaneseq
        %v1831 = vshrl.u32 %v1830, 7
        %v1832 = vsub.s32 0, %v1831
        %v1833 = vrot.slane %v1828, %v1832
        %v1835 = vadd.f32 %v1827, %v1833
        %v1836 = vld [vmem:[%s9] sm:$0x1]
        %v1837 = vld [vmem:[%s10] sm:$0x1]
        %v1838 = vsel %vm744, %v1835, 0.0
        %1839 = vadd.xlane.f32.xlu0 %v1838
        %v1840 = vpop.xlane.xlu0 %1839
        %v1841 = vmul.f32 %v1840, %v748
        %v1842 = vsub.f32 %v1835, %v1841
        %v1843 = vmul.f32 %v1842, %v1842
        %v1844 = vsel %vm744, %v1843, 0.0
        %1845 = vadd.xlane.f32.xlu0 %v1844
        %v1846 = vpop.xlane.xlu0 %1845
        %v1847 = vmul.f32 %v1846, %v748
        %v1848 = vadd.f32 %v1847, 1e-12
        %v1849 = vrsqrt.pop %v1848
        %v1850 = vmul.f32 %v1842, %v1849
        %v1852 = vlaneseq
        %v1853 = vshrl.u32 %v1852, 7
        %v1854 = vsub.s32 0, %v1853
        %v1855 = vrot.slane %v1836, %v1854
        %v1857 = vmul.f32 %v1850, %v1855
        %v1859 = vlaneseq
        %v1860 = vshrl.u32 %v1859, 7
        %v1861 = vsub.s32 0, %v1860
        %v1862 = vrot.slane %v1837, %v1861
        %v1864 = vadd.f32 %v1857, %v1862
        %v1865 = vld [vmem:[%s11] sm:$0xff]
        %v1866 = vld [vmem:[%s11 + $0x8] sm:$0xff]
        %v1867 = vld [vmem:[%s11 + $0x10] sm:$0xff]
        %v1868 = vld [vmem:[%s11 + $0x18] sm:$0xff]
        %v1869 = vld [vmem:[%s12] sm:$0x1]
        %v1871 = vlaneseq
        %v1872 = vshrl.u32 %v1871, 7
        %v1873 = vsub.s32 0, %v1872
        %v1874 = vrot.slane %v1869, %v1873
        %v1877 = vsel %vm784, %v1864, 0
        %1879 = vmatprep.subr.mxu0 0.0
        %1880 = vmatpush1.msra.mxu0 0.0
        %1881 = vmatprep.subr.mxu0 0.0
        %1882 = vmatpush1.msra.mxu0 0.0
        %1883 = vmatprep.subr.mxu0 0.0
        %1884 = vmatpush1.msra.mxu0 0.0
        %1885 = vmatprep.subr.mxu0 0.0
        %1886 = vmatpush1.msra.mxu0 0.0
        %1887 = vmatprep.subr.mxu0 0.0
        %1888 = vmatpush1.msra.mxu0 0.0
        %1889 = vmatprep.subr.mxu0 0.0
        %1890 = vmatpush1.msra.mxu0 0.0
        %1891 = vmatprep.subr.mxu0 0.0
        %1892 = vmatpush1.msra.mxu0 0.0
        %1893 = vmatprep.subr.mxu0 0.0
        %1894 = vmatpush1.msra.mxu0 0.0
        %1895 = vmatprep.subr.mxu0 0.0
        %1896 = vmatpush1.msra.mxu0 0.0
        %1897 = vmatprep.subr.mxu0 0.0
        %1898 = vmatpush1.msra.mxu0 0.0
        %1899 = vmatprep.subr.mxu0 0.0
        %1900 = vmatpush1.msra.mxu0 0.0
        %1901 = vmatprep.subr.mxu0 0.0
        %1902 = vmatpush1.msra.mxu0 0.0
        %1903 = vmatprep.subr.mxu0 0.0
        %1904 = vmatpush1.msra.mxu0 %v1868
        %1905 = vmatprep.subr.mxu0 0.0
        %1906 = vmatpush1.msra.mxu0 %v1867
        %1907 = vmatprep.subr.mxu0 0.0
        %1908 = vmatpush1.msra.mxu0 %v1866
        %1909 = vmatprep.subr.mxu0 0.0
        %1910 = vmatpush1.msra.mxu0 %v1865
        %1911 = vmatprep.subr.mxu0 0.0
        %1912 = vmatpush2.msra.mxu0 0.0
        %1913 = vmatprep.subr.mxu0 0.0
        %1914 = vmatpush2.msra.mxu0 0.0
        %1915 = vmatprep.subr.mxu0 0.0
        %1916 = vmatpush2.msra.mxu0 0.0
        %1917 = vmatprep.subr.mxu0 0.0
        %1918 = vmatpush2.msra.mxu0 0.0
        %1919 = vmatprep.subr.mxu0 0.0
        %1920 = vmatpush2.msra.mxu0 0.0
        %1921 = vmatprep.subr.mxu0 0.0
        %1922 = vmatpush2.msra.mxu0 0.0
        %1923 = vmatprep.subr.mxu0 0.0
        %1924 = vmatpush2.msra.mxu0 0.0
        %1925 = vmatprep.subr.mxu0 0.0
        %1926 = vmatpush2.msra.mxu0 0.0
        %1927 = vmatprep.subr.mxu0 0.0
        %1928 = vmatpush2.msra.mxu0 0.0
        %1929 = vmatprep.subr.mxu0 0.0
        %1930 = vmatpush2.msra.mxu0 0.0
        %1931 = vmatprep.subr.mxu0 0.0
        %1932 = vmatpush2.msra.mxu0 0.0
        %1933 = vmatprep.subr.mxu0 0.0
        %1934 = vmatpush2.msra.mxu0 0.0
        %1935 = vmatprep.subr.mxu0 0.0
        %1936 = vmatpush2.msra.mxu0 0.0
        %1937 = vmatprep.subr.mxu0 0.0
        %1938 = vmatpush2.msra.mxu0 0.0
        %1939 = vmatprep.subr.mxu0 0.0
        %1940 = vmatpush2.msra.mxu0 0.0
        %1941 = vmatprep.subr.mxu0 0.0
        %1942 = vmatpush2.msra.mxu0 0.0
        %1943 = vmatprep.mubr.f32.mxu0 0.0
        %1944 = vmatmul.mubr.f32.gmra.mxu0 %v1877
        %v1945 = vpop.f32.mrf.mxu0
        %v1946 = vadd.f32 %v1874, %v1945
        %v1947 = vpop.f32.mrf.mxu0
        %1948 = vdwg.mxu0
        %v1949 = vmul.f32 %v1946, 0.5
        %v1950 = vmul.f32 %v1946, 0.70710677
        %vm1951 = vcmp.ge.f32.partialorder %v1950, 0.0
        %v1952 = vsel %vm1951, 1.0, -1.0
        %v1953 = vand.u32 2147483647, %v1950
        %v1954 = vmul.f32 %v1953, 0.3275911
        %v1955 = vadd.f32 %v1954, 1.0
        %v1956 = vrcp.pop %v1955
        %v1957 = vmul.f32 1.0, %v1956
        %v1958 = vmul.f32 %v1957, 1.0614054
        %v1959 = vadd.f32 %v1958, -1.4531521
        %v1960 = vmul.f32 %v1959, %v1957
        %v1961 = vadd.f32 %v1960, 1.4214138
        %v1962 = vmul.f32 %v1961, %v1957
        %v1963 = vadd.f32 %v1962, -0.28449672
        %v1964 = vmul.f32 %v1963, %v1957
        %v1965 = vadd.f32 %v1964, 0.2548296
        %v1966 = vmul.f32 %v1965, %v1957
        %v1967 = vsub.f32 0.0, %v1953
        %v1968 = vmul.f32 %v1967, %v1953
        %v1969 = vmul.f32 %v1968, 1.442695
        %v1970 = vpow.pop %v1969
        %v1971 = vmul.f32 %v1966, %v1970
        %v1972 = vsub.f32 1.0, %v1971
        %v1973 = vmul.f32 %v1952, %v1972
        %v1974 = vadd.f32 %v1973, 1.0
        %v1975 = vmul.f32 %v1949, %v1974
        %v1976 = vld [vmem:[%s13] sm:$0xff]
        %v1977 = vld [vmem:[%s13 + $0x8] sm:$0xff]
        %v1978 = vld [vmem:[%s13 + $0x10] sm:$0xff]
        %v1979 = vld [vmem:[%s13 + $0x18] sm:$0xff]
        %v1980 = vld [vmem:[%s13 + $0x20] sm:$0xff]
        %v1981 = vld [vmem:[%s13 + $0x28] sm:$0xff]
        %v1982 = vld [vmem:[%s13 + $0x30] sm:$0xff]
        %v1983 = vld [vmem:[%s13 + $0x38] sm:$0xff]
        %v1984 = vld [vmem:[%s14] sm:$0x1]
        %v1986 = vlaneseq
        %v1987 = vshrl.u32 %v1986, 7
        %v1988 = vsub.s32 0, %v1987
        %v1989 = vrot.slane %v1984, %v1988
        %v1992 = vsel %vm668, %v1975, 0
        %1994 = vmatprep.subr.mxu0 0.0
        %1995 = vmatpush1.msra.mxu0 0.0
        %1996 = vmatprep.subr.mxu0 0.0
        %1997 = vmatpush1.msra.mxu0 0.0
        %1998 = vmatprep.subr.mxu0 0.0
        %1999 = vmatpush1.msra.mxu0 0.0
        %2000 = vmatprep.subr.mxu0 0.0
        %2001 = vmatpush1.msra.mxu0 0.0
        %2002 = vmatprep.subr.mxu0 0.0
        %2003 = vmatpush1.msra.mxu0 0.0
        %2004 = vmatprep.subr.mxu0 0.0
        %2005 = vmatpush1.msra.mxu0 0.0
        %2006 = vmatprep.subr.mxu0 0.0
        %2007 = vmatpush1.msra.mxu0 0.0
        %2008 = vmatprep.subr.mxu0 0.0
        %2009 = vmatpush1.msra.mxu0 0.0
        %2010 = vmatprep.subr.mxu0 0.0
        %2011 = vmatpush1.msra.mxu0 %v1983
        %2012 = vmatprep.subr.mxu0 0.0
        %2013 = vmatpush1.msra.mxu0 %v1982
        %2014 = vmatprep.subr.mxu0 0.0
        %2015 = vmatpush1.msra.mxu0 %v1981
        %2016 = vmatprep.subr.mxu0 0.0
        %2017 = vmatpush1.msra.mxu0 %v1980
        %2018 = vmatprep.subr.mxu0 0.0
        %2019 = vmatpush1.msra.mxu0 %v1979
        %2020 = vmatprep.subr.mxu0 0.0
        %2021 = vmatpush1.msra.mxu0 %v1978
        %2022 = vmatprep.subr.mxu0 0.0
        %2023 = vmatpush1.msra.mxu0 %v1977
        %2024 = vmatprep.subr.mxu0 0.0
        %2025 = vmatpush1.msra.mxu0 %v1976
        %2026 = vmatprep.subr.mxu0 0.0
        %2027 = vmatpush2.msra.mxu0 0.0
        %2028 = vmatprep.subr.mxu0 0.0
        %2029 = vmatpush2.msra.mxu0 0.0
        %2030 = vmatprep.subr.mxu0 0.0
        %2031 = vmatpush2.msra.mxu0 0.0
        %2032 = vmatprep.subr.mxu0 0.0
        %2033 = vmatpush2.msra.mxu0 0.0
        %2034 = vmatprep.subr.mxu0 0.0
        %2035 = vmatpush2.msra.mxu0 0.0
        %2036 = vmatprep.subr.mxu0 0.0
        %2037 = vmatpush2.msra.mxu0 0.0
        %2038 = vmatprep.subr.mxu0 0.0
        %2039 = vmatpush2.msra.mxu0 0.0
        %2040 = vmatprep.subr.mxu0 0.0
        %2041 = vmatpush2.msra.mxu0 0.0
        %2042 = vmatprep.subr.mxu0 0.0
        %2043 = vmatpush2.msra.mxu0 0.0
        %2044 = vmatprep.subr.mxu0 0.0
        %2045 = vmatpush2.msra.mxu0 0.0
        %2046 = vmatprep.subr.mxu0 0.0
        %2047 = vmatpush2.msra.mxu0 0.0
        %2048 = vmatprep.subr.mxu0 0.0
        %2049 = vmatpush2.msra.mxu0 0.0
        %2050 = vmatprep.subr.mxu0 0.0
        %2051 = vmatpush2.msra.mxu0 0.0
        %2052 = vmatprep.subr.mxu0 0.0
        %2053 = vmatpush2.msra.mxu0 0.0
        %2054 = vmatprep.subr.mxu0 0.0
        %2055 = vmatpush2.msra.mxu0 0.0
        %2056 = vmatprep.subr.mxu0 0.0
        %2057 = vmatpush2.msra.mxu0 0.0
        %2058 = vmatprep.mubr.f32.mxu0 0.0
        %2059 = vmatmul.mubr.f32.gmra.mxu0 %v1992
        %v2060 = vpop.f32.mrf.mxu0
        %v2061 = vadd.f32 %v1989, %v2060
        %v2062 = vpop.f32.mrf.mxu0
        %2063 = vdwg.mxu0
        %v2064 = vadd.f32 %v1835, %v2061
        %s2065 = scalar_lea.vmem %s3, 1
        %v2066 = vld [vmem:[%s2065] sm:$0x1]
        %s2067 = scalar_lea.vmem %s4, 1
        %v2068 = vld [vmem:[%s2067] sm:$0x1]
        %v2069 = vsel %vm744, %v2064, 0.0
        %2070 = vadd.xlane.f32.xlu0 %v2069
        %v2071 = vpop.xlane.xlu0 %2070
        %v2072 = vmul.f32 %v2071, %v748
        %v2073 = vsub.f32 %v2064, %v2072
        %v2074 = vmul.f32 %v2073, %v2073
        %v2075 = vsel %vm744, %v2074, 0.0
        %2076 = vadd.xlane.f32.xlu0 %v2075
        %v2077 = vpop.xlane.xlu0 %2076
        %v2078 = vmul.f32 %v2077, %v748
        %v2079 = vadd.f32 %v2078, 1e-12
        %v2080 = vrsqrt.pop %v2079
        %v2081 = vmul.f32 %v2073, %v2080
        %v2083 = vlaneseq
        %v2084 = vshrl.u32 %v2083, 7
        %v2085 = vsub.s32 0, %v2084
        %v2086 = vrot.slane %v2066, %v2085
        %v2088 = vmul.f32 %v2081, %v2086
        %v2090 = vlaneseq
        %v2091 = vshrl.u32 %v2090, 7
        %v2092 = vsub.s32 0, %v2091
        %v2093 = vrot.slane %v2068, %v2092
        %v2095 = vadd.f32 %v2088, %v2093
        %s2096 = scalar_lea.vmem %s5, 32
        %v2097 = vld [vmem:[%s2096] sm:$0xff]
        %v2098 = vld [vmem:[%s2096 + $0x8] sm:$0xff]
        %v2099 = vld [vmem:[%s2096 + $0x10] sm:$0xff]
        %v2100 = vld [vmem:[%s2096 + $0x18] sm:$0xff]
        %s2101 = scalar_lea.vmem %s6, 1
        %v2102 = vld [vmem:[%s2101] sm:$0x1]
        %v2104 = vlaneseq
        %v2105 = vshrl.u32 %v2104, 7
        %v2106 = vsub.s32 0, %v2105
        %v2107 = vrot.slane %v2102, %v2106
        %v2110 = vsel %vm784, %v2095, 0
        %2112 = vmatprep.subr.mxu0 0.0
        %2113 = vmatpush1.msra.mxu0 0.0
        %2114 = vmatprep.subr.mxu0 0.0
        %2115 = vmatpush1.msra.mxu0 0.0
        %2116 = vmatprep.subr.mxu0 0.0
        %2117 = vmatpush1.msra.mxu0 0.0
        %2118 = vmatprep.subr.mxu0 0.0
        %2119 = vmatpush1.msra.mxu0 0.0
        %2120 = vmatprep.subr.mxu0 0.0
        %2121 = vmatpush1.msra.mxu0 0.0
        %2122 = vmatprep.subr.mxu0 0.0
        %2123 = vmatpush1.msra.mxu0 0.0
        %2124 = vmatprep.subr.mxu0 0.0
        %2125 = vmatpush1.msra.mxu0 0.0
        %2126 = vmatprep.subr.mxu0 0.0
        %2127 = vmatpush1.msra.mxu0 0.0
        %2128 = vmatprep.subr.mxu0 0.0
        %2129 = vmatpush1.msra.mxu0 0.0
        %2130 = vmatprep.subr.mxu0 0.0
        %2131 = vmatpush1.msra.mxu0 0.0
        %2132 = vmatprep.subr.mxu0 0.0
        %2133 = vmatpush1.msra.mxu0 0.0
        %2134 = vmatprep.subr.mxu0 0.0
        %2135 = vmatpush1.msra.mxu0 0.0
        %2136 = vmatprep.subr.mxu0 0.0
        %2137 = vmatpush1.msra.mxu0 %v2100
        %2138 = vmatprep.subr.mxu0 0.0
        %2139 = vmatpush1.msra.mxu0 %v2099
        %2140 = vmatprep.subr.mxu0 0.0
        %2141 = vmatpush1.msra.mxu0 %v2098
        %2142 = vmatprep.subr.mxu0 0.0
        %2143 = vmatpush1.msra.mxu0 %v2097
        %2144 = vmatprep.subr.mxu0 0.0
        %2145 = vmatpush2.msra.mxu0 0.0
        %2146 = vmatprep.subr.mxu0 0.0
        %2147 = vmatpush2.msra.mxu0 0.0
        %2148 = vmatprep.subr.mxu0 0.0
        %2149 = vmatpush2.msra.mxu0 0.0
        %2150 = vmatprep.subr.mxu0 0.0
        %2151 = vmatpush2.msra.mxu0 0.0
        %2152 = vmatprep.subr.mxu0 0.0
        %2153 = vmatpush2.msra.mxu0 0.0
        %2154 = vmatprep.subr.mxu0 0.0
        %2155 = vmatpush2.msra.mxu0 0.0
        %2156 = vmatprep.subr.mxu0 0.0
        %2157 = vmatpush2.msra.mxu0 0.0
        %2158 = vmatprep.subr.mxu0 0.0
        %2159 = vmatpush2.msra.mxu0 0.0
        %2160 = vmatprep.subr.mxu0 0.0
        %2161 = vmatpush2.msra.mxu0 0.0
        %2162 = vmatprep.subr.mxu0 0.0
        %2163 = vmatpush2.msra.mxu0 0.0
        %2164 = vmatprep.subr.mxu0 0.0
        %2165 = vmatpush2.msra.mxu0 0.0
        %2166 = vmatprep.subr.mxu0 0.0
        %2167 = vmatpush2.msra.mxu0 0.0
        %2168 = vmatprep.subr.mxu0 0.0
        %2169 = vmatpush2.msra.mxu0 0.0
        %2170 = vmatprep.subr.mxu0 0.0
        %2171 = vmatpush2.msra.mxu0 0.0
        %2172 = vmatprep.subr.mxu0 0.0
        %2173 = vmatpush2.msra.mxu0 0.0
        %2174 = vmatprep.subr.mxu0 0.0
        %2175 = vmatpush2.msra.mxu0 0.0
        %2176 = vmatprep.mubr.f32.mxu0 0.0
        %2177 = vmatmul.mubr.f32.gmra.mxu0 %v2110
        %v2178 = vpop.f32.mrf.mxu0
        %v2179 = vadd.f32 %v2107, %v2178
        %v2180 = vpop.f32.mrf.mxu0
        %2181 = vdwg.mxu0
        %s2182 = scalar_lea.vmem %s7, 32
        %v2183 = vld [vmem:[%s2182] sm:$0xff]
        %v2184 = vld [vmem:[%s2182 + $0x8] sm:$0xff]
        %v2185 = vld [vmem:[%s2182 + $0x10] sm:$0xff]
        %v2186 = vld [vmem:[%s2182 + $0x18] sm:$0xff]
        %2188 = vrot.lane.b32.xlu0 %v2179, 96
        %v2189 = vpop.permute.xlu0 %2188
        %v2190 = vsel %vm865, %v2179, 0
        %v2192 = vsel %vm865, %v2189, 0
        %2194 = vmatprep.subr.mxu0 0.0
        %2195 = vmatpush1.xpose.msra.mxu0 0.0
        %2196 = vmatprep.subr.mxu0 0.0
        %2197 = vmatpush1.xpose.msra.mxu0 0.0
        %2198 = vmatprep.subr.mxu0 0.0
        %2199 = vmatpush1.xpose.msra.mxu0 0.0
        %2200 = vmatprep.subr.mxu0 0.0
        %2201 = vmatpush1.xpose.msra.mxu0 0.0
        %2202 = vmatprep.subr.mxu0 0.0
        %2203 = vmatpush1.xpose.msra.mxu0 0.0
        %2204 = vmatprep.subr.mxu0 0.0
        %2205 = vmatpush1.xpose.msra.mxu0 0.0
        %2206 = vmatprep.subr.mxu0 0.0
        %2207 = vmatpush1.xpose.msra.mxu0 0.0
        %2208 = vmatprep.subr.mxu0 0.0
        %2209 = vmatpush1.xpose.msra.mxu0 0.0
        %2210 = vmatprep.subr.mxu0 0.0
        %2211 = vmatpush1.xpose.msra.mxu0 0.0
        %2212 = vmatprep.subr.mxu0 0.0
        %2213 = vmatpush1.xpose.msra.mxu0 0.0
        %2214 = vmatprep.subr.mxu0 0.0
        %2215 = vmatpush1.xpose.msra.mxu0 0.0
        %2216 = vmatprep.subr.mxu0 0.0
        %2217 = vmatpush1.xpose.msra.mxu0 0.0
        %2218 = vmatprep.subr.mxu0 0.0
        %2219 = vmatpush1.xpose.msra.mxu0 0.0
        %2220 = vmatprep.subr.mxu0 0.0
        %2221 = vmatpush1.xpose.msra.mxu0 0.0
        %2222 = vmatprep.subr.mxu0 0.0
        %2223 = vmatpush1.xpose.msra.mxu0 0.0
        %2224 = vmatprep.subr.mxu0 0.0
        %2225 = vmatpush1.xpose.msra.mxu0 %v2192
        %2226 = vmatprep.subr.mxu0 0.0
        %2227 = vmatpush2.xpose.msra.mxu0 0.0
        %2228 = vmatprep.subr.mxu0 0.0
        %2229 = vmatpush2.xpose.msra.mxu0 0.0
        %2230 = vmatprep.subr.mxu0 0.0
        %2231 = vmatpush2.xpose.msra.mxu0 0.0
        %2232 = vmatprep.subr.mxu0 0.0
        %2233 = vmatpush2.xpose.msra.mxu0 0.0
        %2234 = vmatprep.subr.mxu0 0.0
        %2235 = vmatpush2.xpose.msra.mxu0 0.0
        %2236 = vmatprep.subr.mxu0 0.0
        %2237 = vmatpush2.xpose.msra.mxu0 0.0
        %2238 = vmatprep.subr.mxu0 0.0
        %2239 = vmatpush2.xpose.msra.mxu0 0.0
        %2240 = vmatprep.subr.mxu0 0.0
        %2241 = vmatpush2.xpose.msra.mxu0 0.0
        %2242 = vmatprep.subr.mxu0 0.0
        %2243 = vmatpush2.xpose.msra.mxu0 0.0
        %2244 = vmatprep.subr.mxu0 0.0
        %2245 = vmatpush2.xpose.msra.mxu0 0.0
        %2246 = vmatprep.subr.mxu0 0.0
        %2247 = vmatpush2.xpose.msra.mxu0 0.0
        %2248 = vmatprep.subr.mxu0 0.0
        %2249 = vmatpush2.xpose.msra.mxu0 0.0
        %2250 = vmatprep.subr.mxu0 0.0
        %2251 = vmatpush2.xpose.msra.mxu0 0.0
        %2252 = vmatprep.subr.mxu0 0.0
        %2253 = vmatpush2.xpose.msra.mxu0 0.0
        %2254 = vmatprep.subr.mxu0 0.0
        %2255 = vmatpush2.xpose.msra.mxu0 0.0
        %2256 = vmatprep.subr.mxu0 0.0
        %2257 = vmatpush2.xpose.msra.mxu0 0.0
        %2258 = vmatprep.mubr.f32.mxu0 0.0
        %2259 = vmatmul.mubr.f32.gmra.mxu0 %v2190
        %v2260 = vpop.f32.mrf.mxu0
        %v2261 = vadd.f32 0.0, %v2260
        %v2262 = vpop.f32.mrf.mxu0
        %2263 = vdwg.mxu0
        %v2264 = vmul.f32 %v2261, 0.35355338
        %v2265 = vsel %vm941, %v2264, -inf
        %2266 = vmax.xlane.f32.xlu0 %v2265
        %v2267 = vpop.xlane.xlu0 %2266
        %v2268 = vsub.f32 %v2264, %v2267
        %v2269 = vmul.f32 %v2268, 1.442695
        %v2270 = vpow.pop %v2269
        %v2271 = vsel %vm941, %v2270, 0.0
        %2272 = vadd.xlane.f32.xlu0 %v2271
        %v2273 = vpop.xlane.xlu0 %2272
        %v2274 = vrcp.pop %v2273
        %v2275 = vmul.f32 %v2270, %v2274
        %2276 = vrot.lane.b32.xlu0 %v2179, 64
        %v2277 = vpop.permute.xlu0 %2276
        %v2279 = vsel %vm955, %v2275, 0
        %v2281 = vsel %vm959, %v2277, 0
        %2283 = vmatprep.subr.mxu0 0.0
        %2284 = vmatpush1.msra.mxu0 0.0
        %2285 = vmatprep.subr.mxu0 0.0
        %2286 = vmatpush1.msra.mxu0 0.0
        %2287 = vmatprep.subr.mxu0 0.0
        %2288 = vmatpush1.msra.mxu0 0.0
        %2289 = vmatprep.subr.mxu0 0.0
        %2290 = vmatpush1.msra.mxu0 0.0
        %2291 = vmatprep.subr.mxu0 0.0
        %2292 = vmatpush1.msra.mxu0 0.0
        %2293 = vmatprep.subr.mxu0 0.0
        %2294 = vmatpush1.msra.mxu0 0.0
        %2295 = vmatprep.subr.mxu0 0.0
        %2296 = vmatpush1.msra.mxu0 0.0
        %2297 = vmatprep.subr.mxu0 0.0
        %2298 = vmatpush1.msra.mxu0 0.0
        %2299 = vmatprep.subr.mxu0 0.0
        %2300 = vmatpush1.msra.mxu0 0.0
        %2301 = vmatprep.subr.mxu0 0.0
        %2302 = vmatpush1.msra.mxu0 0.0
        %2303 = vmatprep.subr.mxu0 0.0
        %2304 = vmatpush1.msra.mxu0 0.0
        %2305 = vmatprep.subr.mxu0 0.0
        %2306 = vmatpush1.msra.mxu0 0.0
        %2307 = vmatprep.subr.mxu0 0.0
        %2308 = vmatpush1.msra.mxu0 0.0
        %2309 = vmatprep.subr.mxu0 0.0
        %2310 = vmatpush1.msra.mxu0 0.0
        %2311 = vmatprep.subr.mxu0 0.0
        %2312 = vmatpush1.msra.mxu0 0.0
        %2313 = vmatprep.subr.mxu0 0.0
        %2314 = vmatpush1.msra.mxu0 %v2281
        %2315 = vmatprep.subr.mxu0 0.0
        %2316 = vmatpush2.msra.mxu0 0.0
        %2317 = vmatprep.subr.mxu0 0.0
        %2318 = vmatpush2.msra.mxu0 0.0
        %2319 = vmatprep.subr.mxu0 0.0
        %2320 = vmatpush2.msra.mxu0 0.0
        %2321 = vmatprep.subr.mxu0 0.0
        %2322 = vmatpush2.msra.mxu0 0.0
        %2323 = vmatprep.subr.mxu0 0.0
        %2324 = vmatpush2.msra.mxu0 0.0
        %2325 = vmatprep.subr.mxu0 0.0
        %2326 = vmatpush2.msra.mxu0 0.0
        %2327 = vmatprep.subr.mxu0 0.0
        %2328 = vmatpush2.msra.mxu0 0.0
        %2329 = vmatprep.subr.mxu0 0.0
        %2330 = vmatpush2.msra.mxu0 0.0
        %2331 = vmatprep.subr.mxu0 0.0
        %2332 = vmatpush2.msra.mxu0 0.0
        %2333 = vmatprep.subr.mxu0 0.0
        %2334 = vmatpush2.msra.mxu0 0.0
        %2335 = vmatprep.subr.mxu0 0.0
        %2336 = vmatpush2.msra.mxu0 0.0
        %2337 = vmatprep.subr.mxu0 0.0
        %2338 = vmatpush2.msra.mxu0 0.0
        %2339 = vmatprep.subr.mxu0 0.0
        %2340 = vmatpush2.msra.mxu0 0.0
        %2341 = vmatprep.subr.mxu0 0.0
        %2342 = vmatpush2.msra.mxu0 0.0
        %2343 = vmatprep.subr.mxu0 0.0
        %2344 = vmatpush2.msra.mxu0 0.0
        %2345 = vmatprep.subr.mxu0 0.0
        %2346 = vmatpush2.msra.mxu0 0.0
        %2347 = vmatprep.mubr.f32.mxu0 0.0
        %2348 = vmatmul.mubr.f32.gmra.mxu0 %v2279
        %v2349 = vpop.f32.mrf.mxu0
        %v2350 = vadd.f32 0.0, %v2349
        %v2351 = vpop.f32.mrf.mxu0
        %2352 = vdwg.mxu0
        %2353 = vrot.lane.b32.xlu0 %v2179, 120
        %v2354 = vpop.permute.xlu0 %2353
        %2355 = vrot.lane.b32.xlu0 %v2179, 88
        %v2356 = vpop.permute.xlu0 %2355
        %v2357 = vsel %vm865, %v2354, 0
        %v2359 = vsel %vm865, %v2356, 0
        %2361 = vmatprep.subr.mxu0 0.0
        %2362 = vmatpush1.xpose.msra.mxu0 0.0
        %2363 = vmatprep.subr.mxu0 0.0
        %2364 = vmatpush1.xpose.msra.mxu0 0.0
        %2365 = vmatprep.subr.mxu0 0.0
        %2366 = vmatpush1.xpose.msra.mxu0 0.0
        %2367 = vmatprep.subr.mxu0 0.0
        %2368 = vmatpush1.xpose.msra.mxu0 0.0
        %2369 = vmatprep.subr.mxu0 0.0
        %2370 = vmatpush1.xpose.msra.mxu0 0.0
        %2371 = vmatprep.subr.mxu0 0.0
        %2372 = vmatpush1.xpose.msra.mxu0 0.0
        %2373 = vmatprep.subr.mxu0 0.0
        %2374 = vmatpush1.xpose.msra.mxu0 0.0
        %2375 = vmatprep.subr.mxu0 0.0
        %2376 = vmatpush1.xpose.msra.mxu0 0.0
        %2377 = vmatprep.subr.mxu0 0.0
        %2378 = vmatpush1.xpose.msra.mxu0 0.0
        %2379 = vmatprep.subr.mxu0 0.0
        %2380 = vmatpush1.xpose.msra.mxu0 0.0
        %2381 = vmatprep.subr.mxu0 0.0
        %2382 = vmatpush1.xpose.msra.mxu0 0.0
        %2383 = vmatprep.subr.mxu0 0.0
        %2384 = vmatpush1.xpose.msra.mxu0 0.0
        %2385 = vmatprep.subr.mxu0 0.0
        %2386 = vmatpush1.xpose.msra.mxu0 0.0
        %2387 = vmatprep.subr.mxu0 0.0
        %2388 = vmatpush1.xpose.msra.mxu0 0.0
        %2389 = vmatprep.subr.mxu0 0.0
        %2390 = vmatpush1.xpose.msra.mxu0 0.0
        %2391 = vmatprep.subr.mxu0 0.0
        %2392 = vmatpush1.xpose.msra.mxu0 %v2359
        %2393 = vmatprep.subr.mxu0 0.0
        %2394 = vmatpush2.xpose.msra.mxu0 0.0
        %2395 = vmatprep.subr.mxu0 0.0
        %2396 = vmatpush2.xpose.msra.mxu0 0.0
        %2397 = vmatprep.subr.mxu0 0.0
        %2398 = vmatpush2.xpose.msra.mxu0 0.0
        %2399 = vmatprep.subr.mxu0 0.0
        %2400 = vmatpush2.xpose.msra.mxu0 0.0
        %2401 = vmatprep.subr.mxu0 0.0
        %2402 = vmatpush2.xpose.msra.mxu0 0.0
        %2403 = vmatprep.subr.mxu0 0.0
        %2404 = vmatpush2.xpose.msra.mxu0 0.0
        %2405 = vmatprep.subr.mxu0 0.0
        %2406 = vmatpush2.xpose.msra.mxu0 0.0
        %2407 = vmatprep.subr.mxu0 0.0
        %2408 = vmatpush2.xpose.msra.mxu0 0.0
        %2409 = vmatprep.subr.mxu0 0.0
        %2410 = vmatpush2.xpose.msra.mxu0 0.0
        %2411 = vmatprep.subr.mxu0 0.0
        %2412 = vmatpush2.xpose.msra.mxu0 0.0
        %2413 = vmatprep.subr.mxu0 0.0
        %2414 = vmatpush2.xpose.msra.mxu0 0.0
        %2415 = vmatprep.subr.mxu0 0.0
        %2416 = vmatpush2.xpose.msra.mxu0 0.0
        %2417 = vmatprep.subr.mxu0 0.0
        %2418 = vmatpush2.xpose.msra.mxu0 0.0
        %2419 = vmatprep.subr.mxu0 0.0
        %2420 = vmatpush2.xpose.msra.mxu0 0.0
        %2421 = vmatprep.subr.mxu0 0.0
        %2422 = vmatpush2.xpose.msra.mxu0 0.0
        %2423 = vmatprep.subr.mxu0 0.0
        %2424 = vmatpush2.xpose.msra.mxu0 0.0
        %2425 = vmatprep.mubr.f32.mxu0 0.0
        %2426 = vmatmul.mubr.f32.gmra.mxu0 %v2357
        %v2427 = vpop.f32.mrf.mxu0
        %v2428 = vadd.f32 0.0, %v2427
        %v2429 = vpop.f32.mrf.mxu0
        %2430 = vdwg.mxu0
        %v2431 = vmul.f32 %v2428, 0.35355338
        %v2432 = vsel %vm941, %v2431, -inf
        %2433 = vmax.xlane.f32.xlu0 %v2432
        %v2434 = vpop.xlane.xlu0 %2433
        %v2435 = vsub.f32 %v2431, %v2434
        %v2436 = vmul.f32 %v2435, 1.442695
        %v2437 = vpow.pop %v2436
        %v2438 = vsel %vm941, %v2437, 0.0
        %2439 = vadd.xlane.f32.xlu0 %v2438
        %v2440 = vpop.xlane.xlu0 %2439
        %v2441 = vrcp.pop %v2440
        %v2442 = vmul.f32 %v2437, %v2441
        %2443 = vrot.lane.b32.xlu0 %v2179, 56
        %v2444 = vpop.permute.xlu0 %2443
        %v2446 = vsel %vm955, %v2442, 0
        %v2448 = vsel %vm959, %v2444, 0
        %2450 = vmatprep.subr.mxu0 0.0
        %2451 = vmatpush1.msra.mxu0 0.0
        %2452 = vmatprep.subr.mxu0 0.0
        %2453 = vmatpush1.msra.mxu0 0.0
        %2454 = vmatprep.subr.mxu0 0.0
        %2455 = vmatpush1.msra.mxu0 0.0
        %2456 = vmatprep.subr.mxu0 0.0
        %2457 = vmatpush1.msra.mxu0 0.0
        %2458 = vmatprep.subr.mxu0 0.0
        %2459 = vmatpush1.msra.mxu0 0.0
        %2460 = vmatprep.subr.mxu0 0.0
        %2461 = vmatpush1.msra.mxu0 0.0
        %2462 = vmatprep.subr.mxu0 0.0
        %2463 = vmatpush1.msra.mxu0 0.0
        %2464 = vmatprep.subr.mxu0 0.0
        %2465 = vmatpush1.msra.mxu0 0.0
        %2466 = vmatprep.subr.mxu0 0.0
        %2467 = vmatpush1.msra.mxu0 0.0
        %2468 = vmatprep.subr.mxu0 0.0
        %2469 = vmatpush1.msra.mxu0 0.0
        %2470 = vmatprep.subr.mxu0 0.0
        %2471 = vmatpush1.msra.mxu0 0.0
        %2472 = vmatprep.subr.mxu0 0.0
        %2473 = vmatpush1.msra.mxu0 0.0
        %2474 = vmatprep.subr.mxu0 0.0
        %2475 = vmatpush1.msra.mxu0 0.0
        %2476 = vmatprep.subr.mxu0 0.0
        %2477 = vmatpush1.msra.mxu0 0.0
        %2478 = vmatprep.subr.mxu0 0.0
        %2479 = vmatpush1.msra.mxu0 0.0
        %2480 = vmatprep.subr.mxu0 0.0
        %2481 = vmatpush1.msra.mxu0 %v2448
        %2482 = vmatprep.subr.mxu0 0.0
        %2483 = vmatpush2.msra.mxu0 0.0
        %2484 = vmatprep.subr.mxu0 0.0
        %2485 = vmatpush2.msra.mxu0 0.0
        %2486 = vmatprep.subr.mxu0 0.0
        %2487 = vmatpush2.msra.mxu0 0.0
        %2488 = vmatprep.subr.mxu0 0.0
        %2489 = vmatpush2.msra.mxu0 0.0
        %2490 = vmatprep.subr.mxu0 0.0
        %2491 = vmatpush2.msra.mxu0 0.0
        %2492 = vmatprep.subr.mxu0 0.0
        %2493 = vmatpush2.msra.mxu0 0.0
        %2494 = vmatprep.subr.mxu0 0.0
        %2495 = vmatpush2.msra.mxu0 0.0
        %2496 = vmatprep.subr.mxu0 0.0
        %2497 = vmatpush2.msra.mxu0 0.0
        %2498 = vmatprep.subr.mxu0 0.0
        %2499 = vmatpush2.msra.mxu0 0.0
        %2500 = vmatprep.subr.mxu0 0.0
        %2501 = vmatpush2.msra.mxu0 0.0
        %2502 = vmatprep.subr.mxu0 0.0
        %2503 = vmatpush2.msra.mxu0 0.0
        %2504 = vmatprep.subr.mxu0 0.0
        %2505 = vmatpush2.msra.mxu0 0.0
        %2506 = vmatprep.subr.mxu0 0.0
        %2507 = vmatpush2.msra.mxu0 0.0
        %2508 = vmatprep.subr.mxu0 0.0
        %2509 = vmatpush2.msra.mxu0 0.0
        %2510 = vmatprep.subr.mxu0 0.0
        %2511 = vmatpush2.msra.mxu0 0.0
        %2512 = vmatprep.subr.mxu0 0.0
        %2513 = vmatpush2.msra.mxu0 0.0
        %2514 = vmatprep.mubr.f32.mxu0 0.0
        %2515 = vmatmul.mubr.f32.gmra.mxu0 %v2446
        %v2516 = vpop.f32.mrf.mxu0
        %v2517 = vadd.f32 0.0, %v2516
        %v2518 = vpop.f32.mrf.mxu0
        %2519 = vdwg.mxu0
        %v2521 = vsel %vm865, %v2517, 0
        %2523 = vmatprep.subr.mxu0 0.0
        %2524 = vmatpush1.msra.mxu0 0.0
        %2525 = vmatprep.subr.mxu0 0.0
        %2526 = vmatpush1.msra.mxu0 0.0
        %2527 = vmatprep.subr.mxu0 0.0
        %2528 = vmatpush1.msra.mxu0 0.0
        %2529 = vmatprep.subr.mxu0 0.0
        %2530 = vmatpush1.msra.mxu0 0.0
        %2531 = vmatprep.subr.mxu0 0.0
        %2532 = vmatpush1.msra.mxu0 0.0
        %2533 = vmatprep.subr.mxu0 0.0
        %2534 = vmatpush1.msra.mxu0 0.0
        %2535 = vmatprep.subr.mxu0 0.0
        %2536 = vmatpush1.msra.mxu0 0.0
        %2537 = vmatprep.subr.mxu0 0.0
        %2538 = vmatpush1.msra.mxu0 0.0
        %2539 = vmatprep.subr.mxu0 0.0
        %2540 = vmatpush1.msra.mxu0 0.0
        %2541 = vmatprep.subr.mxu0 0.0
        %2542 = vmatpush1.msra.mxu0 0.0
        %2543 = vmatprep.subr.mxu0 0.0
        %2544 = vmatpush1.msra.mxu0 0.0
        %2545 = vmatprep.subr.mxu0 0.0
        %2546 = vmatpush1.msra.mxu0 0.0
        %2547 = vmatprep.subr.mxu0 0.0
        %2548 = vmatpush1.msra.mxu0 0.0
        %2549 = vmatprep.subr.mxu0 0.0
        %2550 = vmatpush1.msra.mxu0 0.0
        %2551 = vmatprep.subr.mxu0 0.0
        %2552 = vmatpush1.msra.mxu0 0.0
        %2553 = vmatprep.subr.mxu0 0.0
        %2554 = vmatpush1.msra.mxu0 %v2184
        %2555 = vmatprep.subr.mxu0 0.0
        %2556 = vmatpush2.msra.mxu0 0.0
        %2557 = vmatprep.subr.mxu0 0.0
        %2558 = vmatpush2.msra.mxu0 0.0
        %2559 = vmatprep.subr.mxu0 0.0
        %2560 = vmatpush2.msra.mxu0 0.0
        %2561 = vmatprep.subr.mxu0 0.0
        %2562 = vmatpush2.msra.mxu0 0.0
        %2563 = vmatprep.subr.mxu0 0.0
        %2564 = vmatpush2.msra.mxu0 0.0
        %2565 = vmatprep.subr.mxu0 0.0
        %2566 = vmatpush2.msra.mxu0 0.0
        %2567 = vmatprep.subr.mxu0 0.0
        %2568 = vmatpush2.msra.mxu0 0.0
        %2569 = vmatprep.subr.mxu0 0.0
        %2570 = vmatpush2.msra.mxu0 0.0
        %2571 = vmatprep.subr.mxu0 0.0
        %2572 = vmatpush2.msra.mxu0 0.0
        %2573 = vmatprep.subr.mxu0 0.0
        %2574 = vmatpush2.msra.mxu0 0.0
        %2575 = vmatprep.subr.mxu0 0.0
        %2576 = vmatpush2.msra.mxu0 0.0
        %2577 = vmatprep.subr.mxu0 0.0
        %2578 = vmatpush2.msra.mxu0 0.0
        %2579 = vmatprep.subr.mxu0 0.0
        %2580 = vmatpush2.msra.mxu0 0.0
        %2581 = vmatprep.subr.mxu0 0.0
        %2582 = vmatpush2.msra.mxu0 0.0
        %2583 = vmatprep.subr.mxu0 0.0
        %2584 = vmatpush2.msra.mxu0 0.0
        %2585 = vmatprep.subr.mxu0 0.0
        %2586 = vmatpush2.msra.mxu0 0.0
        %2587 = vmatprep.mubr.f32.mxu0 0.0
        %2588 = vmatmul.mubr.f32.gmra.mxu0 %v2521
        %v2589 = vpop.f32.mrf.mxu0
        %v2590 = vadd.f32 0.0, %v2589
        %v2591 = vpop.f32.mrf.mxu0
        %2592 = vdwg.mxu0
        %v2594 = vsel %vm865, %v2350, 0
        %2596 = vmatprep.subr.mxu0 0.0
        %2597 = vmatpush1.msra.mxu0 0.0
        %2598 = vmatprep.subr.mxu0 0.0
        %2599 = vmatpush1.msra.mxu0 0.0
        %2600 = vmatprep.subr.mxu0 0.0
        %2601 = vmatpush1.msra.mxu0 0.0
        %2602 = vmatprep.subr.mxu0 0.0
        %2603 = vmatpush1.msra.mxu0 0.0
        %2604 = vmatprep.subr.mxu0 0.0
        %2605 = vmatpush1.msra.mxu0 0.0
        %2606 = vmatprep.subr.mxu0 0.0
        %2607 = vmatpush1.msra.mxu0 0.0
        %2608 = vmatprep.subr.mxu0 0.0
        %2609 = vmatpush1.msra.mxu0 0.0
        %2610 = vmatprep.subr.mxu0 0.0
        %2611 = vmatpush1.msra.mxu0 0.0
        %2612 = vmatprep.subr.mxu0 0.0
        %2613 = vmatpush1.msra.mxu0 0.0
        %2614 = vmatprep.subr.mxu0 0.0
        %2615 = vmatpush1.msra.mxu0 0.0
        %2616 = vmatprep.subr.mxu0 0.0
        %2617 = vmatpush1.msra.mxu0 0.0
        %2618 = vmatprep.subr.mxu0 0.0
        %2619 = vmatpush1.msra.mxu0 0.0
        %2620 = vmatprep.subr.mxu0 0.0
        %2621 = vmatpush1.msra.mxu0 0.0
        %2622 = vmatprep.subr.mxu0 0.0
        %2623 = vmatpush1.msra.mxu0 0.0
        %2624 = vmatprep.subr.mxu0 0.0
        %2625 = vmatpush1.msra.mxu0 0.0
        %2626 = vmatprep.subr.mxu0 0.0
        %2627 = vmatpush1.msra.mxu0 %v2183
        %2628 = vmatprep.subr.mxu0 0.0
        %2629 = vmatpush2.msra.mxu0 0.0
        %2630 = vmatprep.subr.mxu0 0.0
        %2631 = vmatpush2.msra.mxu0 0.0
        %2632 = vmatprep.subr.mxu0 0.0
        %2633 = vmatpush2.msra.mxu0 0.0
        %2634 = vmatprep.subr.mxu0 0.0
        %2635 = vmatpush2.msra.mxu0 0.0
        %2636 = vmatprep.subr.mxu0 0.0
        %2637 = vmatpush2.msra.mxu0 0.0
        %2638 = vmatprep.subr.mxu0 0.0
        %2639 = vmatpush2.msra.mxu0 0.0
        %2640 = vmatprep.subr.mxu0 0.0
        %2641 = vmatpush2.msra.mxu0 0.0
        %2642 = vmatprep.subr.mxu0 0.0
        %2643 = vmatpush2.msra.mxu0 0.0
        %2644 = vmatprep.subr.mxu0 0.0
        %2645 = vmatpush2.msra.mxu0 0.0
        %2646 = vmatprep.subr.mxu0 0.0
        %2647 = vmatpush2.msra.mxu0 0.0
        %2648 = vmatprep.subr.mxu0 0.0
        %2649 = vmatpush2.msra.mxu0 0.0
        %2650 = vmatprep.subr.mxu0 0.0
        %2651 = vmatpush2.msra.mxu0 0.0
        %2652 = vmatprep.subr.mxu0 0.0
        %2653 = vmatpush2.msra.mxu0 0.0
        %2654 = vmatprep.subr.mxu0 0.0
        %2655 = vmatpush2.msra.mxu0 0.0
        %2656 = vmatprep.subr.mxu0 0.0
        %2657 = vmatpush2.msra.mxu0 0.0
        %2658 = vmatprep.subr.mxu0 0.0
        %2659 = vmatpush2.msra.mxu0 0.0
        %2660 = vmatprep.mubr.f32.mxu0 0.0
        %2661 = vmatmul.mubr.f32.gmra.mxu0 %v2594
        %v2662 = vpop.f32.mrf.mxu0
        %v2663 = vadd.f32 %v2590, %v2662
        %v2664 = vpop.f32.mrf.mxu0
        %2665 = vdwg.mxu0
        %2666 = vrot.lane.b32.xlu0 %v2179, 112
        %v2667 = vpop.permute.xlu0 %2666
        %2668 = vrot.lane.b32.xlu0 %v2179, 80
        %v2669 = vpop.permute.xlu0 %2668
        %v2670 = vsel %vm865, %v2667, 0
        %v2672 = vsel %vm865, %v2669, 0
        %2674 = vmatprep.subr.mxu0 0.0
        %2675 = vmatpush1.xpose.msra.mxu0 0.0
        %2676 = vmatprep.subr.mxu0 0.0
        %2677 = vmatpush1.xpose.msra.mxu0 0.0
        %2678 = vmatprep.subr.mxu0 0.0
        %2679 = vmatpush1.xpose.msra.mxu0 0.0
        %2680 = vmatprep.subr.mxu0 0.0
        %2681 = vmatpush1.xpose.msra.mxu0 0.0
        %2682 = vmatprep.subr.mxu0 0.0
        %2683 = vmatpush1.xpose.msra.mxu0 0.0
        %2684 = vmatprep.subr.mxu0 0.0
        %2685 = vmatpush1.xpose.msra.mxu0 0.0
        %2686 = vmatprep.subr.mxu0 0.0
        %2687 = vmatpush1.xpose.msra.mxu0 0.0
        %2688 = vmatprep.subr.mxu0 0.0
        %2689 = vmatpush1.xpose.msra.mxu0 0.0
        %2690 = vmatprep.subr.mxu0 0.0
        %2691 = vmatpush1.xpose.msra.mxu0 0.0
        %2692 = vmatprep.subr.mxu0 0.0
        %2693 = vmatpush1.xpose.msra.mxu0 0.0
        %2694 = vmatprep.subr.mxu0 0.0
        %2695 = vmatpush1.xpose.msra.mxu0 0.0
        %2696 = vmatprep.subr.mxu0 0.0
        %2697 = vmatpush1.xpose.msra.mxu0 0.0
        %2698 = vmatprep.subr.mxu0 0.0
        %2699 = vmatpush1.xpose.msra.mxu0 0.0
        %2700 = vmatprep.subr.mxu0 0.0
        %2701 = vmatpush1.xpose.msra.mxu0 0.0
        %2702 = vmatprep.subr.mxu0 0.0
        %2703 = vmatpush1.xpose.msra.mxu0 0.0
        %2704 = vmatprep.subr.mxu0 0.0
        %2705 = vmatpush1.xpose.msra.mxu0 %v2672
        %2706 = vmatprep.subr.mxu0 0.0
        %2707 = vmatpush2.xpose.msra.mxu0 0.0
        %2708 = vmatprep.subr.mxu0 0.0
        %2709 = vmatpush2.xpose.msra.mxu0 0.0
        %2710 = vmatprep.subr.mxu0 0.0
        %2711 = vmatpush2.xpose.msra.mxu0 0.0
        %2712 = vmatprep.subr.mxu0 0.0
        %2713 = vmatpush2.xpose.msra.mxu0 0.0
        %2714 = vmatprep.subr.mxu0 0.0
        %2715 = vmatpush2.xpose.msra.mxu0 0.0
        %2716 = vmatprep.subr.mxu0 0.0
        %2717 = vmatpush2.xpose.msra.mxu0 0.0
        %2718 = vmatprep.subr.mxu0 0.0
        %2719 = vmatpush2.xpose.msra.mxu0 0.0
        %2720 = vmatprep.subr.mxu0 0.0
        %2721 = vmatpush2.xpose.msra.mxu0 0.0
        %2722 = vmatprep.subr.mxu0 0.0
        %2723 = vmatpush2.xpose.msra.mxu0 0.0
        %2724 = vmatprep.subr.mxu0 0.0
        %2725 = vmatpush2.xpose.msra.mxu0 0.0
        %2726 = vmatprep.subr.mxu0 0.0
        %2727 = vmatpush2.xpose.msra.mxu0 0.0
        %2728 = vmatprep.subr.mxu0 0.0
        %2729 = vmatpush2.xpose.msra.mxu0 0.0
        %2730 = vmatprep.subr.mxu0 0.0
        %2731 = vmatpush2.xpose.msra.mxu0 0.0
        %2732 = vmatprep.subr.mxu0 0.0
        %2733 = vmatpush2.xpose.msra.mxu0 0.0
        %2734 = vmatprep.subr.mxu0 0.0
        %2735 = vmatpush2.xpose.msra.mxu0 0.0
        %2736 = vmatprep.subr.mxu0 0.0
        %2737 = vmatpush2.xpose.msra.mxu0 0.0
        %2738 = vmatprep.mubr.f32.mxu0 0.0
        %2739 = vmatmul.mubr.f32.gmra.mxu0 %v2670
        %v2740 = vpop.f32.mrf.mxu0
        %v2741 = vadd.f32 0.0, %v2740
        %v2742 = vpop.f32.mrf.mxu0
        %2743 = vdwg.mxu0
        %v2744 = vmul.f32 %v2741, 0.35355338
        %v2745 = vsel %vm941, %v2744, -inf
        %2746 = vmax.xlane.f32.xlu0 %v2745
        %v2747 = vpop.xlane.xlu0 %2746
        %v2748 = vsub.f32 %v2744, %v2747
        %v2749 = vmul.f32 %v2748, 1.442695
        %v2750 = vpow.pop %v2749
        %v2751 = vsel %vm941, %v2750, 0.0
        %2752 = vadd.xlane.f32.xlu0 %v2751
        %v2753 = vpop.xlane.xlu0 %2752
        %v2754 = vrcp.pop %v2753
        %v2755 = vmul.f32 %v2750, %v2754
        %2756 = vrot.lane.b32.xlu0 %v2179, 48
        %v2757 = vpop.permute.xlu0 %2756
        %v2759 = vsel %vm955, %v2755, 0
        %v2761 = vsel %vm959, %v2757, 0
        %2763 = vmatprep.subr.mxu0 0.0
        %2764 = vmatpush1.msra.mxu0 0.0
        %2765 = vmatprep.subr.mxu0 0.0
        %2766 = vmatpush1.msra.mxu0 0.0
        %2767 = vmatprep.subr.mxu0 0.0
        %2768 = vmatpush1.msra.mxu0 0.0
        %2769 = vmatprep.subr.mxu0 0.0
        %2770 = vmatpush1.msra.mxu0 0.0
        %2771 = vmatprep.subr.mxu0 0.0
        %2772 = vmatpush1.msra.mxu0 0.0
        %2773 = vmatprep.subr.mxu0 0.0
        %2774 = vmatpush1.msra.mxu0 0.0
        %2775 = vmatprep.subr.mxu0 0.0
        %2776 = vmatpush1.msra.mxu0 0.0
        %2777 = vmatprep.subr.mxu0 0.0
        %2778 = vmatpush1.msra.mxu0 0.0
        %2779 = vmatprep.subr.mxu0 0.0
        %2780 = vmatpush1.msra.mxu0 0.0
        %2781 = vmatprep.subr.mxu0 0.0
        %2782 = vmatpush1.msra.mxu0 0.0
        %2783 = vmatprep.subr.mxu0 0.0
        %2784 = vmatpush1.msra.mxu0 0.0
        %2785 = vmatprep.subr.mxu0 0.0
        %2786 = vmatpush1.msra.mxu0 0.0
        %2787 = vmatprep.subr.mxu0 0.0
        %2788 = vmatpush1.msra.mxu0 0.0
        %2789 = vmatprep.subr.mxu0 0.0
        %2790 = vmatpush1.msra.mxu0 0.0
        %2791 = vmatprep.subr.mxu0 0.0
        %2792 = vmatpush1.msra.mxu0 0.0
        %2793 = vmatprep.subr.mxu0 0.0
        %2794 = vmatpush1.msra.mxu0 %v2761
        %2795 = vmatprep.subr.mxu0 0.0
        %2796 = vmatpush2.msra.mxu0 0.0
        %2797 = vmatprep.subr.mxu0 0.0
        %2798 = vmatpush2.msra.mxu0 0.0
        %2799 = vmatprep.subr.mxu0 0.0
        %2800 = vmatpush2.msra.mxu0 0.0
        %2801 = vmatprep.subr.mxu0 0.0
        %2802 = vmatpush2.msra.mxu0 0.0
        %2803 = vmatprep.subr.mxu0 0.0
        %2804 = vmatpush2.msra.mxu0 0.0
        %2805 = vmatprep.subr.mxu0 0.0
        %2806 = vmatpush2.msra.mxu0 0.0
        %2807 = vmatprep.subr.mxu0 0.0
        %2808 = vmatpush2.msra.mxu0 0.0
        %2809 = vmatprep.subr.mxu0 0.0
        %2810 = vmatpush2.msra.mxu0 0.0
        %2811 = vmatprep.subr.mxu0 0.0
        %2812 = vmatpush2.msra.mxu0 0.0
        %2813 = vmatprep.subr.mxu0 0.0
        %2814 = vmatpush2.msra.mxu0 0.0
        %2815 = vmatprep.subr.mxu0 0.0
        %2816 = vmatpush2.msra.mxu0 0.0
        %2817 = vmatprep.subr.mxu0 0.0
        %2818 = vmatpush2.msra.mxu0 0.0
        %2819 = vmatprep.subr.mxu0 0.0
        %2820 = vmatpush2.msra.mxu0 0.0
        %2821 = vmatprep.subr.mxu0 0.0
        %2822 = vmatpush2.msra.mxu0 0.0
        %2823 = vmatprep.subr.mxu0 0.0
        %2824 = vmatpush2.msra.mxu0 0.0
        %2825 = vmatprep.subr.mxu0 0.0
        %2826 = vmatpush2.msra.mxu0 0.0
        %2827 = vmatprep.mubr.f32.mxu0 0.0
        %2828 = vmatmul.mubr.f32.gmra.mxu0 %v2759
        %v2829 = vpop.f32.mrf.mxu0
        %v2830 = vadd.f32 0.0, %v2829
        %v2831 = vpop.f32.mrf.mxu0
        %2832 = vdwg.mxu0
        %v2834 = vsel %vm865, %v2830, 0
        %2836 = vmatprep.subr.mxu0 0.0
        %2837 = vmatpush1.msra.mxu0 0.0
        %2838 = vmatprep.subr.mxu0 0.0
        %2839 = vmatpush1.msra.mxu0 0.0
        %2840 = vmatprep.subr.mxu0 0.0
        %2841 = vmatpush1.msra.mxu0 0.0
        %2842 = vmatprep.subr.mxu0 0.0
        %2843 = vmatpush1.msra.mxu0 0.0
        %2844 = vmatprep.subr.mxu0 0.0
        %2845 = vmatpush1.msra.mxu0 0.0
        %2846 = vmatprep.subr.mxu0 0.0
        %2847 = vmatpush1.msra.mxu0 0.0
        %2848 = vmatprep.subr.mxu0 0.0
        %2849 = vmatpush1.msra.mxu0 0.0
        %2850 = vmatprep.subr.mxu0 0.0
        %2851 = vmatpush1.msra.mxu0 0.0
        %2852 = vmatprep.subr.mxu0 0.0
        %2853 = vmatpush1.msra.mxu0 0.0
        %2854 = vmatprep.subr.mxu0 0.0
        %2855 = vmatpush1.msra.mxu0 0.0
        %2856 = vmatprep.subr.mxu0 0.0
        %2857 = vmatpush1.msra.mxu0 0.0
        %2858 = vmatprep.subr.mxu0 0.0
        %2859 = vmatpush1.msra.mxu0 0.0
        %2860 = vmatprep.subr.mxu0 0.0
        %2861 = vmatpush1.msra.mxu0 0.0
        %2862 = vmatprep.subr.mxu0 0.0
        %2863 = vmatpush1.msra.mxu0 0.0
        %2864 = vmatprep.subr.mxu0 0.0
        %2865 = vmatpush1.msra.mxu0 0.0
        %2866 = vmatprep.subr.mxu0 0.0
        %2867 = vmatpush1.msra.mxu0 %v2185
        %2868 = vmatprep.subr.mxu0 0.0
        %2869 = vmatpush2.msra.mxu0 0.0
        %2870 = vmatprep.subr.mxu0 0.0
        %2871 = vmatpush2.msra.mxu0 0.0
        %2872 = vmatprep.subr.mxu0 0.0
        %2873 = vmatpush2.msra.mxu0 0.0
        %2874 = vmatprep.subr.mxu0 0.0
        %2875 = vmatpush2.msra.mxu0 0.0
        %2876 = vmatprep.subr.mxu0 0.0
        %2877 = vmatpush2.msra.mxu0 0.0
        %2878 = vmatprep.subr.mxu0 0.0
        %2879 = vmatpush2.msra.mxu0 0.0
        %2880 = vmatprep.subr.mxu0 0.0
        %2881 = vmatpush2.msra.mxu0 0.0
        %2882 = vmatprep.subr.mxu0 0.0
        %2883 = vmatpush2.msra.mxu0 0.0
        %2884 = vmatprep.subr.mxu0 0.0
        %2885 = vmatpush2.msra.mxu0 0.0
        %2886 = vmatprep.subr.mxu0 0.0
        %2887 = vmatpush2.msra.mxu0 0.0
        %2888 = vmatprep.subr.mxu0 0.0
        %2889 = vmatpush2.msra.mxu0 0.0
        %2890 = vmatprep.subr.mxu0 0.0
        %2891 = vmatpush2.msra.mxu0 0.0
        %2892 = vmatprep.subr.mxu0 0.0
        %2893 = vmatpush2.msra.mxu0 0.0
        %2894 = vmatprep.subr.mxu0 0.0
        %2895 = vmatpush2.msra.mxu0 0.0
        %2896 = vmatprep.subr.mxu0 0.0
        %2897 = vmatpush2.msra.mxu0 0.0
        %2898 = vmatprep.subr.mxu0 0.0
        %2899 = vmatpush2.msra.mxu0 0.0
        %2900 = vmatprep.mubr.f32.mxu0 0.0
        %2901 = vmatmul.mubr.f32.gmra.mxu0 %v2834
        %v2902 = vpop.f32.mrf.mxu0
        %v2903 = vadd.f32 0.0, %v2902
        %v2904 = vpop.f32.mrf.mxu0
        %2905 = vdwg.mxu0
        %v2906 = vadd.f32 %v2663, %v2903
        %2907 = vrot.lane.b32.xlu0 %v2179, 104
        %v2908 = vpop.permute.xlu0 %2907
        %2909 = vrot.lane.b32.xlu0 %v2179, 72
        %v2910 = vpop.permute.xlu0 %2909
        %v2911 = vsel %vm865, %v2908, 0
        %v2913 = vsel %vm865, %v2910, 0
        %2915 = vmatprep.subr.mxu0 0.0
        %2916 = vmatpush1.xpose.msra.mxu0 0.0
        %2917 = vmatprep.subr.mxu0 0.0
        %2918 = vmatpush1.xpose.msra.mxu0 0.0
        %2919 = vmatprep.subr.mxu0 0.0
        %2920 = vmatpush1.xpose.msra.mxu0 0.0
        %2921 = vmatprep.subr.mxu0 0.0
        %2922 = vmatpush1.xpose.msra.mxu0 0.0
        %2923 = vmatprep.subr.mxu0 0.0
        %2924 = vmatpush1.xpose.msra.mxu0 0.0
        %2925 = vmatprep.subr.mxu0 0.0
        %2926 = vmatpush1.xpose.msra.mxu0 0.0
        %2927 = vmatprep.subr.mxu0 0.0
        %2928 = vmatpush1.xpose.msra.mxu0 0.0
        %2929 = vmatprep.subr.mxu0 0.0
        %2930 = vmatpush1.xpose.msra.mxu0 0.0
        %2931 = vmatprep.subr.mxu0 0.0
        %2932 = vmatpush1.xpose.msra.mxu0 0.0
        %2933 = vmatprep.subr.mxu0 0.0
        %2934 = vmatpush1.xpose.msra.mxu0 0.0
        %2935 = vmatprep.subr.mxu0 0.0
        %2936 = vmatpush1.xpose.msra.mxu0 0.0
        %2937 = vmatprep.subr.mxu0 0.0
        %2938 = vmatpush1.xpose.msra.mxu0 0.0
        %2939 = vmatprep.subr.mxu0 0.0
        %2940 = vmatpush1.xpose.msra.mxu0 0.0
        %2941 = vmatprep.subr.mxu0 0.0
        %2942 = vmatpush1.xpose.msra.mxu0 0.0
        %2943 = vmatprep.subr.mxu0 0.0
        %2944 = vmatpush1.xpose.msra.mxu0 0.0
        %2945 = vmatprep.subr.mxu0 0.0
        %2946 = vmatpush1.xpose.msra.mxu0 %v2913
        %2947 = vmatprep.subr.mxu0 0.0
        %2948 = vmatpush2.xpose.msra.mxu0 0.0
        %2949 = vmatprep.subr.mxu0 0.0
        %2950 = vmatpush2.xpose.msra.mxu0 0.0
        %2951 = vmatprep.subr.mxu0 0.0
        %2952 = vmatpush2.xpose.msra.mxu0 0.0
        %2953 = vmatprep.subr.mxu0 0.0
        %2954 = vmatpush2.xpose.msra.mxu0 0.0
        %2955 = vmatprep.subr.mxu0 0.0
        %2956 = vmatpush2.xpose.msra.mxu0 0.0
        %2957 = vmatprep.subr.mxu0 0.0
        %2958 = vmatpush2.xpose.msra.mxu0 0.0
        %2959 = vmatprep.subr.mxu0 0.0
        %2960 = vmatpush2.xpose.msra.mxu0 0.0
        %2961 = vmatprep.subr.mxu0 0.0
        %2962 = vmatpush2.xpose.msra.mxu0 0.0
        %2963 = vmatprep.subr.mxu0 0.0
        %2964 = vmatpush2.xpose.msra.mxu0 0.0
        %2965 = vmatprep.subr.mxu0 0.0
        %2966 = vmatpush2.xpose.msra.mxu0 0.0
        %2967 = vmatprep.subr.mxu0 0.0
        %2968 = vmatpush2.xpose.msra.mxu0 0.0
        %2969 = vmatprep.subr.mxu0 0.0
        %2970 = vmatpush2.xpose.msra.mxu0 0.0
        %2971 = vmatprep.subr.mxu0 0.0
        %2972 = vmatpush2.xpose.msra.mxu0 0.0
        %2973 = vmatprep.subr.mxu0 0.0
        %2974 = vmatpush2.xpose.msra.mxu0 0.0
        %2975 = vmatprep.subr.mxu0 0.0
        %2976 = vmatpush2.xpose.msra.mxu0 0.0
        %2977 = vmatprep.subr.mxu0 0.0
        %2978 = vmatpush2.xpose.msra.mxu0 0.0
        %2979 = vmatprep.mubr.f32.mxu0 0.0
        %2980 = vmatmul.mubr.f32.gmra.mxu0 %v2911
        %v2981 = vpop.f32.mrf.mxu0
        %v2982 = vadd.f32 0.0, %v2981
        %v2983 = vpop.f32.mrf.mxu0
        %2984 = vdwg.mxu0
        %v2985 = vmul.f32 %v2982, 0.35355338
        %v2986 = vsel %vm941, %v2985, -inf
        %2987 = vmax.xlane.f32.xlu0 %v2986
        %v2988 = vpop.xlane.xlu0 %2987
        %v2989 = vsub.f32 %v2985, %v2988
        %v2990 = vmul.f32 %v2989, 1.442695
        %v2991 = vpow.pop %v2990
        %v2992 = vsel %vm941, %v2991, 0.0
        %2993 = vadd.xlane.f32.xlu0 %v2992
        %v2994 = vpop.xlane.xlu0 %2993
        %v2995 = vrcp.pop %v2994
        %v2996 = vmul.f32 %v2991, %v2995
        %2997 = vrot.lane.b32.xlu0 %v2179, 40
        %v2998 = vpop.permute.xlu0 %2997
        %v3000 = vsel %vm955, %v2996, 0
        %v3002 = vsel %vm959, %v2998, 0
        %3004 = vmatprep.subr.mxu0 0.0
        %3005 = vmatpush1.msra.mxu0 0.0
        %3006 = vmatprep.subr.mxu0 0.0
        %3007 = vmatpush1.msra.mxu0 0.0
        %3008 = vmatprep.subr.mxu0 0.0
        %3009 = vmatpush1.msra.mxu0 0.0
        %3010 = vmatprep.subr.mxu0 0.0
        %3011 = vmatpush1.msra.mxu0 0.0
        %3012 = vmatprep.subr.mxu0 0.0
        %3013 = vmatpush1.msra.mxu0 0.0
        %3014 = vmatprep.subr.mxu0 0.0
        %3015 = vmatpush1.msra.mxu0 0.0
        %3016 = vmatprep.subr.mxu0 0.0
        %3017 = vmatpush1.msra.mxu0 0.0
        %3018 = vmatprep.subr.mxu0 0.0
        %3019 = vmatpush1.msra.mxu0 0.0
        %3020 = vmatprep.subr.mxu0 0.0
        %3021 = vmatpush1.msra.mxu0 0.0
        %3022 = vmatprep.subr.mxu0 0.0
        %3023 = vmatpush1.msra.mxu0 0.0
        %3024 = vmatprep.subr.mxu0 0.0
        %3025 = vmatpush1.msra.mxu0 0.0
        %3026 = vmatprep.subr.mxu0 0.0
        %3027 = vmatpush1.msra.mxu0 0.0
        %3028 = vmatprep.subr.mxu0 0.0
        %3029 = vmatpush1.msra.mxu0 0.0
        %3030 = vmatprep.subr.mxu0 0.0
        %3031 = vmatpush1.msra.mxu0 0.0
        %3032 = vmatprep.subr.mxu0 0.0
        %3033 = vmatpush1.msra.mxu0 0.0
        %3034 = vmatprep.subr.mxu0 0.0
        %3035 = vmatpush1.msra.mxu0 %v3002
        %3036 = vmatprep.subr.mxu0 0.0
        %3037 = vmatpush2.msra.mxu0 0.0
        %3038 = vmatprep.subr.mxu0 0.0
        %3039 = vmatpush2.msra.mxu0 0.0
        %3040 = vmatprep.subr.mxu0 0.0
        %3041 = vmatpush2.msra.mxu0 0.0
        %3042 = vmatprep.subr.mxu0 0.0
        %3043 = vmatpush2.msra.mxu0 0.0
        %3044 = vmatprep.subr.mxu0 0.0
        %3045 = vmatpush2.msra.mxu0 0.0
        %3046 = vmatprep.subr.mxu0 0.0
        %3047 = vmatpush2.msra.mxu0 0.0
        %3048 = vmatprep.subr.mxu0 0.0
        %3049 = vmatpush2.msra.mxu0 0.0
        %3050 = vmatprep.subr.mxu0 0.0
        %3051 = vmatpush2.msra.mxu0 0.0
        %3052 = vmatprep.subr.mxu0 0.0
        %3053 = vmatpush2.msra.mxu0 0.0
        %3054 = vmatprep.subr.mxu0 0.0
        %3055 = vmatpush2.msra.mxu0 0.0
        %3056 = vmatprep.subr.mxu0 0.0
        %3057 = vmatpush2.msra.mxu0 0.0
        %3058 = vmatprep.subr.mxu0 0.0
        %3059 = vmatpush2.msra.mxu0 0.0
        %3060 = vmatprep.subr.mxu0 0.0
        %3061 = vmatpush2.msra.mxu0 0.0
        %3062 = vmatprep.subr.mxu0 0.0
        %3063 = vmatpush2.msra.mxu0 0.0
        %3064 = vmatprep.subr.mxu0 0.0
        %3065 = vmatpush2.msra.mxu0 0.0
        %3066 = vmatprep.subr.mxu0 0.0
        %3067 = vmatpush2.msra.mxu0 0.0
        %3068 = vmatprep.mubr.f32.mxu0 0.0
        %3069 = vmatmul.mubr.f32.gmra.mxu0 %v3000
        %v3070 = vpop.f32.mrf.mxu0
        %v3071 = vadd.f32 0.0, %v3070
        %v3072 = vpop.f32.mrf.mxu0
        %3073 = vdwg.mxu0
        %v3075 = vsel %vm865, %v3071, 0
        %3077 = vmatprep.subr.mxu0 0.0
        %3078 = vmatpush1.msra.mxu0 0.0
        %3079 = vmatprep.subr.mxu0 0.0
        %3080 = vmatpush1.msra.mxu0 0.0
        %3081 = vmatprep.subr.mxu0 0.0
        %3082 = vmatpush1.msra.mxu0 0.0
        %3083 = vmatprep.subr.mxu0 0.0
        %3084 = vmatpush1.msra.mxu0 0.0
        %3085 = vmatprep.subr.mxu0 0.0
        %3086 = vmatpush1.msra.mxu0 0.0
        %3087 = vmatprep.subr.mxu0 0.0
        %3088 = vmatpush1.msra.mxu0 0.0
        %3089 = vmatprep.subr.mxu0 0.0
        %3090 = vmatpush1.msra.mxu0 0.0
        %3091 = vmatprep.subr.mxu0 0.0
        %3092 = vmatpush1.msra.mxu0 0.0
        %3093 = vmatprep.subr.mxu0 0.0
        %3094 = vmatpush1.msra.mxu0 0.0
        %3095 = vmatprep.subr.mxu0 0.0
        %3096 = vmatpush1.msra.mxu0 0.0
        %3097 = vmatprep.subr.mxu0 0.0
        %3098 = vmatpush1.msra.mxu0 0.0
        %3099 = vmatprep.subr.mxu0 0.0
        %3100 = vmatpush1.msra.mxu0 0.0
        %3101 = vmatprep.subr.mxu0 0.0
        %3102 = vmatpush1.msra.mxu0 0.0
        %3103 = vmatprep.subr.mxu0 0.0
        %3104 = vmatpush1.msra.mxu0 0.0
        %3105 = vmatprep.subr.mxu0 0.0
        %3106 = vmatpush1.msra.mxu0 0.0
        %3107 = vmatprep.subr.mxu0 0.0
        %3108 = vmatpush1.msra.mxu0 %v2186
        %3109 = vmatprep.subr.mxu0 0.0
        %3110 = vmatpush2.msra.mxu0 0.0
        %3111 = vmatprep.subr.mxu0 0.0
        %3112 = vmatpush2.msra.mxu0 0.0
        %3113 = vmatprep.subr.mxu0 0.0
        %3114 = vmatpush2.msra.mxu0 0.0
        %3115 = vmatprep.subr.mxu0 0.0
        %3116 = vmatpush2.msra.mxu0 0.0
        %3117 = vmatprep.subr.mxu0 0.0
        %3118 = vmatpush2.msra.mxu0 0.0
        %3119 = vmatprep.subr.mxu0 0.0
        %3120 = vmatpush2.msra.mxu0 0.0
        %3121 = vmatprep.subr.mxu0 0.0
        %3122 = vmatpush2.msra.mxu0 0.0
        %3123 = vmatprep.subr.mxu0 0.0
        %3124 = vmatpush2.msra.mxu0 0.0
        %3125 = vmatprep.subr.mxu0 0.0
        %3126 = vmatpush2.msra.mxu0 0.0
        %3127 = vmatprep.subr.mxu0 0.0
        %3128 = vmatpush2.msra.mxu0 0.0
        %3129 = vmatprep.subr.mxu0 0.0
        %3130 = vmatpush2.msra.mxu0 0.0
        %3131 = vmatprep.subr.mxu0 0.0
        %3132 = vmatpush2.msra.mxu0 0.0
        %3133 = vmatprep.subr.mxu0 0.0
        %3134 = vmatpush2.msra.mxu0 0.0
        %3135 = vmatprep.subr.mxu0 0.0
        %3136 = vmatpush2.msra.mxu0 0.0
        %3137 = vmatprep.subr.mxu0 0.0
        %3138 = vmatpush2.msra.mxu0 0.0
        %3139 = vmatprep.subr.mxu0 0.0
        %3140 = vmatpush2.msra.mxu0 0.0
        %3141 = vmatprep.mubr.f32.mxu0 0.0
        %3142 = vmatmul.mubr.f32.gmra.mxu0 %v3075
        %v3143 = vpop.f32.mrf.mxu0
        %v3144 = vadd.f32 0.0, %v3143
        %v3145 = vpop.f32.mrf.mxu0
        %3146 = vdwg.mxu0
        %v3147 = vadd.f32 %v2906, %v3144
        %v3148 = vadd.f32 %v2064, %v3147
        %s3149 = scalar_lea.vmem %s8, 1
        %v3150 = vld [vmem:[%s3149] sm:$0x1]
        %v3152 = vlaneseq
        %v3153 = vshrl.u32 %v3152, 7
        %v3154 = vsub.s32 0, %v3153
        %v3155 = vrot.slane %v3150, %v3154
        %v3157 = vadd.f32 %v3148, %v3155
        %s3158 = scalar_lea.vmem %s9, 1
        %v3159 = vld [vmem:[%s3158] sm:$0x1]
        %s3160 = scalar_lea.vmem %s10, 1
        %v3161 = vld [vmem:[%s3160] sm:$0x1]
        %v3162 = vsel %vm744, %v3157, 0.0
        %3163 = vadd.xlane.f32.xlu0 %v3162
        %v3164 = vpop.xlane.xlu0 %3163
        %v3165 = vmul.f32 %v3164, %v748
        %v3166 = vsub.f32 %v3157, %v3165
        %v3167 = vmul.f32 %v3166, %v3166
        %v3168 = vsel %vm744, %v3167, 0.0
        %3169 = vadd.xlane.f32.xlu0 %v3168
        %v3170 = vpop.xlane.xlu0 %3169
        %v3171 = vmul.f32 %v3170, %v748
        %v3172 = vadd.f32 %v3171, 1e-12
        %v3173 = vrsqrt.pop %v3172
        %v3174 = vmul.f32 %v3166, %v3173
        %v3176 = vlaneseq
        %v3177 = vshrl.u32 %v3176, 7
        %v3178 = vsub.s32 0, %v3177
        %v3179 = vrot.slane %v3159, %v3178
        %v3181 = vmul.f32 %v3174, %v3179
        %v3183 = vlaneseq
        %v3184 = vshrl.u32 %v3183, 7
        %v3185 = vsub.s32 0, %v3184
        %v3186 = vrot.slane %v3161, %v3185
        %v3188 = vadd.f32 %v3181, %v3186
        %s3189 = scalar_lea.vmem %s11, 32
        %v3190 = vld [vmem:[%s3189] sm:$0xff]
        %v3191 = vld [vmem:[%s3189 + $0x8] sm:$0xff]
        %v3192 = vld [vmem:[%s3189 + $0x10] sm:$0xff]
        %v3193 = vld [vmem:[%s3189 + $0x18] sm:$0xff]
        %s3194 = scalar_lea.vmem %s12, 1
        %v3195 = vld [vmem:[%s3194] sm:$0x1]
        %v3197 = vlaneseq
        %v3198 = vshrl.u32 %v3197, 7
        %v3199 = vsub.s32 0, %v3198
        %v3200 = vrot.slane %v3195, %v3199
        %v3203 = vsel %vm784, %v3188, 0
        %3205 = vmatprep.subr.mxu0 0.0
        %3206 = vmatpush1.msra.mxu0 0.0
        %3207 = vmatprep.subr.mxu0 0.0
        %3208 = vmatpush1.msra.mxu0 0.0
        %3209 = vmatprep.subr.mxu0 0.0
        %3210 = vmatpush1.msra.mxu0 0.0
        %3211 = vmatprep.subr.mxu0 0.0
        %3212 = vmatpush1.msra.mxu0 0.0
        %3213 = vmatprep.subr.mxu0 0.0
        %3214 = vmatpush1.msra.mxu0 0.0
        %3215 = vmatprep.subr.mxu0 0.0
        %3216 = vmatpush1.msra.mxu0 0.0
        %3217 = vmatprep.subr.mxu0 0.0
        %3218 = vmatpush1.msra.mxu0 0.0
        %3219 = vmatprep.subr.mxu0 0.0
        %3220 = vmatpush1.msra.mxu0 0.0
        %3221 = vmatprep.subr.mxu0 0.0
        %3222 = vmatpush1.msra.mxu0 0.0
        %3223 = vmatprep.subr.mxu0 0.0
        %3224 = vmatpush1.msra.mxu0 0.0
        %3225 = vmatprep.subr.mxu0 0.0
        %3226 = vmatpush1.msra.mxu0 0.0
        %3227 = vmatprep.subr.mxu0 0.0
        %3228 = vmatpush1.msra.mxu0 0.0
        %3229 = vmatprep.subr.mxu0 0.0
        %3230 = vmatpush1.msra.mxu0 %v3193
        %3231 = vmatprep.subr.mxu0 0.0
        %3232 = vmatpush1.msra.mxu0 %v3192
        %3233 = vmatprep.subr.mxu0 0.0
        %3234 = vmatpush1.msra.mxu0 %v3191
        %3235 = vmatprep.subr.mxu0 0.0
        %3236 = vmatpush1.msra.mxu0 %v3190
        %3237 = vmatprep.subr.mxu0 0.0
        %3238 = vmatpush2.msra.mxu0 0.0
        %3239 = vmatprep.subr.mxu0 0.0
        %3240 = vmatpush2.msra.mxu0 0.0
        %3241 = vmatprep.subr.mxu0 0.0
        %3242 = vmatpush2.msra.mxu0 0.0
        %3243 = vmatprep.subr.mxu0 0.0
        %3244 = vmatpush2.msra.mxu0 0.0
        %3245 = vmatprep.subr.mxu0 0.0
        %3246 = vmatpush2.msra.mxu0 0.0
        %3247 = vmatprep.subr.mxu0 0.0
        %3248 = vmatpush2.msra.mxu0 0.0
        %3249 = vmatprep.subr.mxu0 0.0
        %3250 = vmatpush2.msra.mxu0 0.0
        %3251 = vmatprep.subr.mxu0 0.0
        %3252 = vmatpush2.msra.mxu0 0.0
        %3253 = vmatprep.subr.mxu0 0.0
        %3254 = vmatpush2.msra.mxu0 0.0
        %3255 = vmatprep.subr.mxu0 0.0
        %3256 = vmatpush2.msra.mxu0 0.0
        %3257 = vmatprep.subr.mxu0 0.0
        %3258 = vmatpush2.msra.mxu0 0.0
        %3259 = vmatprep.subr.mxu0 0.0
        %3260 = vmatpush2.msra.mxu0 0.0
        %3261 = vmatprep.subr.mxu0 0.0
        %3262 = vmatpush2.msra.mxu0 0.0
        %3263 = vmatprep.subr.mxu0 0.0
        %3264 = vmatpush2.msra.mxu0 0.0
        %3265 = vmatprep.subr.mxu0 0.0
        %3266 = vmatpush2.msra.mxu0 0.0
        %3267 = vmatprep.subr.mxu0 0.0
        %3268 = vmatpush2.msra.mxu0 0.0
        %3269 = vmatprep.mubr.f32.mxu0 0.0
        %3270 = vmatmul.mubr.f32.gmra.mxu0 %v3203
        %v3271 = vpop.f32.mrf.mxu0
        %v3272 = vadd.f32 %v3200, %v3271
        %v3273 = vpop.f32.mrf.mxu0
        %3274 = vdwg.mxu0
        %v3275 = vmul.f32 %v3272, 0.5
        %v3276 = vmul.f32 %v3272, 0.70710677
        %vm3277 = vcmp.ge.f32.partialorder %v3276, 0.0
        %v3278 = vsel %vm3277, 1.0, -1.0
        %v3279 = vand.u32 2147483647, %v3276
        %v3280 = vmul.f32 %v3279, 0.3275911
        %v3281 = vadd.f32 %v3280, 1.0
        %v3282 = vrcp.pop %v3281
        %v3283 = vmul.f32 1.0, %v3282
        %v3284 = vmul.f32 %v3283, 1.0614054
        %v3285 = vadd.f32 %v3284, -1.4531521
        %v3286 = vmul.f32 %v3285, %v3283
        %v3287 = vadd.f32 %v3286, 1.4214138
        %v3288 = vmul.f32 %v3287, %v3283
        %v3289 = vadd.f32 %v3288, -0.28449672
        %v3290 = vmul.f32 %v3289, %v3283
        %v3291 = vadd.f32 %v3290, 0.2548296
        %v3292 = vmul.f32 %v3291, %v3283
        %v3293 = vsub.f32 0.0, %v3279
        %v3294 = vmul.f32 %v3293, %v3279
        %v3295 = vmul.f32 %v3294, 1.442695
        %v3296 = vpow.pop %v3295
        %v3297 = vmul.f32 %v3292, %v3296
        %v3298 = vsub.f32 1.0, %v3297
        %v3299 = vmul.f32 %v3278, %v3298
        %v3300 = vadd.f32 %v3299, 1.0
        %v3301 = vmul.f32 %v3275, %v3300
        %s3302 = scalar_lea.vmem %s13, 64
        %v3303 = vld [vmem:[%s3302] sm:$0xff]
        %v3304 = vld [vmem:[%s3302 + $0x8] sm:$0xff]
        %v3305 = vld [vmem:[%s3302 + $0x10] sm:$0xff]
        %v3306 = vld [vmem:[%s3302 + $0x18] sm:$0xff]
        %v3307 = vld [vmem:[%s3302 + $0x20] sm:$0xff]
        %v3308 = vld [vmem:[%s3302 + $0x28] sm:$0xff]
        %v3309 = vld [vmem:[%s3302 + $0x30] sm:$0xff]
        %v3310 = vld [vmem:[%s3302 + $0x38] sm:$0xff]
        %s3311 = scalar_lea.vmem %s14, 1
        %v3312 = vld [vmem:[%s3311] sm:$0x1]
        %v3314 = vlaneseq
        %v3315 = vshrl.u32 %v3314, 7
        %v3316 = vsub.s32 0, %v3315
        %v3317 = vrot.slane %v3312, %v3316
        %v3320 = vsel %vm668, %v3301, 0
        %3322 = vmatprep.subr.mxu0 0.0
        %3323 = vmatpush1.msra.mxu0 0.0
        %3324 = vmatprep.subr.mxu0 0.0
        %3325 = vmatpush1.msra.mxu0 0.0
        %3326 = vmatprep.subr.mxu0 0.0
        %3327 = vmatpush1.msra.mxu0 0.0
        %3328 = vmatprep.subr.mxu0 0.0
        %3329 = vmatpush1.msra.mxu0 0.0
        %3330 = vmatprep.subr.mxu0 0.0
        %3331 = vmatpush1.msra.mxu0 0.0
        %3332 = vmatprep.subr.mxu0 0.0
        %3333 = vmatpush1.msra.mxu0 0.0
        %3334 = vmatprep.subr.mxu0 0.0
        %3335 = vmatpush1.msra.mxu0 0.0
        %3336 = vmatprep.subr.mxu0 0.0
        %3337 = vmatpush1.msra.mxu0 0.0
        %3338 = vmatprep.subr.mxu0 0.0
        %3339 = vmatpush1.msra.mxu0 %v3310
        %3340 = vmatprep.subr.mxu0 0.0
        %3341 = vmatpush1.msra.mxu0 %v3309
        %3342 = vmatprep.subr.mxu0 0.0
        %3343 = vmatpush1.msra.mxu0 %v3308
        %3344 = vmatprep.subr.mxu0 0.0
        %3345 = vmatpush1.msra.mxu0 %v3307
        %3346 = vmatprep.subr.mxu0 0.0
        %3347 = vmatpush1.msra.mxu0 %v3306
        %3348 = vmatprep.subr.mxu0 0.0
        %3349 = vmatpush1.msra.mxu0 %v3305
        %3350 = vmatprep.subr.mxu0 0.0
        %3351 = vmatpush1.msra.mxu0 %v3304
        %3352 = vmatprep.subr.mxu0 0.0
        %3353 = vmatpush1.msra.mxu0 %v3303
        %3354 = vmatprep.subr.mxu0 0.0
        %3355 = vmatpush2.msra.mxu0 0.0
        %3356 = vmatprep.subr.mxu0 0.0
        %3357 = vmatpush2.msra.mxu0 0.0
        %3358 = vmatprep.subr.mxu0 0.0
        %3359 = vmatpush2.msra.mxu0 0.0
        %3360 = vmatprep.subr.mxu0 0.0
        %3361 = vmatpush2.msra.mxu0 0.0
        %3362 = vmatprep.subr.mxu0 0.0
        %3363 = vmatpush2.msra.mxu0 0.0
        %3364 = vmatprep.subr.mxu0 0.0
        %3365 = vmatpush2.msra.mxu0 0.0
        %3366 = vmatprep.subr.mxu0 0.0
        %3367 = vmatpush2.msra.mxu0 0.0
        %3368 = vmatprep.subr.mxu0 0.0
        %3369 = vmatpush2.msra.mxu0 0.0
        %3370 = vmatprep.subr.mxu0 0.0
        %3371 = vmatpush2.msra.mxu0 0.0
        %3372 = vmatprep.subr.mxu0 0.0
        %3373 = vmatpush2.msra.mxu0 0.0
        %3374 = vmatprep.subr.mxu0 0.0
        %3375 = vmatpush2.msra.mxu0 0.0
        %3376 = vmatprep.subr.mxu0 0.0
        %3377 = vmatpush2.msra.mxu0 0.0
        %3378 = vmatprep.subr.mxu0 0.0
        %3379 = vmatpush2.msra.mxu0 0.0
        %3380 = vmatprep.subr.mxu0 0.0
        %3381 = vmatpush2.msra.mxu0 0.0
        %3382 = vmatprep.subr.mxu0 0.0
        %3383 = vmatpush2.msra.mxu0 0.0
        %3384 = vmatprep.subr.mxu0 0.0
        %3385 = vmatpush2.msra.mxu0 0.0
        %3386 = vmatprep.mubr.f32.mxu0 0.0
        %3387 = vmatmul.mubr.f32.gmra.mxu0 %v3320
        %v3388 = vpop.f32.mrf.mxu0
        %v3389 = vadd.f32 %v3317, %v3388
        %v3390 = vpop.f32.mrf.mxu0
        %3391 = vdwg.mxu0
        %v3392 = vadd.f32 %v3157, %v3389
        %v3393 = vld [vmem:[%s15] sm:$0x1]
        %v3394 = vld [vmem:[%s16] sm:$0x1]
        %v3395 = vsel %vm744, %v3392, 0.0
        %3396 = vadd.xlane.f32.xlu0 %v3395
        %v3397 = vpop.xlane.xlu0 %3396
        %v3398 = vmul.f32 %v3397, %v748
        %v3399 = vsub.f32 %v3392, %v3398
        %v3400 = vmul.f32 %v3399, %v3399
        %v3401 = vsel %vm744, %v3400, 0.0
        %3402 = vadd.xlane.f32.xlu0 %v3401
        %v3403 = vpop.xlane.xlu0 %3402
        %v3404 = vmul.f32 %v3403, %v748
        %v3405 = vadd.f32 %v3404, 1e-12
        %v3406 = vrsqrt.pop %v3405
        %v3407 = vmul.f32 %v3399, %v3406
        %v3409 = vlaneseq
        %v3410 = vshrl.u32 %v3409, 7
        %v3411 = vsub.s32 0, %v3410
        %v3412 = vrot.slane %v3393, %v3411
        %v3414 = vmul.f32 %v3407, %v3412
        %v3416 = vlaneseq
        %v3417 = vshrl.u32 %v3416, 7
        %v3418 = vsub.s32 0, %v3417
        %v3419 = vrot.slane %v3394, %v3418
        %v3421 = vadd.f32 %v3414, %v3419
        %v3422 = vld [vmem:[%s17] sm:$0xff]
        %v3423 = vld [vmem:[%s17 + $0x8] sm:$0xff]
        %v3424 = vld [vmem:[%s17 + $0x10] sm:$0xff]
        %v3425 = vld [vmem:[%s17 + $0x18] sm:$0xff]
        %v3426 = vld [vmem:[%s18] sm:$0x1]
        %v3428 = vsel %vm784, %v3421, 0
        %3430 = vmatprep.subr.mxu0 0.0
        %3431 = vmatpush1.msra.mxu0 0.0
        %3432 = vmatprep.subr.mxu0 0.0
        %3433 = vmatpush1.msra.mxu0 0.0
        %3434 = vmatprep.subr.mxu0 0.0
        %3435 = vmatpush1.msra.mxu0 0.0
        %3436 = vmatprep.subr.mxu0 0.0
        %3437 = vmatpush1.msra.mxu0 0.0
        %3438 = vmatprep.subr.mxu0 0.0
        %3439 = vmatpush1.msra.mxu0 0.0
        %3440 = vmatprep.subr.mxu0 0.0
        %3441 = vmatpush1.msra.mxu0 0.0
        %3442 = vmatprep.subr.mxu0 0.0
        %3443 = vmatpush1.msra.mxu0 0.0
        %3444 = vmatprep.subr.mxu0 0.0
        %3445 = vmatpush1.msra.mxu0 0.0
        %3446 = vmatprep.subr.mxu0 0.0
        %3447 = vmatpush1.msra.mxu0 0.0
        %3448 = vmatprep.subr.mxu0 0.0
        %3449 = vmatpush1.msra.mxu0 0.0
        %3450 = vmatprep.subr.mxu0 0.0
        %3451 = vmatpush1.msra.mxu0 0.0
        %3452 = vmatprep.subr.mxu0 0.0
        %3453 = vmatpush1.msra.mxu0 0.0
        %3454 = vmatprep.subr.mxu0 0.0
        %3455 = vmatpush1.msra.mxu0 %v3425
        %3456 = vmatprep.subr.mxu0 0.0
        %3457 = vmatpush1.msra.mxu0 %v3424
        %3458 = vmatprep.subr.mxu0 0.0
        %3459 = vmatpush1.msra.mxu0 %v3423
        %3460 = vmatprep.subr.mxu0 0.0
        %3461 = vmatpush1.msra.mxu0 %v3422
        %3462 = vmatprep.subr.mxu0 0.0
        %3463 = vmatpush2.msra.mxu0 0.0
        %3464 = vmatprep.subr.mxu0 0.0
        %3465 = vmatpush2.msra.mxu0 0.0
        %3466 = vmatprep.subr.mxu0 0.0
        %3467 = vmatpush2.msra.mxu0 0.0
        %3468 = vmatprep.subr.mxu0 0.0
        %3469 = vmatpush2.msra.mxu0 0.0
        %3470 = vmatprep.subr.mxu0 0.0
        %3471 = vmatpush2.msra.mxu0 0.0
        %3472 = vmatprep.subr.mxu0 0.0
        %3473 = vmatpush2.msra.mxu0 0.0
        %3474 = vmatprep.subr.mxu0 0.0
        %3475 = vmatpush2.msra.mxu0 0.0
        %3476 = vmatprep.subr.mxu0 0.0
        %3477 = vmatpush2.msra.mxu0 0.0
        %3478 = vmatprep.subr.mxu0 0.0
        %3479 = vmatpush2.msra.mxu0 0.0
        %3480 = vmatprep.subr.mxu0 0.0
        %3481 = vmatpush2.msra.mxu0 0.0
        %3482 = vmatprep.subr.mxu0 0.0
        %3483 = vmatpush2.msra.mxu0 0.0
        %3484 = vmatprep.subr.mxu0 0.0
        %3485 = vmatpush2.msra.mxu0 0.0
        %3486 = vmatprep.subr.mxu0 0.0
        %3487 = vmatpush2.msra.mxu0 0.0
        %3488 = vmatprep.subr.mxu0 0.0
        %3489 = vmatpush2.msra.mxu0 0.0
        %3490 = vmatprep.subr.mxu0 0.0
        %3491 = vmatpush2.msra.mxu0 0.0
        %3492 = vmatprep.subr.mxu0 0.0
        %3493 = vmatpush2.msra.mxu0 0.0
        %3494 = vmatprep.mubr.f32.mxu0 0.0
        %3495 = vmatmul.mubr.f32.gmra.mxu0 %v3428
        %v3496 = vpop.f32.mrf.mxu0
        %v3497 = vadd.f32 %v3426, %v3496
        %v3498 = vpop.f32.mrf.mxu0
        %3499 = vdwg.mxu0
        %v3500 = vtanh.pop %v3497
        %v3501 = vld [vmem:[%s640] sm:$0x1]
        %vm3502 = vcmp.ge.f32.partialorder %v3501, 0.2
        %v3503 = vmul.f32 %v3500, 1.25
        %v3504 = vsel %vm3502, %v3503, 0.0
        %vm3505 = vcmask 253952
        %3506 = vst.msk [vmem:[%s632] sm:$0x1] %vm3505, %v3504
        %s3507 = sand.u32 %s472, 1
        %s3508 = scalar_lea.sflag [#allocation3], %s3507
        %s3509 = sand.u32 %s472, 1
        %s3510 = scalar_lea.vmem [#allocation2], %s3509
        // Predicated region
        $region101: #{tpu_custom_call.1} parent=99 // pred_check
          %p3511 = pneg %p482
        $region102: #{tpu_custom_call.1} parent=99 // pred_check_branch
          %3513 = sbr.rel (%p3511) target = $region104
        $region103: #{tpu_custom_call.1} parent=99 // pred_region
          %s3515 = ssub.s32 16, 16
          %3516 = vsyncadd %s3508, %s3515
          %s3517 = smul.addr %s34, 16
          %s3518 = scalar_lea.hbm %s20, %s3517
          %s3520 = sshll.u32 %s3510, 4
          %s3521 = int_to_ptr.vmem [resolvable:$true] %s3520
          %3523 = dma.vmem_to_hbm [thread:$0]  %s3521, 16, %s3518, %s3508
        $region104: #{tpu_custom_call.1} parent=99 // pred_fallthru
          _
      $region100: #{tpu_custom_call.1} parent=5 // pred_fallthru
        _
      %p3524 = scmp.le.s32.totalorder 2, %s29
      // Predicated region
      $region105: #{tpu_custom_call.1} parent=5 // pred_check
        %p3525 = pneg %p3524
      $region106: #{tpu_custom_call.1} parent=5 // pred_check_branch
        %3527 = sbr.rel (%p3525) target = $region108
      $region107: #{tpu_custom_call.1} parent=5 // pred_region
        %s3528 = ssub.s32 %s29, 2
        // Predicated region
        $region109: #{tpu_custom_call.1} parent=107 // pred_check
          %p3529 = pneg %p488
        $region110: #{tpu_custom_call.1} parent=107 // pred_check_branch
          %3531 = sbr.rel (%p3529) target = $region112
        $region111: #{tpu_custom_call.1} parent=107 // pred_region
          %s3532 = sand.u32 %s473, 1
          %s3533 = scalar_lea.sflag [#allocation3], %s3532
          %s3534 = sand.u32 %s473, 1
          %s3535 = scalar_lea.vmem [#allocation2], %s3534
          %3536 = dma.done %s3533, 16
        $region112: #{tpu_custom_call.1} parent=107 // pred_fallthru
          _
      $region108: #{tpu_custom_call.1} parent=5 // pred_fallthru
        _
    $region6: #{tpu_custom_call.1} parent=1 // loop_footer
      %s33 = sadd.s32 1, %s29
    $region7: #{tpu_custom_call.1} parent=1 // loop_footer_branch
      %28 = sbr.rel target = $region3
    $region8: #{tpu_custom_call.1} parent=1 // loop_exit
      _
    %3537 = vsyncpa [#allocation3], 1
    %s3538 = scalar_lea.sflag [#allocation3], 1
    %3539 = vsyncpa %s3538, 1

</llo_original>
